<compile_context>
chip_gen: v7x
topology: tpu7x:2x2x1
jax: 0.10.0
libtpu: 0.0.40
codegen_flags: <defaults>
</compile_context>

<pallas_src>
import functools
from typing import NamedTuple

import jax
import jax.numpy as jnp
from jax.experimental import pallas as pl
from jax.experimental.pallas import tpu as pltpu

IN_DIM = 28 * 28          # 784
HID = 278
OUT_DIM = 10
OUT_PAD = 128             # lane-dense padded logits / softmax width
N_HIDDEN = 6
LN_EPS = 1e-5
NEG_BIG = -1e30           # bias for padded logit columns -> exp underflows to 0


def _round_up(x, m):
    return (x + m - 1) // m * m


# --------------------------------------------------------------------------
# Kernel: one batch tile of the full 7-layer forward.
# --------------------------------------------------------------------------
def mlp_ln_kernel(x_ref, w1_ref, wh_ref, bgb_ref, w7_ref, b7_ref, out_ref, *h_refs):
    """
    x_ref   : (TB, 784)      compute dtype (bf16 or f32) input tile
    w1_ref  : (784, 278)     compute dtype  layer-1 weight (in, out)
    wh_ref  : (5, 278, 278)  compute dtype  layers 2..6 weights
    bgb_ref : (6, 3, 278)    f32  [bias, gamma, beta] per hidden layer
    w7_ref  : (278, 128)     compute dtype  head weight, zero-padded cols 10..127
    b7_ref  : (1, 128)       f32  head bias, padded cols = -1e30
    out_ref : (TB, 128)      f32  softmax probabilities (cols 10..127 == 0)
    h_refs  : optional 6 x (TB, 278) LayerNorm outputs (embedding dtype)
    """
    cdt = w1_ref.dtype
    h = x_ref[...]                                       # already compute dtype
    for i in range(N_HIDDEN):
        w = w1_ref[...] if i == 0 else wh_ref[i - 1]
        z = jnp.dot(h, w, preferred_element_type=jnp.float32)   # MXU, f32 acc
        z = jnp.maximum(z + bgb_ref[i, 0:1, :], 0.0)             # bias + ReLU
        # LayerNorm (biased variance, eps inside rsqrt), f32 statistics.
        mu = jnp.mean(z, axis=-1, keepdims=True)
        d = z - mu
        var = jnp.mean(d * d, axis=-1, keepdims=True)
        scale = jax.lax.rsqrt(var + LN_EPS) * bgb_ref[i, 1:2, :]  # rstd * gamma
        y = d * scale + bgb_ref[i, 2:3, :]               # fused normalize+affine
        h = y.astype(cdt)                                # feeds the next matmul
        if h_refs:
            h_refs[i][...] = h if h_refs[i].dtype == cdt else y.astype(h_refs[i].dtype)

    logits = jnp.dot(h, w7_ref[...], preferred_element_type=jnp.float32) + b7_ref[...]
    # Numerically stable softmax; padded columns hold -1e30 -> exp == 0.
    m = jnp.max(logits, axis=-1, keepdims=True)
    e = jnp.exp(logits - m)
    out_ref[...] = e / jnp.sum(e, axis=-1, keepdims=True)


# --------------------------------------------------------------------------
# Parameter packing (call ONCE, outside the per-batch loop)
# --------------------------------------------------------------------------
class PackedParams(NamedTuple):
    w1: jax.Array
    wh: jax.Array
    bgb: jax.Array
    w7: jax.Array
    b7: jax.Array


def pack_params(params, compute_dtype=jnp.bfloat16):
    """Stack / pad / cast the 26 per-layer tensors into 5 resident blocks."""
    w1 = params[0].astype(compute_dtype)                                   # (784, 278)
    wh = jnp.stack([params[4 * i] for i in range(1, N_HIDDEN)],
                   axis=0).astype(compute_dtype)                           # (5, 278, 278)
    bgb = jnp.stack(
        [jnp.concatenate(params[4 * i + 1:4 * i + 4], axis=0)
         for i in range(N_HIDDEN)], axis=0).astype(jnp.float32)            # (6, 3, 278)
    w7 = jnp.pad(params[-2],
                 ((0, 0), (0, OUT_PAD - OUT_DIM))).astype(compute_dtype)   # (278, 128)
    b7 = jnp.pad(params[-1], ((0, 0), (0, OUT_PAD - OUT_DIM)),
                 constant_values=NEG_BIG).astype(jnp.float32)              # (1, 128)
    return PackedParams(w1, wh, bgb, w7, b7)


# --------------------------------------------------------------------------
# Generation-aware batch tile / VMEM-limit choice
# --------------------------------------------------------------------------
def _tile_config(batch, block_b, return_embeddings):
    try:
        kind = jax.devices()[0].device_kind.lower()
    except Exception:
        kind = ""
    if "v7" in kind:                       # 64 MiB VMEM per TC, 2 TCs per chip
        vmem = 48 * 1024 * 1024
        if block_b is None:
            block_b = 512 if return_embeddings else 1024
        if batch >= 32:
            n = max(2, -(-batch // block_b))
            n += n % 2                     # even tile count -> both TCs busy
            return _round_up(-(-batch // n), 16), vmem
    elif "v5" in kind or "v6" in kind:     # 128 MiB VMEM
        vmem = 96 * 1024 * 1024
        if block_b is None:
            block_b = 1024
    else:                                  # unknown device / interpret: conservative
        vmem = 32 * 1024 * 1024
        if block_b is None:
            block_b = 256
    tb = _round_up(min(block_b, _round_up(batch, 16)), 16)
    return tb, vmem


# --------------------------------------------------------------------------
# Wrapper
# --------------------------------------------------------------------------
@functools.partial(jax.jit,
                   static_argnames=("block_b", "return_embeddings", "embedding_dtype"))
def deep_mlp_ln_forward(x_nchw, packed, *, block_b=None, return_embeddings=True,
                        embedding_dtype=None):
    """Forward pass matching DeepMLP_LN.forward.

    Returns (out, extract_embedding) with extract_embedding =
    [x_flat, h1..h6, out] (or None if return_embeddings=False).
    """
    x_flat = x_nchw.reshape(-1, IN_DIM).astype(jnp.float32)    # x.view(-1, 784)
    B = x_flat.shape[0]
    cdt = packed.w1.dtype                                      # compute dtype
    if embedding_dtype is None:
        embedding_dtype = jnp.bfloat16 if cdt == jnp.bfloat16 else jnp.float32

    TB, vmem_bytes = _tile_config(B, block_b, return_embeddings)
    B_pad = _round_up(B, TB)
    x_in = x_flat.astype(cdt)                                  # bf16 DMA on fast dtype
    if B_pad != B:
        x_in = jnp.pad(x_in, ((0, B_pad - B), (0, 0)))
    grid = (B_pad // TB,)

    def resident(shape):
        return pl.BlockSpec(shape, lambda i, _n=len(shape): (0,) * _n)

    in_specs = [
        pl.BlockSpec((TB, IN_DIM), lambda i: (i, 0)),   # x tile
        resident((IN_DIM, HID)),                        # w1
        resident((N_HIDDEN - 1, HID, HID)),             # w2..w6
        resident((N_HIDDEN, 3, HID)),                   # bias/gamma/beta
        resident((HID, OUT_PAD)),                       # padded head weight
        resident((1, OUT_PAD)),                         # padded head bias
    ]
    out_shape = [jax.ShapeDtypeStruct((B_pad, OUT_PAD), jnp.float32)]
    out_specs = [pl.BlockSpec((TB, OUT_PAD), lambda i: (i, 0))]
    if return_embeddings:
        out_shape += [jax.ShapeDtypeStruct((B_pad, HID), embedding_dtype)] * N_HIDDEN
        out_specs += [pl.BlockSpec((TB, HID), lambda i: (i, 0))] * N_HIDDEN

    results = pl.pallas_call(
        mlp_ln_kernel,
        grid=grid,
        in_specs=in_specs,
        out_specs=out_specs,
        out_shape=out_shape,
        compiler_params=pltpu.CompilerParams(
            dimension_semantics=("parallel",),
            vmem_limit_bytes=vmem_bytes),
    )(x_in, packed.w1, packed.wh, packed.bgb, packed.w7, packed.b7)

    out = results[0][:B, :OUT_DIM]
    if return_embeddings:
        extract_embedding = [x_flat] + [r[:B] for r in results[1:]] + [out]
    else:
        extract_embedding = None
    return out, extract_embedding


# --------------------------------------------------------------------------
# Parameter init (shapes match the PyTorch module; weights stored (in, out))
# --------------------------------------------------------------------------
def init_params(key):
    params = []
    dims = [IN_DIM] + [HID] * N_HIDDEN
    for i in range(N_HIDDEN):
        key, kw, kb = jax.random.split(key, 3)
        bound = 1.0 / jnp.sqrt(dims[i])
        w = jax.random.uniform(kw, (dims[i], dims[i + 1]), jnp.float32, -bound, bound)
        b = jax.random.uniform(kb, (1, dims[i + 1]), jnp.float32, -bound, bound)
        gamma = jnp.ones((1, dims[i + 1]), jnp.float32)
        beta = jnp.zeros((1, dims[i + 1]), jnp.float32)
        params += [w, b, gamma, beta]
    key, kw, kb = jax.random.split(key, 3)
    bound = 1.0 / jnp.sqrt(HID)
    w7 = jax.random.uniform(kw, (HID, OUT_DIM), jnp.float32, -bound, bound)
    b7 = jax.random.uniform(kb, (1, OUT_DIM), jnp.float32, -bound, bound)
    params += [w7, b7]
    return params


# --------------------------------------------------------------------------
# Pure-JAX reference with PyTorch-equivalent full-f32 math
# --------------------------------------------------------------------------
def reference_forward_f32(x_nchw, params):
    hp = jax.lax.Precision.HIGHEST
    x = x_nchw.reshape(-1, IN_DIM).astype(jnp.float32)
    h = x
    embeds = [x]
    for i in range(N_HIDDEN):
        w, b, g, be = params[4 * i:4 * i + 4]
        z = jnp.maximum(jnp.dot(h, w, precision=hp) + b, 0.0)
        mu = jnp.mean(z, axis=-1, keepdims=True)
        var = jnp.mean((z - mu) ** 2, axis=-1, keepdims=True)
        z = (z - mu) / jnp.sqrt(var + LN_EPS) * g + be
        embeds.append(z)
        h = z
    out = jax.nn.softmax(jnp.dot(h, params[-2], precision=hp) + params[-1], axis=-1)
    embeds.append(out)
    return out, embeds


if __name__ == "__main__":
    key = jax.random.PRNGKey(0)
    kp, kx, kx2 = jax.random.split(key, 3)
    params = init_params(kp)

    # Pack / cast parameters ONCE (outside the per-batch loop).
    packed_bf16 = pack_params(params)                            # default fast path
    packed_f32 = pack_params(params, compute_dtype=jnp.float32)  # PyTorch-parity math

    # Per-depth rel-L2 tolerances vs exact-f32 math: bf16 matmul noise is
    # amplified through the 6 LayerNorm layers, so the bound grows with depth.
    REL_TOL = [0.02, 0.05, 0.08, 0.12, 0.18, 0.25]

    def check(x, out, embeds, *, out_atol=0.1):
        ref_out, ref_emb = reference_forward_f32(x, params)
        assert out.shape == ref_out.shape == (x.shape[0], OUT_DIM)
        assert len(embeds) == 8
        x_flat = x.reshape(-1, IN_DIM).astype(jnp.float32)
        assert jnp.array_equal(embeds[0], x_flat)
        for layer in range(N_HIDDEN):
            a = embeds[layer + 1].astype(jnp.float32)
            b = ref_emb[layer + 1]
            assert a.shape == b.shape
            rel = float(jnp.linalg.norm(a - b) / (jnp.linalg.norm(b) + 1e-12))
            assert rel < REL_TOL[layer], (layer, rel)
        assert jnp.array_equal(embeds[-1], out)
        assert jnp.allclose(out, ref_out, atol=out_atol)
        assert float(jnp.mean(jnp.abs(out - ref_out))) < 0.02
        assert jnp.allclose(jnp.sum(out, axis=-1), 1.0, atol=1e-3)
        assert bool(jnp.all(out >= 0.0))

    # ---- small batch (B=2), bf16 compute (default performance path) ----
    x = jax.random.normal(kx, (2, 1, 28, 28), jnp.float32)
    out, embeds = deep_mlp_ln_forward(x, packed_bf16)
    out = jax.block_until_ready(out)
    assert embeds[1].dtype == jnp.bfloat16           # bf16 embedding writeback
    check(x, out, embeds)

    # ---- fast path: skip the six hidden-embedding HBM writebacks ----
    out_fast, emb_none = deep_mlp_ln_forward(x, packed_bf16, return_embeddings=False)
    out_fast = jax.block_until_ready(out_fast)
    assert emb_none is None
    assert jnp.allclose(out_fast, out, atol=1e-5)

    # ---- f32 compute mode (PyTorch-parity matmul dtype) ----
    out32, embeds32 = deep_mlp_ln_forward(x, packed_f32)
    out32 = jax.block_until_ready(out32)
    assert embeds32[1].dtype == jnp.float32
    check(x, out32, embeds32)

    # ---- multi-tile grid (B=300) and tiling-invariance of the plumbing ----
    xb = jax.random.normal(kx2, (300, 1, 28, 28), jnp.float32)
    out_b, emb_b = deep_mlp_ln_forward(xb, packed_bf16)
    out_b = jax.block_until_ready(out_b)
    check(xb, out_b, emb_b)

    out_t, emb_t = deep_mlp_ln_forward(xb, packed_bf16, block_b=64)  # >=5 batch tiles
    out_t = jax.block_until_ready(out_t)
    # Per-row math is independent of the batch tiling -> results must agree.
    assert jnp.allclose(out_t, out_b, atol=1e-3)
    for a, b in zip(emb_t[1:7], emb_b[1:7]):
        assert jnp.allclose(a.astype(jnp.float32), b.astype(jnp.float32), atol=0.03)

    print("KERNEL_OK")
</pallas_src>

<mosaic_0001>
module attributes {stable_mosaic.version = 11 : i64} {
  func.func @mlp_ln_kernel(%arg0: i32, %arg1: memref<16x784xbf16, #tpu.memory_space<vmem>>, %arg2: memref<784x278xbf16, #tpu.memory_space<vmem>>, %arg3: memref<5x278x278xbf16, #tpu.memory_space<vmem>>, %arg4: memref<6x3x278xf32, #tpu.memory_space<vmem>>, %arg5: memref<278x128xbf16, #tpu.memory_space<vmem>>, %arg6: memref<1x128xf32, #tpu.memory_space<vmem>>, %arg7: memref<16x128xf32, #tpu.memory_space<vmem>>, %arg8: memref<16x278xbf16, #tpu.memory_space<vmem>>, %arg9: memref<16x278xbf16, #tpu.memory_space<vmem>>, %arg10: memref<16x278xbf16, #tpu.memory_space<vmem>>, %arg11: memref<16x278xbf16, #tpu.memory_space<vmem>>, %arg12: memref<16x278xbf16, #tpu.memory_space<vmem>>, %arg13: memref<16x278xbf16, #tpu.memory_space<vmem>>) attributes {dimension_semantics = [#tpu.dimension_semantics<parallel>], iteration_bounds = array<i64: 1>, scalar_prefetch = 0 : i64, scratch_operands = 0 : i64, tpu.core_type = #tpu.core_type<tc>, window_params = [{transform_indices = @transform_0, window_bounds = array<i64: 16, 784>}, {pipeline_mode = #tpu.pipeline_mode<synchronous>, transform_indices = @transform_1, window_bounds = array<i64: 784, 278>}, {pipeline_mode = #tpu.pipeline_mode<synchronous>, transform_indices = @transform_2, window_bounds = array<i64: 5, 278, 278>}, {pipeline_mode = #tpu.pipeline_mode<synchronous>, transform_indices = @transform_3, window_bounds = array<i64: 6, 3, 278>}, {pipeline_mode = #tpu.pipeline_mode<synchronous>, transform_indices = @transform_4, window_bounds = array<i64: 278, 128>}, {pipeline_mode = #tpu.pipeline_mode<synchronous>, transform_indices = @transform_5, window_bounds = array<i64: 1, 128>}, {transform_indices = @transform_6, window_bounds = array<i64: 16, 128>}, {transform_indices = @transform_7, window_bounds = array<i64: 16, 278>}, {transform_indices = @transform_8, window_bounds = array<i64: 16, 278>}, {transform_indices = @transform_9, window_bounds = array<i64: 16, 278>}, {transform_indices = @transform_10, window_bounds = array<i64: 16, 278>}, {transform_indices = @transform_11, window_bounds = array<i64: 16, 278>}, {transform_indices = @transform_12, window_bounds = array<i64: 16, 278>}]} {
    %c0 = arith.constant 0 : index
    %c0_0 = arith.constant 0 : index
    %0 = vector.load %arg1[%c0, %c0_0] : memref<16x784xbf16, #tpu.memory_space<vmem>>, vector<16x784xbf16>
    %c0_1 = arith.constant 0 : index
    %c0_2 = arith.constant 0 : index
    %1 = vector.load %arg2[%c0_1, %c0_2] : memref<784x278xbf16, #tpu.memory_space<vmem>>, vector<784x278xbf16>
    %cst = arith.constant dense<0.000000e+00> : vector<16x278xf32>
    %2 = tpu.matmul %0, %1, %cst {dimension_numbers = #tpu.dot_dimension_numbers<[1], [0], [0], [1], [0, 0, 1, 1], [], []>} : vector<16x784xbf16>, vector<784x278xbf16>, vector<16x278xf32> -> vector<16x278xf32>
    %c0_3 = arith.constant 0 : index
    %c0_4 = arith.constant 0 : index
    %c0_5 = arith.constant 0 : index
    %3 = vector.load %arg4[%c0_3, %c0_4, %c0_5] : memref<6x3x278xf32, #tpu.memory_space<vmem>>, vector<1x1x278xf32>
    %4 = vector.shape_cast %3 : vector<1x1x278xf32> to vector<1x278xf32>
    %5 = vector.broadcast %4 : vector<1x278xf32> to vector<16x278xf32>
    %6 = arith.addf %2, %5 : vector<16x278xf32>
    %cst_6 = arith.constant 0.000000e+00 : f32
    %7 = vector.broadcast %cst_6 : f32 to vector<16x278xf32>
    %8 = arith.maximumf %6, %7 : vector<16x278xf32>
    %cst_7 = arith.constant dense<0.000000e+00> : vector<16xf32>
    %9 = vector.multi_reduction <add>, %8, %cst_7 [1] : vector<16x278xf32> to vector<16xf32>
    %10 = vector.shape_cast %9 : vector<16xf32> to vector<16x1xf32>
    %cst_8 = arith.constant 2.780000e+02 : f32
    %11 = vector.broadcast %cst_8 : f32 to vector<16x1xf32>
    %12 = arith.divf %10, %11 : vector<16x1xf32>
    %13 = vector.broadcast %12 : vector<16x1xf32> to vector<16x278xf32>
    %14 = arith.subf %8, %13 : vector<16x278xf32>
    %15 = arith.mulf %14, %14 : vector<16x278xf32>
    %cst_9 = arith.constant dense<0.000000e+00> : vector<16xf32>
    %16 = vector.multi_reduction <add>, %15, %cst_9 [1] : vector<16x278xf32> to vector<16xf32>
    %17 = vector.shape_cast %16 : vector<16xf32> to vector<16x1xf32>
    %cst_10 = arith.constant 2.780000e+02 : f32
    %18 = vector.broadcast %cst_10 : f32 to vector<16x1xf32>
    %19 = arith.divf %17, %18 : vector<16x1xf32>
    %cst_11 = arith.constant 9.99999974E-6 : f32
    %20 = vector.broadcast %cst_11 : f32 to vector<16x1xf32>
    %21 = arith.addf %19, %20 : vector<16x1xf32>
    %22 = math.rsqrt %21 : vector<16x1xf32>
    %c0_12 = arith.constant 0 : index
    %c1 = arith.constant 1 : index
    %c0_13 = arith.constant 0 : index
    %23 = vector.load %arg4[%c0_12, %c1, %c0_13] : memref<6x3x278xf32, #tpu.memory_space<vmem>>, vector<1x1x278xf32>
    %24 = vector.shape_cast %23 : vector<1x1x278xf32> to vector<1x278xf32>
    %25 = vector.broadcast %22 : vector<16x1xf32> to vector<16x278xf32>
    %26 = vector.broadcast %24 : vector<1x278xf32> to vector<16x278xf32>
    %27 = arith.mulf %25, %26 : vector<16x278xf32>
    %28 = arith.mulf %14, %27 : vector<16x278xf32>
    %c0_14 = arith.constant 0 : index
    %c2 = arith.constant 2 : index
    %c0_15 = arith.constant 0 : index
    %29 = vector.load %arg4[%c0_14, %c2, %c0_15] : memref<6x3x278xf32, #tpu.memory_space<vmem>>, vector<1x1x278xf32>
    %30 = vector.shape_cast %29 : vector<1x1x278xf32> to vector<1x278xf32>
    %31 = vector.broadcast %30 : vector<1x278xf32> to vector<16x278xf32>
    %32 = arith.addf %28, %31 : vector<16x278xf32>
    %33 = arith.truncf %32 : vector<16x278xf32> to vector<16x278xbf16>
    %c0_16 = arith.constant 0 : index
    %c0_17 = arith.constant 0 : index
    %34 = vector.load %arg8[%c0_16, %c0_17] : memref<16x278xbf16, #tpu.memory_space<vmem>>, vector<16x278xbf16>
    tpu.vector_store %arg8[%c0_16, %c0_17], %33 {strides = array<i32>} : memref<16x278xbf16, #tpu.memory_space<vmem>>, vector<16x278xbf16>,
    %c0_18 = arith.constant 0 : index
    %c0_19 = arith.constant 0 : index
    %c0_20 = arith.constant 0 : index
    %35 = vector.load %arg3[%c0_18, %c0_19, %c0_20] : memref<5x278x278xbf16, #tpu.memory_space<vmem>>, vector<1x278x278xbf16>
    %36 = vector.shape_cast %35 : vector<1x278x278xbf16> to vector<278x278xbf16>
    %cst_21 = arith.constant dense<0.000000e+00> : vector<16x278xf32>
    %37 = tpu.matmul %33, %36, %cst_21 {dimension_numbers = #tpu.dot_dimension_numbers<[1], [0], [0], [1], [0, 0, 1, 1], [], []>} : vector<16x278xbf16>, vector<278x278xbf16>, vector<16x278xf32> -> vector<16x278xf32>
    %c1_22 = arith.constant 1 : index
    %c0_23 = arith.constant 0 : index
    %c0_24 = arith.constant 0 : index
    %38 = vector.load %arg4[%c1_22, %c0_23, %c0_24] : memref<6x3x278xf32, #tpu.memory_space<vmem>>, vector<1x1x278xf32>
    %39 = vector.shape_cast %38 : vector<1x1x278xf32> to vector<1x278xf32>
    %40 = vector.broadcast %39 : vector<1x278xf32> to vector<16x278xf32>
    %41 = arith.addf %37, %40 : vector<16x278xf32>
    %cst_25 = arith.constant 0.000000e+00 : f32
    %42 = vector.broadcast %cst_25 : f32 to vector<16x278xf32>
    %43 = arith.maximumf %41, %42 : vector<16x278xf32>
    %cst_26 = arith.constant dense<0.000000e+00> : vector<16xf32>
    %44 = vector.multi_reduction <add>, %43, %cst_26 [1] : vector<16x278xf32> to vector<16xf32>
    %45 = vector.shape_cast %44 : vector<16xf32> to vector<16x1xf32>
    %cst_27 = arith.constant 2.780000e+02 : f32
    %46 = vector.broadcast %cst_27 : f32 to vector<16x1xf32>
    %47 = arith.divf %45, %46 : vector<16x1xf32>
    %48 = vector.broadcast %47 : vector<16x1xf32> to vector<16x278xf32>
    %49 = arith.subf %43, %48 : vector<16x278xf32>
    %50 = arith.mulf %49, %49 : vector<16x278xf32>
    %cst_28 = arith.constant dense<0.000000e+00> : vector<16xf32>
    %51 = vector.multi_reduction <add>, %50, %cst_28 [1] : vector<16x278xf32> to vector<16xf32>
    %52 = vector.shape_cast %51 : vector<16xf32> to vector<16x1xf32>
    %cst_29 = arith.constant 2.780000e+02 : f32
    %53 = vector.broadcast %cst_29 : f32 to vector<16x1xf32>
    %54 = arith.divf %52, %53 : vector<16x1xf32>
    %cst_30 = arith.constant 9.99999974E-6 : f32
    %55 = vector.broadcast %cst_30 : f32 to vector<16x1xf32>
    %56 = arith.addf %54, %55 : vector<16x1xf32>
    %57 = math.rsqrt %56 : vector<16x1xf32>
    %c1_31 = arith.constant 1 : index
    %c1_32 = arith.constant 1 : index
    %c0_33 = arith.constant 0 : index
    %58 = vector.load %arg4[%c1_31, %c1_32, %c0_33] : memref<6x3x278xf32, #tpu.memory_space<vmem>>, vector<1x1x278xf32>
    %59 = vector.shape_cast %58 : vector<1x1x278xf32> to vector<1x278xf32>
    %60 = vector.broadcast %57 : vector<16x1xf32> to vector<16x278xf32>
    %61 = vector.broadcast %59 : vector<1x278xf32> to vector<16x278xf32>
    %62 = arith.mulf %60, %61 : vector<16x278xf32>
    %63 = arith.mulf %49, %62 : vector<16x278xf32>
    %c1_34 = arith.constant 1 : index
    %c2_35 = arith.constant 2 : index
    %c0_36 = arith.constant 0 : index
    %64 = vector.load %arg4[%c1_34, %c2_35, %c0_36] : memref<6x3x278xf32, #tpu.memory_space<vmem>>, vector<1x1x278xf32>
    %65 = vector.shape_cast %64 : vector<1x1x278xf32> to vector<1x278xf32>
    %66 = vector.broadcast %65 : vector<1x278xf32> to vector<16x278xf32>
    %67 = arith.addf %63, %66 : vector<16x278xf32>
    %68 = arith.truncf %67 : vector<16x278xf32> to vector<16x278xbf16>
    %c0_37 = arith.constant 0 : index
    %c0_38 = arith.constant 0 : index
    %69 = vector.load %arg9[%c0_37, %c0_38] : memref<16x278xbf16, #tpu.memory_space<vmem>>, vector<16x278xbf16>
    tpu.vector_store %arg9[%c0_37, %c0_38], %68 {strides = array<i32>} : memref<16x278xbf16, #tpu.memory_space<vmem>>, vector<16x278xbf16>,
    %c1_39 = arith.constant 1 : index
    %c0_40 = arith.constant 0 : index
    %c0_41 = arith.constant 0 : index
    %70 = vector.load %arg3[%c1_39, %c0_40, %c0_41] : memref<5x278x278xbf16, #tpu.memory_space<vmem>>, vector<1x278x278xbf16>
    %71 = vector.shape_cast %70 : vector<1x278x278xbf16> to vector<278x278xbf16>
    %cst_42 = arith.constant dense<0.000000e+00> : vector<16x278xf32>
    %72 = tpu.matmul %68, %71, %cst_42 {dimension_numbers = #tpu.dot_dimension_numbers<[1], [0], [0], [1], [0, 0, 1, 1], [], []>} : vector<16x278xbf16>, vector<278x278xbf16>, vector<16x278xf32> -> vector<16x278xf32>
    %c2_43 = arith.constant 2 : index
    %c0_44 = arith.constant 0 : index
    %c0_45 = arith.constant 0 : index
    %73 = vector.load %arg4[%c2_43, %c0_44, %c0_45] : memref<6x3x278xf32, #tpu.memory_space<vmem>>, vector<1x1x278xf32>
    %74 = vector.shape_cast %73 : vector<1x1x278xf32> to vector<1x278xf32>
    %75 = vector.broadcast %74 : vector<1x278xf32> to vector<16x278xf32>
    %76 = arith.addf %72, %75 : vector<16x278xf32>
    %cst_46 = arith.constant 0.000000e+00 : f32
    %77 = vector.broadcast %cst_46 : f32 to vector<16x278xf32>
    %78 = arith.maximumf %76, %77 : vector<16x278xf32>
    %cst_47 = arith.constant dense<0.000000e+00> : vector<16xf32>
    %79 = vector.multi_reduction <add>, %78, %cst_47 [1] : vector<16x278xf32> to vector<16xf32>
    %80 = vector.shape_cast %79 : vector<16xf32> to vector<16x1xf32>
    %cst_48 = arith.constant 2.780000e+02 : f32
    %81 = vector.broadcast %cst_48 : f32 to vector<16x1xf32>
    %82 = arith.divf %80, %81 : vector<16x1xf32>
    %83 = vector.broadcast %82 : vector<16x1xf32> to vector<16x278xf32>
    %84 = arith.subf %78, %83 : vector<16x278xf32>
    %85 = arith.mulf %84, %84 : vector<16x278xf32>
    %cst_49 = arith.constant dense<0.000000e+00> : vector<16xf32>
    %86 = vector.multi_reduction <add>, %85, %cst_49 [1] : vector<16x278xf32> to vector<16xf32>
    %87 = vector.shape_cast %86 : vector<16xf32> to vector<16x1xf32>
    %cst_50 = arith.constant 2.780000e+02 : f32
    %88 = vector.broadcast %cst_50 : f32 to vector<16x1xf32>
    %89 = arith.divf %87, %88 : vector<16x1xf32>
    %cst_51 = arith.constant 9.99999974E-6 : f32
    %90 = vector.broadcast %cst_51 : f32 to vector<16x1xf32>
    %91 = arith.addf %89, %90 : vector<16x1xf32>
    %92 = math.rsqrt %91 : vector<16x1xf32>
    %c2_52 = arith.constant 2 : index
    %c1_53 = arith.constant 1 : index
    %c0_54 = arith.constant 0 : index
    %93 = vector.load %arg4[%c2_52, %c1_53, %c0_54] : memref<6x3x278xf32, #tpu.memory_space<vmem>>, vector<1x1x278xf32>
    %94 = vector.shape_cast %93 : vector<1x1x278xf32> to vector<1x278xf32>
    %95 = vector.broadcast %92 : vector<16x1xf32> to vector<16x278xf32>
    %96 = vector.broadcast %94 : vector<1x278xf32> to vector<16x278xf32>
    %97 = arith.mulf %95, %96 : vector<16x278xf32>
    %98 = arith.mulf %84, %97 : vector<16x278xf32>
    %c2_55 = arith.constant 2 : index
    %c2_56 = arith.constant 2 : index
    %c0_57 = arith.constant 0 : index
    %99 = vector.load %arg4[%c2_55, %c2_56, %c0_57] : memref<6x3x278xf32, #tpu.memory_space<vmem>>, vector<1x1x278xf32>
    %100 = vector.shape_cast %99 : vector<1x1x278xf32> to vector<1x278xf32>
    %101 = vector.broadcast %100 : vector<1x278xf32> to vector<16x278xf32>
    %102 = arith.addf %98, %101 : vector<16x278xf32>
    %103 = arith.truncf %102 : vector<16x278xf32> to vector<16x278xbf16>
    %c0_58 = arith.constant 0 : index
    %c0_59 = arith.constant 0 : index
    %104 = vector.load %arg10[%c0_58, %c0_59] : memref<16x278xbf16, #tpu.memory_space<vmem>>, vector<16x278xbf16>
    tpu.vector_store %arg10[%c0_58, %c0_59], %103 {strides = array<i32>} : memref<16x278xbf16, #tpu.memory_space<vmem>>, vector<16x278xbf16>,
    %c2_60 = arith.constant 2 : index
    %c0_61 = arith.constant 0 : index
    %c0_62 = arith.constant 0 : index
    %105 = vector.load %arg3[%c2_60, %c0_61, %c0_62] : memref<5x278x278xbf16, #tpu.memory_space<vmem>>, vector<1x278x278xbf16>
    %106 = vector.shape_cast %105 : vector<1x278x278xbf16> to vector<278x278xbf16>
    %cst_63 = arith.constant dense<0.000000e+00> : vector<16x278xf32>
    %107 = tpu.matmul %103, %106, %cst_63 {dimension_numbers = #tpu.dot_dimension_numbers<[1], [0], [0], [1], [0, 0, 1, 1], [], []>} : vector<16x278xbf16>, vector<278x278xbf16>, vector<16x278xf32> -> vector<16x278xf32>
    %c3 = arith.constant 3 : index
    %c0_64 = arith.constant 0 : index
    %c0_65 = arith.constant 0 : index
    %108 = vector.load %arg4[%c3, %c0_64, %c0_65] : memref<6x3x278xf32, #tpu.memory_space<vmem>>, vector<1x1x278xf32>
    %109 = vector.shape_cast %108 : vector<1x1x278xf32> to vector<1x278xf32>
    %110 = vector.broadcast %109 : vector<1x278xf32> to vector<16x278xf32>
    %111 = arith.addf %107, %110 : vector<16x278xf32>
    %cst_66 = arith.constant 0.000000e+00 : f32
    %112 = vector.broadcast %cst_66 : f32 to vector<16x278xf32>
    %113 = arith.maximumf %111, %112 : vector<16x278xf32>
    %cst_67 = arith.constant dense<0.000000e+00> : vector<16xf32>
    %114 = vector.multi_reduction <add>, %113, %cst_67 [1] : vector<16x278xf32> to vector<16xf32>
    %115 = vector.shape_cast %114 : vector<16xf32> to vector<16x1xf32>
    %cst_68 = arith.constant 2.780000e+02 : f32
    %116 = vector.broadcast %cst_68 : f32 to vector<16x1xf32>
    %117 = arith.divf %115, %116 : vector<16x1xf32>
    %118 = vector.broadcast %117 : vector<16x1xf32> to vector<16x278xf32>
    %119 = arith.subf %113, %118 : vector<16x278xf32>
    %120 = arith.mulf %119, %119 : vector<16x278xf32>
    %cst_69 = arith.constant dense<0.000000e+00> : vector<16xf32>
    %121 = vector.multi_reduction <add>, %120, %cst_69 [1] : vector<16x278xf32> to vector<16xf32>
    %122 = vector.shape_cast %121 : vector<16xf32> to vector<16x1xf32>
    %cst_70 = arith.constant 2.780000e+02 : f32
    %123 = vector.broadcast %cst_70 : f32 to vector<16x1xf32>
    %124 = arith.divf %122, %123 : vector<16x1xf32>
    %cst_71 = arith.constant 9.99999974E-6 : f32
    %125 = vector.broadcast %cst_71 : f32 to vector<16x1xf32>
    %126 = arith.addf %124, %125 : vector<16x1xf32>
    %127 = math.rsqrt %126 : vector<16x1xf32>
    %c3_72 = arith.constant 3 : index
    %c1_73 = arith.constant 1 : index
    %c0_74 = arith.constant 0 : index
    %128 = vector.load %arg4[%c3_72, %c1_73, %c0_74] : memref<6x3x278xf32, #tpu.memory_space<vmem>>, vector<1x1x278xf32>
    %129 = vector.shape_cast %128 : vector<1x1x278xf32> to vector<1x278xf32>
    %130 = vector.broadcast %127 : vector<16x1xf32> to vector<16x278xf32>
    %131 = vector.broadcast %129 : vector<1x278xf32> to vector<16x278xf32>
    %132 = arith.mulf %130, %131 : vector<16x278xf32>
    %133 = arith.mulf %119, %132 : vector<16x278xf32>
    %c3_75 = arith.constant 3 : index
    %c2_76 = arith.constant 2 : index
    %c0_77 = arith.constant 0 : index
    %134 = vector.load %arg4[%c3_75, %c2_76, %c0_77] : memref<6x3x278xf32, #tpu.memory_space<vmem>>, vector<1x1x278xf32>
    %135 = vector.shape_cast %134 : vector<1x1x278xf32> to vector<1x278xf32>
    %136 = vector.broadcast %135 : vector<1x278xf32> to vector<16x278xf32>
    %137 = arith.addf %133, %136 : vector<16x278xf32>
    %138 = arith.truncf %137 : vector<16x278xf32> to vector<16x278xbf16>
    %c0_78 = arith.constant 0 : index
    %c0_79 = arith.constant 0 : index
    %139 = vector.load %arg11[%c0_78, %c0_79] : memref<16x278xbf16, #tpu.memory_space<vmem>>, vector<16x278xbf16>
    tpu.vector_store %arg11[%c0_78, %c0_79], %138 {strides = array<i32>} : memref<16x278xbf16, #tpu.memory_space<vmem>>, vector<16x278xbf16>,
    %c3_80 = arith.constant 3 : index
    %c0_81 = arith.constant 0 : index
    %c0_82 = arith.constant 0 : index
    %140 = vector.load %arg3[%c3_80, %c0_81, %c0_82] : memref<5x278x278xbf16, #tpu.memory_space<vmem>>, vector<1x278x278xbf16>
    %141 = vector.shape_cast %140 : vector<1x278x278xbf16> to vector<278x278xbf16>
    %cst_83 = arith.constant dense<0.000000e+00> : vector<16x278xf32>
    %142 = tpu.matmul %138, %141, %cst_83 {dimension_numbers = #tpu.dot_dimension_numbers<[1], [0], [0], [1], [0, 0, 1, 1], [], []>} : vector<16x278xbf16>, vector<278x278xbf16>, vector<16x278xf32> -> vector<16x278xf32>
    %c4 = arith.constant 4 : index
    %c0_84 = arith.constant 0 : index
    %c0_85 = arith.constant 0 : index
    %143 = vector.load %arg4[%c4, %c0_84, %c0_85] : memref<6x3x278xf32, #tpu.memory_space<vmem>>, vector<1x1x278xf32>
    %144 = vector.shape_cast %143 : vector<1x1x278xf32> to vector<1x278xf32>
    %145 = vector.broadcast %144 : vector<1x278xf32> to vector<16x278xf32>
    %146 = arith.addf %142, %145 : vector<16x278xf32>
    %cst_86 = arith.constant 0.000000e+00 : f32
    %147 = vector.broadcast %cst_86 : f32 to vector<16x278xf32>
    %148 = arith.maximumf %146, %147 : vector<16x278xf32>
    %cst_87 = arith.constant dense<0.000000e+00> : vector<16xf32>
    %149 = vector.multi_reduction <add>, %148, %cst_87 [1] : vector<16x278xf32> to vector<16xf32>
    %150 = vector.shape_cast %149 : vector<16xf32> to vector<16x1xf32>
    %cst_88 = arith.constant 2.780000e+02 : f32
    %151 = vector.broadcast %cst_88 : f32 to vector<16x1xf32>
    %152 = arith.divf %150, %151 : vector<16x1xf32>
    %153 = vector.broadcast %152 : vector<16x1xf32> to vector<16x278xf32>
    %154 = arith.subf %148, %153 : vector<16x278xf32>
    %155 = arith.mulf %154, %154 : vector<16x278xf32>
    %cst_89 = arith.constant dense<0.000000e+00> : vector<16xf32>
    %156 = vector.multi_reduction <add>, %155, %cst_89 [1] : vector<16x278xf32> to vector<16xf32>
    %157 = vector.shape_cast %156 : vector<16xf32> to vector<16x1xf32>
    %cst_90 = arith.constant 2.780000e+02 : f32
    %158 = vector.broadcast %cst_90 : f32 to vector<16x1xf32>
    %159 = arith.divf %157, %158 : vector<16x1xf32>
    %cst_91 = arith.constant 9.99999974E-6 : f32
    %160 = vector.broadcast %cst_91 : f32 to vector<16x1xf32>
    %161 = arith.addf %159, %160 : vector<16x1xf32>
    %162 = math.rsqrt %161 : vector<16x1xf32>
    %c4_92 = arith.constant 4 : index
    %c1_93 = arith.constant 1 : index
    %c0_94 = arith.constant 0 : index
    %163 = vector.load %arg4[%c4_92, %c1_93, %c0_94] : memref<6x3x278xf32, #tpu.memory_space<vmem>>, vector<1x1x278xf32>
    %164 = vector.shape_cast %163 : vector<1x1x278xf32> to vector<1x278xf32>
    %165 = vector.broadcast %162 : vector<16x1xf32> to vector<16x278xf32>
    %166 = vector.broadcast %164 : vector<1x278xf32> to vector<16x278xf32>
    %167 = arith.mulf %165, %166 : vector<16x278xf32>
    %168 = arith.mulf %154, %167 : vector<16x278xf32>
    %c4_95 = arith.constant 4 : index
    %c2_96 = arith.constant 2 : index
    %c0_97 = arith.constant 0 : index
    %169 = vector.load %arg4[%c4_95, %c2_96, %c0_97] : memref<6x3x278xf32, #tpu.memory_space<vmem>>, vector<1x1x278xf32>
    %170 = vector.shape_cast %169 : vector<1x1x278xf32> to vector<1x278xf32>
    %171 = vector.broadcast %170 : vector<1x278xf32> to vector<16x278xf32>
    %172 = arith.addf %168, %171 : vector<16x278xf32>
    %173 = arith.truncf %172 : vector<16x278xf32> to vector<16x278xbf16>
    %c0_98 = arith.constant 0 : index
    %c0_99 = arith.constant 0 : index
    %174 = vector.load %arg12[%c0_98, %c0_99] : memref<16x278xbf16, #tpu.memory_space<vmem>>, vector<16x278xbf16>
    tpu.vector_store %arg12[%c0_98, %c0_99], %173 {strides = array<i32>} : memref<16x278xbf16, #tpu.memory_space<vmem>>, vector<16x278xbf16>,
    %c4_100 = arith.constant 4 : index
    %c0_101 = arith.constant 0 : index
    %c0_102 = arith.constant 0 : index
    %175 = vector.load %arg3[%c4_100, %c0_101, %c0_102] : memref<5x278x278xbf16, #tpu.memory_space<vmem>>, vector<1x278x278xbf16>
    %176 = vector.shape_cast %175 : vector<1x278x278xbf16> to vector<278x278xbf16>
    %cst_103 = arith.constant dense<0.000000e+00> : vector<16x278xf32>
    %177 = tpu.matmul %173, %176, %cst_103 {dimension_numbers = #tpu.dot_dimension_numbers<[1], [0], [0], [1], [0, 0, 1, 1], [], []>} : vector<16x278xbf16>, vector<278x278xbf16>, vector<16x278xf32> -> vector<16x278xf32>
    %c5 = arith.constant 5 : index
    %c0_104 = arith.constant 0 : index
    %c0_105 = arith.constant 0 : index
    %178 = vector.load %arg4[%c5, %c0_104, %c0_105] : memref<6x3x278xf32, #tpu.memory_space<vmem>>, vector<1x1x278xf32>
    %179 = vector.shape_cast %178 : vector<1x1x278xf32> to vector<1x278xf32>
    %180 = vector.broadcast %179 : vector<1x278xf32> to vector<16x278xf32>
    %181 = arith.addf %177, %180 : vector<16x278xf32>
    %cst_106 = arith.constant 0.000000e+00 : f32
    %182 = vector.broadcast %cst_106 : f32 to vector<16x278xf32>
    %183 = arith.maximumf %181, %182 : vector<16x278xf32>
    %cst_107 = arith.constant dense<0.000000e+00> : vector<16xf32>
    %184 = vector.multi_reduction <add>, %183, %cst_107 [1] : vector<16x278xf32> to vector<16xf32>
    %185 = vector.shape_cast %184 : vector<16xf32> to vector<16x1xf32>
    %cst_108 = arith.constant 2.780000e+02 : f32
    %186 = vector.broadcast %cst_108 : f32 to vector<16x1xf32>
    %187 = arith.divf %185, %186 : vector<16x1xf32>
    %188 = vector.broadcast %187 : vector<16x1xf32> to vector<16x278xf32>
    %189 = arith.subf %183, %188 : vector<16x278xf32>
    %190 = arith.mulf %189, %189 : vector<16x278xf32>
    %cst_109 = arith.constant dense<0.000000e+00> : vector<16xf32>
    %191 = vector.multi_reduction <add>, %190, %cst_109 [1] : vector<16x278xf32> to vector<16xf32>
    %192 = vector.shape_cast %191 : vector<16xf32> to vector<16x1xf32>
    %cst_110 = arith.constant 2.780000e+02 : f32
    %193 = vector.broadcast %cst_110 : f32 to vector<16x1xf32>
    %194 = arith.divf %192, %193 : vector<16x1xf32>
    %cst_111 = arith.constant 9.99999974E-6 : f32
    %195 = vector.broadcast %cst_111 : f32 to vector<16x1xf32>
    %196 = arith.addf %194, %195 : vector<16x1xf32>
    %197 = math.rsqrt %196 : vector<16x1xf32>
    %c5_112 = arith.constant 5 : index
    %c1_113 = arith.constant 1 : index
    %c0_114 = arith.constant 0 : index
    %198 = vector.load %arg4[%c5_112, %c1_113, %c0_114] : memref<6x3x278xf32, #tpu.memory_space<vmem>>, vector<1x1x278xf32>
    %199 = vector.shape_cast %198 : vector<1x1x278xf32> to vector<1x278xf32>
    %200 = vector.broadcast %197 : vector<16x1xf32> to vector<16x278xf32>
    %201 = vector.broadcast %199 : vector<1x278xf32> to vector<16x278xf32>
    %202 = arith.mulf %200, %201 : vector<16x278xf32>
    %203 = arith.mulf %189, %202 : vector<16x278xf32>
    %c5_115 = arith.constant 5 : index
    %c2_116 = arith.constant 2 : index
    %c0_117 = arith.constant 0 : index
    %204 = vector.load %arg4[%c5_115, %c2_116, %c0_117] : memref<6x3x278xf32, #tpu.memory_space<vmem>>, vector<1x1x278xf32>
    %205 = vector.shape_cast %204 : vector<1x1x278xf32> to vector<1x278xf32>
    %206 = vector.broadcast %205 : vector<1x278xf32> to vector<16x278xf32>
    %207 = arith.addf %203, %206 : vector<16x278xf32>
    %208 = arith.truncf %207 : vector<16x278xf32> to vector<16x278xbf16>
    %c0_118 = arith.constant 0 : index
    %c0_119 = arith.constant 0 : index
    %209 = vector.load %arg13[%c0_118, %c0_119] : memref<16x278xbf16, #tpu.memory_space<vmem>>, vector<16x278xbf16>
    tpu.vector_store %arg13[%c0_118, %c0_119], %208 {strides = array<i32>} : memref<16x278xbf16, #tpu.memory_space<vmem>>, vector<16x278xbf16>,
    %c0_120 = arith.constant 0 : index
    %c0_121 = arith.constant 0 : index
    %210 = vector.load %arg5[%c0_120, %c0_121] : memref<278x128xbf16, #tpu.memory_space<vmem>>, vector<278x128xbf16>
    %cst_122 = arith.constant dense<0.000000e+00> : vector<16x128xf32>
    %211 = tpu.matmul %208, %210, %cst_122 {dimension_numbers = #tpu.dot_dimension_numbers<[1], [0], [0], [1], [0, 0, 1, 1], [], []>} : vector<16x278xbf16>, vector<278x128xbf16>, vector<16x128xf32> -> vector<16x128xf32>
    %c0_123 = arith.constant 0 : index
    %c0_124 = arith.constant 0 : index
    %212 = vector.load %arg6[%c0_123, %c0_124] : memref<1x128xf32, #tpu.memory_space<vmem>>, vector<1x128xf32>
    %213 = vector.broadcast %212 : vector<1x128xf32> to vector<16x128xf32>
    %214 = arith.addf %211, %213 : vector<16x128xf32>
    %cst_125 = arith.constant dense<0xFF800000> : vector<16xf32>
    %215 = vector.multi_reduction <maximumf>, %214, %cst_125 [1] : vector<16x128xf32> to vector<16xf32>
    %216 = vector.shape_cast %215 : vector<16xf32> to vector<16x1xf32>
    %217 = vector.broadcast %216 : vector<16x1xf32> to vector<16x128xf32>
    %218 = arith.subf %214, %217 : vector<16x128xf32>
    %219 = math.exp %218 : vector<16x128xf32>
    %cst_126 = arith.constant dense<0.000000e+00> : vector<16xf32>
    %220 = vector.multi_reduction <add>, %219, %cst_126 [1] : vector<16x128xf32> to vector<16xf32>
    %221 = vector.shape_cast %220 : vector<16xf32> to vector<16x1xf32>
    %222 = vector.broadcast %221 : vector<16x1xf32> to vector<16x128xf32>
    %223 = arith.divf %219, %222 : vector<16x128xf32>
    %c0_127 = arith.constant 0 : index
    %c0_128 = arith.constant 0 : index
    %224 = vector.load %arg7[%c0_127, %c0_128] : memref<16x128xf32, #tpu.memory_space<vmem>>, vector<16x128xf32>
    tpu.vector_store %arg7[%c0_127, %c0_128], %223 {strides = array<i32>} : memref<16x128xf32, #tpu.memory_space<vmem>>, vector<16x128xf32>,
    return
  }
  func.func @transform_0(%arg0: i32) -> (i32, i32) {
    %c0_i32 = arith.constant 0 : i32
    %c0_i32_0 = arith.constant 0 : i32
    return %arg0, %c0_i32 : i32, i32
  }
  func.func @transform_1(%arg0: i32) -> (i32, i32) {
    %c0_i32 = arith.constant 0 : i32
    %c0_i32_0 = arith.constant 0 : i32
    %c0_i32_1 = arith.constant 0 : i32
    return %c0_i32, %c0_i32_0 : i32, i32
  }
  func.func @transform_2(%arg0: i32) -> (i32, i32, i32) {
    %c0_i32 = arith.constant 0 : i32
    %c0_i32_0 = arith.constant 0 : i32
    %c0_i32_1 = arith.constant 0 : i32
    %c0_i32_2 = arith.constant 0 : i32
    return %c0_i32, %c0_i32_0, %c0_i32_1 : i32, i32, i32
  }
  func.func @transform_3(%arg0: i32) -> (i32, i32, i32) {
    %c0_i32 = arith.constant 0 : i32
    %c0_i32_0 = arith.constant 0 : i32
    %c0_i32_1 = arith.constant 0 : i32
    %c0_i32_2 = arith.constant 0 : i32
    return %c0_i32, %c0_i32_0, %c0_i32_1 : i32, i32, i32
  }
  func.func @transform_4(%arg0: i32) -> (i32, i32) {
    %c0_i32 = arith.constant 0 : i32
    %c0_i32_0 = arith.constant 0 : i32
    %c0_i32_1 = arith.constant 0 : i32
    return %c0_i32, %c0_i32_0 : i32, i32
  }
  func.func @transform_5(%arg0: i32) -> (i32, i32) {
    %c0_i32 = arith.constant 0 : i32
    %c0_i32_0 = arith.constant 0 : i32
    %c0_i32_1 = arith.constant 0 : i32
    return %c0_i32, %c0_i32_0 : i32, i32
  }
  func.func @transform_6(%arg0: i32) -> (i32, i32) {
    %c0_i32 = arith.constant 0 : i32
    %c0_i32_0 = arith.constant 0 : i32
    return %arg0, %c0_i32 : i32, i32
  }
  func.func @transform_7(%arg0: i32) -> (i32, i32) {
    %c0_i32 = arith.constant 0 : i32
    %c0_i32_0 = arith.constant 0 : i32
    return %arg0, %c0_i32 : i32, i32
  }
  func.func @transform_8(%arg0: i32) -> (i32, i32) {
    %c0_i32 = arith.constant 0 : i32
    %c0_i32_0 = arith.constant 0 : i32
    return %arg0, %c0_i32 : i32, i32
  }
  func.func @transform_9(%arg0: i32) -> (i32, i32) {
    %c0_i32 = arith.constant 0 : i32
    %c0_i32_0 = arith.constant 0 : i32
    return %arg0, %c0_i32 : i32, i32
  }
  func.func @transform_10(%arg0: i32) -> (i32, i32) {
    %c0_i32 = arith.constant 0 : i32
    %c0_i32_0 = arith.constant 0 : i32
    return %arg0, %c0_i32 : i32, i32
  }
  func.func @transform_11(%arg0: i32) -> (i32, i32) {
    %c0_i32 = arith.constant 0 : i32
    %c0_i32_0 = arith.constant 0 : i32
    return %arg0, %c0_i32 : i32, i32
  }
  func.func @transform_12(%arg0: i32) -> (i32, i32) {
    %c0_i32 = arith.constant 0 : i32
    %c0_i32_0 = arith.constant 0 : i32
    return %arg0, %c0_i32 : i32, i32
  }
}

</mosaic_0001>

<llo_original>
// kernel: deep_mlp_ln_forward.1
$region0: #{deep_mlp_ln_forward.1}
  #allocation0 [shape = 'u32[]', space=smem, size = 0x4, offset = 0x4, fixed_abs, tag = 'smem constant byte address 0x4 - core index']
  #allocation1 [shape = 'u32[144,128]{1,0:T(1,128)}', space=vmem, size = 0x12000, scoped, tag = 'internal scratch']
  %s0 = inlined_call_operand.vmem [shape: bf16[16,784], index: 0, kind: input, shape index: {}]
  %s1 = inlined_call_operand.vmem [shape: bf16[784,278], index: 1, kind: input, shape index: {}]
  %s2 = inlined_call_operand.vmem [shape: bf16[5,278,278], index: 2, kind: input, shape index: {}]
  %s3 = inlined_call_operand.vmem [shape: f32[6,3,278], index: 3, kind: input, shape index: {}]
  %s4 = inlined_call_operand.vmem [shape: bf16[278,128], index: 4, kind: input, shape index: {}]
  %s5 = inlined_call_operand.vmem [shape: f32[1,128], index: 5, kind: input, shape index: {}]
  %s6 = inlined_call_operand.vmem [shape: f32[16,128], index: 6, kind: output, shape index: {0}]
  %s7 = inlined_call_operand.vmem [shape: bf16[16,278], index: 7, kind: output, shape index: {1}]
  %s8 = inlined_call_operand.vmem [shape: bf16[16,278], index: 8, kind: output, shape index: {2}]
  %s9 = inlined_call_operand.vmem [shape: bf16[16,278], index: 9, kind: output, shape index: {3}]
  %s10 = inlined_call_operand.vmem [shape: bf16[16,278], index: 10, kind: output, shape index: {4}]
  %s11 = inlined_call_operand.vmem [shape: bf16[16,278], index: 11, kind: output, shape index: {5}]
  %s12 = inlined_call_operand.vmem [shape: bf16[16,278], index: 12, kind: output, shape index: {6}]
  %13 = xla_tuple %s6, %s7, %s8, %s9, %s10, %s11, %s12
  %s14 = sld [smem:[#allocation0]]
  $region82: #{deep_mlp_ln_forward.1} parent=0
    _
  %s16 = ssub.s32 1, %s14
  %s17 = scalar_select 0, %s16, %s14
  // Predicated region
  $region2: #{deep_mlp_ln_forward.1} parent=0 // pred_check
    _
  $region3: #{deep_mlp_ln_forward.1} parent=0 // pred_check_branch
    %19 = sbr.rel (0) target = $region5
  $region4: #{deep_mlp_ln_forward.1} parent=0 // pred_region
    _
  $region5: #{deep_mlp_ln_forward.1} parent=0 // pred_fallthru
    _
  // Predicated region
  $region6: #{deep_mlp_ln_forward.1} parent=0 // pred_check
    _
  $region7: #{deep_mlp_ln_forward.1} parent=0 // pred_check_branch
    %21 = sbr.rel (0) target = $region9
  $region8: #{deep_mlp_ln_forward.1} parent=0 // pred_region
    _
  $region9: #{deep_mlp_ln_forward.1} parent=0 // pred_fallthru
    _
  // Predicated region
  $region10: #{deep_mlp_ln_forward.1} parent=0 // pred_check
    _
  $region11: #{deep_mlp_ln_forward.1} parent=0 // pred_check_branch
    %23 = sbr.rel (0) target = $region13
  $region12: #{deep_mlp_ln_forward.1} parent=0 // pred_region
    _
  $region13: #{deep_mlp_ln_forward.1} parent=0 // pred_fallthru
    _
  // Predicated region
  $region14: #{deep_mlp_ln_forward.1} parent=0 // pred_check
    _
  $region15: #{deep_mlp_ln_forward.1} parent=0 // pred_check_branch
    %25 = sbr.rel (0) target = $region17
  $region16: #{deep_mlp_ln_forward.1} parent=0 // pred_region
    _
  $region17: #{deep_mlp_ln_forward.1} parent=0 // pred_fallthru
    _
  // Predicated region
  $region18: #{deep_mlp_ln_forward.1} parent=0 // pred_check
    _
  $region19: #{deep_mlp_ln_forward.1} parent=0 // pred_check_branch
    %27 = sbr.rel (0) target = $region21
  $region20: #{deep_mlp_ln_forward.1} parent=0 // pred_region
    _
  $region21: #{deep_mlp_ln_forward.1} parent=0 // pred_fallthru
    _
  // Predicated region
  $region22: #{deep_mlp_ln_forward.1} parent=0 // pred_check
    _
  $region23: #{deep_mlp_ln_forward.1} parent=0 // pred_check_branch
    %29 = sbr.rel (0) target = $region25
  $region24: #{deep_mlp_ln_forward.1} parent=0 // pred_region
    _
  $region25: #{deep_mlp_ln_forward.1} parent=0 // pred_fallthru
    _
  %v31 = vld [vmem:[%s0] sm:$0xff]
  %v32 = vld [vmem:[%s0 + $0x8] sm:$0xff]
  %v33 = vld [vmem:[%s0 + $0x10] sm:$0xff]
  %v34 = vld [vmem:[%s0 + $0x18] sm:$0xf]
  %v35 = vld [vmem:[%s0 + $0x1c] sm:$0xff]
  %v36 = vld [vmem:[%s0 + $0x24] sm:$0xff]
  %v37 = vld [vmem:[%s0 + $0x2c] sm:$0xff]
  %v38 = vld [vmem:[%s0 + $0x34] sm:$0xf]
  %v39 = vld [vmem:[%s1] sm:$0xff]
  %v40 = vld [vmem:[%s1 + $0x8] sm:$0xf]
  %v41 = vld [vmem:[%s1 + $0xc] sm:$0xff]
  %v42 = vld [vmem:[%s1 + $0x14] sm:$0xf]
  %v43 = vld [vmem:[%s1 + $0x18] sm:$0xff]
  %v44 = vld [vmem:[%s1 + $0x20] sm:$0xf]
  %v45 = vld [vmem:[%s1 + $0x24] sm:$0xff]
  %v46 = vld [vmem:[%s1 + $0x2c] sm:$0xf]
  %v47 = vld [vmem:[%s1 + $0x30] sm:$0xff]
  %v48 = vld [vmem:[%s1 + $0x38] sm:$0xf]
  %v49 = vld [vmem:[%s1 + $0x3c] sm:$0xff]
  %v50 = vld [vmem:[%s1 + $0x44] sm:$0xf]
  %v51 = vld [vmem:[%s1 + $0x48] sm:$0xff]
  %v52 = vld [vmem:[%s1 + $0x50] sm:$0xf]
  %v53 = vld [vmem:[%s1 + $0x54] sm:$0xff]
  %v54 = vld [vmem:[%s1 + $0x5c] sm:$0xf]
  %v55 = vld [vmem:[%s1 + $0x60] sm:$0xff]
  %v56 = vld [vmem:[%s1 + $0x68] sm:$0xf]
  %v57 = vld [vmem:[%s1 + $0x6c] sm:$0xff]
  %v58 = vld [vmem:[%s1 + $0x74] sm:$0xf]
  %v59 = vld [vmem:[%s1 + $0x78] sm:$0xff]
  %v60 = vld [vmem:[%s1 + $0x80] sm:$0xf]
  %v61 = vld [vmem:[%s1 + $0x84] sm:$0xff]
  %v62 = vld [vmem:[%s1 + $0x8c] sm:$0xf]
  %v63 = vld [vmem:[%s1 + $0x90] sm:$0xff]
  %v64 = vld [vmem:[%s1 + $0x98] sm:$0xf]
  %v65 = vld [vmem:[%s1 + $0x9c] sm:$0xff]
  %v66 = vld [vmem:[%s1 + $0xa4] sm:$0xf]
  %v67 = vld [vmem:[%s1 + $0xa8] sm:$0xff]
  %v68 = vld [vmem:[%s1 + $0xb0] sm:$0xf]
  %v69 = vld [vmem:[%s1 + $0xb4] sm:$0xff]
  %v70 = vld [vmem:[%s1 + $0xbc] sm:$0xf]
  %v71 = vld [vmem:[%s1 + $0xc0] sm:$0xff]
  %v72 = vld [vmem:[%s1 + $0xc8] sm:$0xf]
  %v73 = vld [vmem:[%s1 + $0xcc] sm:$0xff]
  %v74 = vld [vmem:[%s1 + $0xd4] sm:$0xf]
  %v75 = vld [vmem:[%s1 + $0xd8] sm:$0xff]
  %v76 = vld [vmem:[%s1 + $0xe0] sm:$0xf]
  %v77 = vld [vmem:[%s1 + $0xe4] sm:$0xff]
  %v78 = vld [vmem:[%s1 + $0xec] sm:$0xf]
  %v79 = vld [vmem:[%s1 + $0xf0] sm:$0xff]
  %v80 = vld [vmem:[%s1 + $0xf8] sm:$0xf]
  %v81 = vld [vmem:[%s1 + $0xfc] sm:$0xff]
  %v82 = vld [vmem:[%s1 + $0x104] sm:$0xf]
  %v83 = vld [vmem:[%s1 + $0x108] sm:$0xff]
  %v84 = vld [vmem:[%s1 + $0x110] sm:$0xf]
  %v85 = vld [vmem:[%s1 + $0x114] sm:$0xff]
  %v86 = vld [vmem:[%s1 + $0x11c] sm:$0xf]
  %v87 = vld [vmem:[%s1 + $0x120] sm:$0xff]
  %v88 = vld [vmem:[%s1 + $0x128] sm:$0xf]
  %v89 = vld [vmem:[%s1 + $0x12c] sm:$0xff]
  %v90 = vld [vmem:[%s1 + $0x134] sm:$0xf]
  %v91 = vld [vmem:[%s1 + $0x138] sm:$0xff]
  %v92 = vld [vmem:[%s1 + $0x140] sm:$0xf]
  %v93 = vld [vmem:[%s1 + $0x144] sm:$0xff]
  %v94 = vld [vmem:[%s1 + $0x14c] sm:$0xf]
  %v95 = vld [vmem:[%s1 + $0x150] sm:$0xff]
  %v96 = vld [vmem:[%s1 + $0x158] sm:$0xf]
  %v97 = vld [vmem:[%s1 + $0x15c] sm:$0xff]
  %v98 = vld [vmem:[%s1 + $0x164] sm:$0xf]
  %v99 = vld [vmem:[%s1 + $0x168] sm:$0xff]
  %v100 = vld [vmem:[%s1 + $0x170] sm:$0xf]
  %v101 = vld [vmem:[%s1 + $0x174] sm:$0xff]
  %v102 = vld [vmem:[%s1 + $0x17c] sm:$0xf]
  %v103 = vld [vmem:[%s1 + $0x180] sm:$0xff]
  %v104 = vld [vmem:[%s1 + $0x188] sm:$0xf]
  %v105 = vld [vmem:[%s1 + $0x18c] sm:$0xff]
  %v106 = vld [vmem:[%s1 + $0x194] sm:$0xf]
  %v107 = vld [vmem:[%s1 + $0x198] sm:$0xff]
  %v108 = vld [vmem:[%s1 + $0x1a0] sm:$0xf]
  %v109 = vld [vmem:[%s1 + $0x1a4] sm:$0xff]
  %v110 = vld [vmem:[%s1 + $0x1ac] sm:$0xf]
  %v111 = vld [vmem:[%s1 + $0x1b0] sm:$0xff]
  %v112 = vld [vmem:[%s1 + $0x1b8] sm:$0xf]
  %v113 = vld [vmem:[%s1 + $0x1bc] sm:$0xff]
  %v114 = vld [vmem:[%s1 + $0x1c4] sm:$0xf]
  %v115 = vld [vmem:[%s1 + $0x1c8] sm:$0xff]
  %v116 = vld [vmem:[%s1 + $0x1d0] sm:$0xf]
  %v117 = vld [vmem:[%s1 + $0x1d4] sm:$0xff]
  %v118 = vld [vmem:[%s1 + $0x1dc] sm:$0xf]
  %v119 = vld [vmem:[%s1 + $0x1e0] sm:$0xff]
  %v120 = vld [vmem:[%s1 + $0x1e8] sm:$0xf]
  %v121 = vld [vmem:[%s1 + $0x1ec] sm:$0xff]
  %v122 = vld [vmem:[%s1 + $0x1f4] sm:$0xf]
  %v123 = vld [vmem:[%s1 + $0x1f8] sm:$0xff]
  %v124 = vld [vmem:[%s1 + $0x200] sm:$0xf]
  %v125 = vld [vmem:[%s1 + $0x204] sm:$0xff]
  %v126 = vld [vmem:[%s1 + $0x20c] sm:$0xf]
  %v127 = vld [vmem:[%s1 + $0x210] sm:$0xff]
  %v128 = vld [vmem:[%s1 + $0x218] sm:$0xf]
  %v129 = vld [vmem:[%s1 + $0x21c] sm:$0xff]
  %v130 = vld [vmem:[%s1 + $0x224] sm:$0xf]
  %v131 = vld [vmem:[%s1 + $0x228] sm:$0xff]
  %v132 = vld [vmem:[%s1 + $0x230] sm:$0xf]
  %v133 = vld [vmem:[%s1 + $0x234] sm:$0xff]
  %v134 = vld [vmem:[%s1 + $0x23c] sm:$0xf]
  %v135 = vld [vmem:[%s1 + $0x240] sm:$0xff]
  %v136 = vld [vmem:[%s1 + $0x248] sm:$0xf]
  %v137 = vld [vmem:[%s1 + $0x24c] sm:$0xff]
  %v138 = vld [vmem:[%s1 + $0x254] sm:$0xf]
  %v139 = vld [vmem:[%s1 + $0x258] sm:$0xff]
  %v140 = vld [vmem:[%s1 + $0x260] sm:$0xf]
  %v141 = vld [vmem:[%s1 + $0x264] sm:$0xff]
  %v142 = vld [vmem:[%s1 + $0x26c] sm:$0xf]
  %v143 = vld [vmem:[%s1 + $0x270] sm:$0xff]
  %v144 = vld [vmem:[%s1 + $0x278] sm:$0xf]
  %v145 = vld [vmem:[%s1 + $0x27c] sm:$0xff]
  %v146 = vld [vmem:[%s1 + $0x284] sm:$0xf]
  %v147 = vld [vmem:[%s1 + $0x288] sm:$0xff]
  %v148 = vld [vmem:[%s1 + $0x290] sm:$0xf]
  %v149 = vld [vmem:[%s1 + $0x294] sm:$0xff]
  %v150 = vld [vmem:[%s1 + $0x29c] sm:$0xf]
  %v151 = vld [vmem:[%s1 + $0x2a0] sm:$0xff]
  %v152 = vld [vmem:[%s1 + $0x2a8] sm:$0xf]
  %v153 = vld [vmem:[%s1 + $0x2ac] sm:$0xff]
  %v154 = vld [vmem:[%s1 + $0x2b4] sm:$0xf]
  %v155 = vld [vmem:[%s1 + $0x2b8] sm:$0xff]
  %v156 = vld [vmem:[%s1 + $0x2c0] sm:$0xf]
  %v157 = vld [vmem:[%s1 + $0x2c4] sm:$0xff]
  %v158 = vld [vmem:[%s1 + $0x2cc] sm:$0xf]
  %v159 = vld [vmem:[%s1 + $0x2d0] sm:$0xff]
  %v160 = vld [vmem:[%s1 + $0x2d8] sm:$0xf]
  %v161 = vld [vmem:[%s1 + $0x2dc] sm:$0xff]
  %v162 = vld [vmem:[%s1 + $0x2e4] sm:$0xf]
  %v163 = vld [vmem:[%s1 + $0x2e8] sm:$0xff]
  %v164 = vld [vmem:[%s1 + $0x2f0] sm:$0xf]
  %v165 = vld [vmem:[%s1 + $0x2f4] sm:$0xff]
  %v166 = vld [vmem:[%s1 + $0x2fc] sm:$0xf]
  %v167 = vld [vmem:[%s1 + $0x300] sm:$0xff]
  %v168 = vld [vmem:[%s1 + $0x308] sm:$0xf]
  %v169 = vld [vmem:[%s1 + $0x30c] sm:$0xff]
  %v170 = vld [vmem:[%s1 + $0x314] sm:$0xf]
  %v171 = vld [vmem:[%s1 + $0x318] sm:$0xff]
  %v172 = vld [vmem:[%s1 + $0x320] sm:$0xf]
  %v173 = vld [vmem:[%s1 + $0x324] sm:$0xff]
  %v174 = vld [vmem:[%s1 + $0x32c] sm:$0xf]
  %v175 = vld [vmem:[%s1 + $0x330] sm:$0xff]
  %v176 = vld [vmem:[%s1 + $0x338] sm:$0xf]
  %v177 = vld [vmem:[%s1 + $0x33c] sm:$0xff]
  %v178 = vld [vmem:[%s1 + $0x344] sm:$0xf]
  %v179 = vld [vmem:[%s1 + $0x348] sm:$0xff]
  %v180 = vld [vmem:[%s1 + $0x350] sm:$0xf]
  %v181 = vld [vmem:[%s1 + $0x354] sm:$0xff]
  %v182 = vld [vmem:[%s1 + $0x35c] sm:$0xf]
  %v183 = vld [vmem:[%s1 + $0x360] sm:$0xff]
  %v184 = vld [vmem:[%s1 + $0x368] sm:$0xf]
  %v185 = vld [vmem:[%s1 + $0x36c] sm:$0xff]
  %v186 = vld [vmem:[%s1 + $0x374] sm:$0xf]
  %v187 = vld [vmem:[%s1 + $0x378] sm:$0xff]
  %v188 = vld [vmem:[%s1 + $0x380] sm:$0xf]
  %v189 = vld [vmem:[%s1 + $0x384] sm:$0xff]
  %v190 = vld [vmem:[%s1 + $0x38c] sm:$0xf]
  %v191 = vld [vmem:[%s1 + $0x390] sm:$0xff]
  %v192 = vld [vmem:[%s1 + $0x398] sm:$0xf]
  %v193 = vld [vmem:[%s1 + $0x39c] sm:$0xff]
  %v194 = vld [vmem:[%s1 + $0x3a4] sm:$0xf]
  %v195 = vld [vmem:[%s1 + $0x3a8] sm:$0xff]
  %v196 = vld [vmem:[%s1 + $0x3b0] sm:$0xf]
  %v197 = vld [vmem:[%s1 + $0x3b4] sm:$0xff]
  %v198 = vld [vmem:[%s1 + $0x3bc] sm:$0xf]
  %v199 = vld [vmem:[%s1 + $0x3c0] sm:$0xff]
  %v200 = vld [vmem:[%s1 + $0x3c8] sm:$0xf]
  %v201 = vld [vmem:[%s1 + $0x3cc] sm:$0xff]
  %v202 = vld [vmem:[%s1 + $0x3d4] sm:$0xf]
  %v203 = vld [vmem:[%s1 + $0x3d8] sm:$0xff]
  %v204 = vld [vmem:[%s1 + $0x3e0] sm:$0xf]
  %v205 = vld [vmem:[%s1 + $0x3e4] sm:$0xff]
  %v206 = vld [vmem:[%s1 + $0x3ec] sm:$0xf]
  %v207 = vld [vmem:[%s1 + $0x3f0] sm:$0xff]
  %v208 = vld [vmem:[%s1 + $0x3f8] sm:$0xf]
  %v209 = vld [vmem:[%s1 + $0x3fc] sm:$0xff]
  %v210 = vld [vmem:[%s1 + $0x404] sm:$0xf]
  %v211 = vld [vmem:[%s1 + $0x408] sm:$0xff]
  %v212 = vld [vmem:[%s1 + $0x410] sm:$0xf]
  %v213 = vld [vmem:[%s1 + $0x414] sm:$0xff]
  %v214 = vld [vmem:[%s1 + $0x41c] sm:$0xf]
  %v215 = vld [vmem:[%s1 + $0x420] sm:$0xff]
  %v216 = vld [vmem:[%s1 + $0x428] sm:$0xf]
  %v217 = vld [vmem:[%s1 + $0x42c] sm:$0xff]
  %v218 = vld [vmem:[%s1 + $0x434] sm:$0xf]
  %v219 = vld [vmem:[%s1 + $0x438] sm:$0xff]
  %v220 = vld [vmem:[%s1 + $0x440] sm:$0xf]
  %v221 = vld [vmem:[%s1 + $0x444] sm:$0xff]
  %v222 = vld [vmem:[%s1 + $0x44c] sm:$0xf]
  %v223 = vld [vmem:[%s1 + $0x450] sm:$0xff]
  %v224 = vld [vmem:[%s1 + $0x458] sm:$0xf]
  %v225 = vld [vmem:[%s1 + $0x45c] sm:$0xff]
  %v226 = vld [vmem:[%s1 + $0x464] sm:$0xf]
  %v227 = vld [vmem:[%s1 + $0x468] sm:$0xff]
  %v228 = vld [vmem:[%s1 + $0x470] sm:$0xf]
  %v229 = vld [vmem:[%s1 + $0x474] sm:$0xff]
  %v230 = vld [vmem:[%s1 + $0x47c] sm:$0xf]
  %v231 = vld [vmem:[%s1 + $0x480] sm:$0xff]
  %v232 = vld [vmem:[%s1 + $0x488] sm:$0xf]
  %v233 = vld [vmem:[%s1 + $0x48c] sm:$0xff]
  %v234 = vld [vmem:[%s1 + $0x494] sm:$0xf]
  %v235 = vld [vmem:[%s3] ss:$4 sm:$0x7]
  %v237 = vlaneseq
  %v238 = vshrl.u32 %v237, 7
  %v239 = vsub.s32 0, %v238
  %v240 = vrot.slane %v235, %v239
  %v241 = vlaneseq
  %v242 = vshrl.u32 %v241, 7
  %v243 = vsub.s32 1, %v242
  %v244 = vrot.slane %v235, %v243
  %v245 = vlaneseq
  %v246 = vshrl.u32 %v245, 7
  %v247 = vsub.s32 2, %v246
  %v248 = vrot.slane %v235, %v247
  %v260 = vunpack.c.l.b16 %v31
  %v261 = vunpack.c.h.b16 %v31
  %v262 = vunpack.c.l.b16 %v32
  %v263 = vunpack.c.h.b16 %v32
  %v264 = vunpack.c.l.b16 %v33
  %v265 = vunpack.c.h.b16 %v33
  %v266 = vunpack.c.l.b16 %v34
  %v267 = vunpack.c.l.b16 %v35
  %v268 = vunpack.c.h.b16 %v35
  %v269 = vunpack.c.l.b16 %v36
  %v270 = vunpack.c.h.b16 %v36
  %v271 = vunpack.c.l.b16 %v37
  %v272 = vunpack.c.h.b16 %v37
  %v273 = vunpack.c.l.b16 %v38
  %v274 = vpack.c.b16 %v267, %v260
  %v275 = vpack.c.b16 %v268, %v261
  %v276 = vpack.c.b16 %v269, %v262
  %v277 = vpack.c.b16 %v270, %v263
  %v278 = vpack.c.b16 %v271, %v264
  %v279 = vpack.c.b16 %v272, %v265
  %v280 = vpack.c.b16 %v273, %v266
  %v483 = vunpack.c.l.b16 %v39
  %v484 = vunpack.c.h.b16 %v39
  %v485 = vunpack.c.l.b16 %v40
  %v486 = vunpack.c.l.b16 %v41
  %v487 = vunpack.c.h.b16 %v41
  %v488 = vunpack.c.l.b16 %v42
  %v489 = vunpack.c.l.b16 %v43
  %v490 = vunpack.c.h.b16 %v43
  %v491 = vunpack.c.l.b16 %v44
  %v492 = vunpack.c.l.b16 %v45
  %v493 = vunpack.c.h.b16 %v45
  %v494 = vunpack.c.l.b16 %v46
  %v495 = vunpack.c.l.b16 %v47
  %v496 = vunpack.c.h.b16 %v47
  %v497 = vunpack.c.l.b16 %v48
  %v498 = vunpack.c.l.b16 %v49
  %v499 = vunpack.c.h.b16 %v49
  %v500 = vunpack.c.l.b16 %v50
  %v501 = vunpack.c.l.b16 %v51
  %v502 = vunpack.c.h.b16 %v51
  %v503 = vunpack.c.l.b16 %v52
  %v504 = vunpack.c.l.b16 %v53
  %v505 = vunpack.c.h.b16 %v53
  %v506 = vunpack.c.l.b16 %v54
  %v507 = vunpack.c.l.b16 %v55
  %v508 = vunpack.c.h.b16 %v55
  %v509 = vunpack.c.l.b16 %v56
  %v510 = vunpack.c.l.b16 %v57
  %v511 = vunpack.c.h.b16 %v57
  %v512 = vunpack.c.l.b16 %v58
  %v513 = vunpack.c.l.b16 %v59
  %v514 = vunpack.c.h.b16 %v59
  %v515 = vunpack.c.l.b16 %v60
  %v516 = vunpack.c.l.b16 %v61
  %v517 = vunpack.c.h.b16 %v61
  %v518 = vunpack.c.l.b16 %v62
  %v519 = vunpack.c.l.b16 %v63
  %v520 = vunpack.c.h.b16 %v63
  %v521 = vunpack.c.l.b16 %v64
  %v522 = vunpack.c.l.b16 %v65
  %v523 = vunpack.c.h.b16 %v65
  %v524 = vunpack.c.l.b16 %v66
  %v525 = vunpack.c.l.b16 %v67
  %v526 = vunpack.c.h.b16 %v67
  %v527 = vunpack.c.l.b16 %v68
  %v528 = vunpack.c.l.b16 %v69
  %v529 = vunpack.c.h.b16 %v69
  %v530 = vunpack.c.l.b16 %v70
  %v531 = vunpack.c.l.b16 %v71
  %v532 = vunpack.c.h.b16 %v71
  %v533 = vunpack.c.l.b16 %v72
  %v534 = vunpack.c.l.b16 %v73
  %v535 = vunpack.c.h.b16 %v73
  %v536 = vunpack.c.l.b16 %v74
  %v537 = vunpack.c.l.b16 %v75
  %v538 = vunpack.c.h.b16 %v75
  %v539 = vunpack.c.l.b16 %v76
  %v540 = vunpack.c.l.b16 %v77
  %v541 = vunpack.c.h.b16 %v77
  %v542 = vunpack.c.l.b16 %v78
  %v543 = vunpack.c.l.b16 %v79
  %v544 = vunpack.c.h.b16 %v79
  %v545 = vunpack.c.l.b16 %v80
  %v546 = vunpack.c.l.b16 %v81
  %v547 = vunpack.c.h.b16 %v81
  %v548 = vunpack.c.l.b16 %v82
  %v549 = vunpack.c.l.b16 %v83
  %v550 = vunpack.c.h.b16 %v83
  %v551 = vunpack.c.l.b16 %v84
  %v552 = vunpack.c.l.b16 %v85
  %v553 = vunpack.c.h.b16 %v85
  %v554 = vunpack.c.l.b16 %v86
  %v555 = vunpack.c.l.b16 %v87
  %v556 = vunpack.c.h.b16 %v87
  %v557 = vunpack.c.l.b16 %v88
  %v558 = vunpack.c.l.b16 %v89
  %v559 = vunpack.c.h.b16 %v89
  %v560 = vunpack.c.l.b16 %v90
  %v561 = vunpack.c.l.b16 %v91
  %v562 = vunpack.c.h.b16 %v91
  %v563 = vunpack.c.l.b16 %v92
  %v564 = vunpack.c.l.b16 %v93
  %v565 = vunpack.c.h.b16 %v93
  %v566 = vunpack.c.l.b16 %v94
  %v567 = vunpack.c.l.b16 %v95
  %v568 = vunpack.c.h.b16 %v95
  %v569 = vunpack.c.l.b16 %v96
  %v570 = vunpack.c.l.b16 %v97
  %v571 = vunpack.c.h.b16 %v97
  %v572 = vunpack.c.l.b16 %v98
  %v573 = vunpack.c.l.b16 %v99
  %v574 = vunpack.c.h.b16 %v99
  %v575 = vunpack.c.l.b16 %v100
  %v576 = vunpack.c.l.b16 %v101
  %v577 = vunpack.c.h.b16 %v101
  %v578 = vunpack.c.l.b16 %v102
  %v579 = vunpack.c.l.b16 %v103
  %v580 = vunpack.c.h.b16 %v103
  %v581 = vunpack.c.l.b16 %v104
  %v582 = vunpack.c.l.b16 %v105
  %v583 = vunpack.c.h.b16 %v105
  %v584 = vunpack.c.l.b16 %v106
  %v585 = vunpack.c.l.b16 %v107
  %v586 = vunpack.c.h.b16 %v107
  %v587 = vunpack.c.l.b16 %v108
  %v588 = vunpack.c.l.b16 %v109
  %v589 = vunpack.c.h.b16 %v109
  %v590 = vunpack.c.l.b16 %v110
  %v591 = vunpack.c.l.b16 %v111
  %v592 = vunpack.c.h.b16 %v111
  %v593 = vunpack.c.l.b16 %v112
  %v594 = vunpack.c.l.b16 %v113
  %v595 = vunpack.c.h.b16 %v113
  %v596 = vunpack.c.l.b16 %v114
  %v597 = vunpack.c.l.b16 %v115
  %v598 = vunpack.c.h.b16 %v115
  %v599 = vunpack.c.l.b16 %v116
  %v600 = vunpack.c.l.b16 %v117
  %v601 = vunpack.c.h.b16 %v117
  %v602 = vunpack.c.l.b16 %v118
  %v603 = vunpack.c.l.b16 %v119
  %v604 = vunpack.c.h.b16 %v119
  %v605 = vunpack.c.l.b16 %v120
  %v606 = vunpack.c.l.b16 %v121
  %v607 = vunpack.c.h.b16 %v121
  %v608 = vunpack.c.l.b16 %v122
  %v609 = vunpack.c.l.b16 %v123
  %v610 = vunpack.c.h.b16 %v123
  %v611 = vunpack.c.l.b16 %v124
  %v612 = vunpack.c.l.b16 %v125
  %v613 = vunpack.c.h.b16 %v125
  %v614 = vunpack.c.l.b16 %v126
  %v615 = vunpack.c.l.b16 %v127
  %v616 = vunpack.c.h.b16 %v127
  %v617 = vunpack.c.l.b16 %v128
  %v618 = vunpack.c.l.b16 %v129
  %v619 = vunpack.c.h.b16 %v129
  %v620 = vunpack.c.l.b16 %v130
  %v621 = vunpack.c.l.b16 %v131
  %v622 = vunpack.c.h.b16 %v131
  %v623 = vunpack.c.l.b16 %v132
  %v624 = vunpack.c.l.b16 %v133
  %v625 = vunpack.c.h.b16 %v133
  %v626 = vunpack.c.l.b16 %v134
  %v627 = vunpack.c.l.b16 %v135
  %v628 = vunpack.c.h.b16 %v135
  %v629 = vunpack.c.l.b16 %v136
  %v630 = vunpack.c.l.b16 %v137
  %v631 = vunpack.c.h.b16 %v137
  %v632 = vunpack.c.l.b16 %v138
  %v633 = vunpack.c.l.b16 %v139
  %v634 = vunpack.c.h.b16 %v139
  %v635 = vunpack.c.l.b16 %v140
  %v636 = vunpack.c.l.b16 %v141
  %v637 = vunpack.c.h.b16 %v141
  %v638 = vunpack.c.l.b16 %v142
  %v639 = vunpack.c.l.b16 %v143
  %v640 = vunpack.c.h.b16 %v143
  %v641 = vunpack.c.l.b16 %v144
  %v642 = vunpack.c.l.b16 %v145
  %v643 = vunpack.c.h.b16 %v145
  %v644 = vunpack.c.l.b16 %v146
  %v645 = vunpack.c.l.b16 %v147
  %v646 = vunpack.c.h.b16 %v147
  %v647 = vunpack.c.l.b16 %v148
  %v648 = vunpack.c.l.b16 %v149
  %v649 = vunpack.c.h.b16 %v149
  %v650 = vunpack.c.l.b16 %v150
  %v651 = vunpack.c.l.b16 %v151
  %v652 = vunpack.c.h.b16 %v151
  %v653 = vunpack.c.l.b16 %v152
  %v654 = vunpack.c.l.b16 %v153
  %v655 = vunpack.c.h.b16 %v153
  %v656 = vunpack.c.l.b16 %v154
  %v657 = vunpack.c.l.b16 %v155
  %v658 = vunpack.c.h.b16 %v155
  %v659 = vunpack.c.l.b16 %v156
  %v660 = vunpack.c.l.b16 %v157
  %v661 = vunpack.c.h.b16 %v157
  %v662 = vunpack.c.l.b16 %v158
  %v663 = vunpack.c.l.b16 %v159
  %v664 = vunpack.c.h.b16 %v159
  %v665 = vunpack.c.l.b16 %v160
  %v666 = vunpack.c.l.b16 %v161
  %v667 = vunpack.c.h.b16 %v161
  %v668 = vunpack.c.l.b16 %v162
  %v669 = vunpack.c.l.b16 %v163
  %v670 = vunpack.c.h.b16 %v163
  %v671 = vunpack.c.l.b16 %v164
  %v672 = vunpack.c.l.b16 %v165
  %v673 = vunpack.c.h.b16 %v165
  %v674 = vunpack.c.l.b16 %v166
  %v675 = vunpack.c.l.b16 %v167
  %v676 = vunpack.c.h.b16 %v167
  %v677 = vunpack.c.l.b16 %v168
  %v678 = vunpack.c.l.b16 %v169
  %v679 = vunpack.c.h.b16 %v169
  %v680 = vunpack.c.l.b16 %v170
  %v681 = vunpack.c.l.b16 %v171
  %v682 = vunpack.c.h.b16 %v171
  %v683 = vunpack.c.l.b16 %v172
  %v684 = vunpack.c.l.b16 %v173
  %v685 = vunpack.c.h.b16 %v173
  %v686 = vunpack.c.l.b16 %v174
  %v687 = vunpack.c.l.b16 %v175
  %v688 = vunpack.c.h.b16 %v175
  %v689 = vunpack.c.l.b16 %v176
  %v690 = vunpack.c.l.b16 %v177
  %v691 = vunpack.c.h.b16 %v177
  %v692 = vunpack.c.l.b16 %v178
  %v693 = vunpack.c.l.b16 %v179
  %v694 = vunpack.c.h.b16 %v179
  %v695 = vunpack.c.l.b16 %v180
  %v696 = vunpack.c.l.b16 %v181
  %v697 = vunpack.c.h.b16 %v181
  %v698 = vunpack.c.l.b16 %v182
  %v699 = vunpack.c.l.b16 %v183
  %v700 = vunpack.c.h.b16 %v183
  %v701 = vunpack.c.l.b16 %v184
  %v702 = vunpack.c.l.b16 %v185
  %v703 = vunpack.c.h.b16 %v185
  %v704 = vunpack.c.l.b16 %v186
  %v705 = vunpack.c.l.b16 %v187
  %v706 = vunpack.c.h.b16 %v187
  %v707 = vunpack.c.l.b16 %v188
  %v708 = vunpack.c.l.b16 %v189
  %v709 = vunpack.c.h.b16 %v189
  %v710 = vunpack.c.l.b16 %v190
  %v711 = vunpack.c.l.b16 %v191
  %v712 = vunpack.c.h.b16 %v191
  %v713 = vunpack.c.l.b16 %v192
  %v714 = vunpack.c.l.b16 %v193
  %v715 = vunpack.c.h.b16 %v193
  %v716 = vunpack.c.l.b16 %v194
  %v717 = vunpack.c.l.b16 %v195
  %v718 = vunpack.c.h.b16 %v195
  %v719 = vunpack.c.l.b16 %v196
  %v720 = vunpack.c.l.b16 %v197
  %v721 = vunpack.c.h.b16 %v197
  %v722 = vunpack.c.l.b16 %v198
  %v723 = vunpack.c.l.b16 %v199
  %v724 = vunpack.c.h.b16 %v199
  %v725 = vunpack.c.l.b16 %v200
  %v726 = vunpack.c.l.b16 %v201
  %v727 = vunpack.c.h.b16 %v201
  %v728 = vunpack.c.l.b16 %v202
  %v729 = vunpack.c.l.b16 %v203
  %v730 = vunpack.c.h.b16 %v203
  %v731 = vunpack.c.l.b16 %v204
  %v732 = vunpack.c.l.b16 %v205
  %v733 = vunpack.c.h.b16 %v205
  %v734 = vunpack.c.l.b16 %v206
  %v735 = vunpack.c.l.b16 %v207
  %v736 = vunpack.c.h.b16 %v207
  %v737 = vunpack.c.l.b16 %v208
  %v738 = vunpack.c.l.b16 %v209
  %v739 = vunpack.c.h.b16 %v209
  %v740 = vunpack.c.l.b16 %v210
  %v741 = vunpack.c.l.b16 %v211
  %v742 = vunpack.c.h.b16 %v211
  %v743 = vunpack.c.l.b16 %v212
  %v744 = vunpack.c.l.b16 %v213
  %v745 = vunpack.c.h.b16 %v213
  %v746 = vunpack.c.l.b16 %v214
  %v747 = vunpack.c.l.b16 %v215
  %v748 = vunpack.c.h.b16 %v215
  %v749 = vunpack.c.l.b16 %v216
  %v750 = vunpack.c.l.b16 %v217
  %v751 = vunpack.c.h.b16 %v217
  %v752 = vunpack.c.l.b16 %v218
  %v753 = vunpack.c.l.b16 %v219
  %v754 = vunpack.c.h.b16 %v219
  %v755 = vunpack.c.l.b16 %v220
  %v756 = vunpack.c.l.b16 %v221
  %v757 = vunpack.c.h.b16 %v221
  %v758 = vunpack.c.l.b16 %v222
  %v759 = vunpack.c.l.b16 %v223
  %v760 = vunpack.c.h.b16 %v223
  %v761 = vunpack.c.l.b16 %v224
  %v762 = vunpack.c.l.b16 %v225
  %v763 = vunpack.c.h.b16 %v225
  %v764 = vunpack.c.l.b16 %v226
  %v765 = vunpack.c.l.b16 %v227
  %v766 = vunpack.c.h.b16 %v227
  %v767 = vunpack.c.l.b16 %v228
  %v768 = vunpack.c.l.b16 %v229
  %v769 = vunpack.c.h.b16 %v229
  %v770 = vunpack.c.l.b16 %v230
  %v771 = vunpack.c.l.b16 %v231
  %v772 = vunpack.c.h.b16 %v231
  %v773 = vunpack.c.l.b16 %v232
  %v774 = vunpack.c.l.b16 %v233
  %v775 = vunpack.c.h.b16 %v233
  %v776 = vunpack.c.l.b16 %v234
  %v777 = vpack.c.b16 %v486, %v483
  %v778 = vpack.c.b16 %v487, %v484
  %v779 = vpack.c.b16 %v488, %v485
  %v780 = vpack.c.b16 %v492, %v489
  %v781 = vpack.c.b16 %v493, %v490
  %v782 = vpack.c.b16 %v494, %v491
  %v783 = vpack.c.b16 %v498, %v495
  %v784 = vpack.c.b16 %v499, %v496
  %v785 = vpack.c.b16 %v500, %v497
  %v786 = vpack.c.b16 %v504, %v501
  %v787 = vpack.c.b16 %v505, %v502
  %v788 = vpack.c.b16 %v506, %v503
  %v789 = vpack.c.b16 %v510, %v507
  %v790 = vpack.c.b16 %v511, %v508
  %v791 = vpack.c.b16 %v512, %v509
  %v792 = vpack.c.b16 %v516, %v513
  %v793 = vpack.c.b16 %v517, %v514
  %v794 = vpack.c.b16 %v518, %v515
  %v795 = vpack.c.b16 %v522, %v519
  %v796 = vpack.c.b16 %v523, %v520
  %v797 = vpack.c.b16 %v524, %v521
  %v798 = vpack.c.b16 %v528, %v525
  %v799 = vpack.c.b16 %v529, %v526
  %v800 = vpack.c.b16 %v530, %v527
  %v801 = vpack.c.b16 %v534, %v531
  %v802 = vpack.c.b16 %v535, %v532
  %v803 = vpack.c.b16 %v536, %v533
  %v804 = vpack.c.b16 %v540, %v537
  %v805 = vpack.c.b16 %v541, %v538
  %v806 = vpack.c.b16 %v542, %v539
  %v807 = vpack.c.b16 %v546, %v543
  %v808 = vpack.c.b16 %v547, %v544
  %v809 = vpack.c.b16 %v548, %v545
  %v810 = vpack.c.b16 %v552, %v549
  %v811 = vpack.c.b16 %v553, %v550
  %v812 = vpack.c.b16 %v554, %v551
  %v813 = vpack.c.b16 %v558, %v555
  %v814 = vpack.c.b16 %v559, %v556
  %v815 = vpack.c.b16 %v560, %v557
  %v816 = vpack.c.b16 %v564, %v561
  %v817 = vpack.c.b16 %v565, %v562
  %v818 = vpack.c.b16 %v566, %v563
  %v819 = vpack.c.b16 %v570, %v567
  %v820 = vpack.c.b16 %v571, %v568
  %v821 = vpack.c.b16 %v572, %v569
  %v822 = vpack.c.b16 %v576, %v573
  %v823 = vpack.c.b16 %v577, %v574
  %v824 = vpack.c.b16 %v578, %v575
  %v825 = vpack.c.b16 %v582, %v579
  %v826 = vpack.c.b16 %v583, %v580
  %v827 = vpack.c.b16 %v584, %v581
  %v828 = vpack.c.b16 %v588, %v585
  %v829 = vpack.c.b16 %v589, %v586
  %v830 = vpack.c.b16 %v590, %v587
  %v831 = vpack.c.b16 %v594, %v591
  %v832 = vpack.c.b16 %v595, %v592
  %v833 = vpack.c.b16 %v596, %v593
  %v834 = vpack.c.b16 %v600, %v597
  %v835 = vpack.c.b16 %v601, %v598
  %v836 = vpack.c.b16 %v602, %v599
  %v837 = vpack.c.b16 %v606, %v603
  %v838 = vpack.c.b16 %v607, %v604
  %v839 = vpack.c.b16 %v608, %v605
  %v840 = vpack.c.b16 %v612, %v609
  %v841 = vpack.c.b16 %v613, %v610
  %v842 = vpack.c.b16 %v614, %v611
  %v843 = vpack.c.b16 %v618, %v615
  %v844 = vpack.c.b16 %v619, %v616
  %v845 = vpack.c.b16 %v620, %v617
  %v846 = vpack.c.b16 %v624, %v621
  %v847 = vpack.c.b16 %v625, %v622
  %v848 = vpack.c.b16 %v626, %v623
  %v849 = vpack.c.b16 %v630, %v627
  %v850 = vpack.c.b16 %v631, %v628
  %v851 = vpack.c.b16 %v632, %v629
  %v852 = vpack.c.b16 %v636, %v633
  %v853 = vpack.c.b16 %v637, %v634
  %v854 = vpack.c.b16 %v638, %v635
  %v855 = vpack.c.b16 %v642, %v639
  %v856 = vpack.c.b16 %v643, %v640
  %v857 = vpack.c.b16 %v644, %v641
  %v858 = vpack.c.b16 %v648, %v645
  %v859 = vpack.c.b16 %v649, %v646
  %v860 = vpack.c.b16 %v650, %v647
  %v861 = vpack.c.b16 %v654, %v651
  %v862 = vpack.c.b16 %v655, %v652
  %v863 = vpack.c.b16 %v656, %v653
  %v864 = vpack.c.b16 %v660, %v657
  %v865 = vpack.c.b16 %v661, %v658
  %v866 = vpack.c.b16 %v662, %v659
  %v867 = vpack.c.b16 %v666, %v663
  %v868 = vpack.c.b16 %v667, %v664
  %v869 = vpack.c.b16 %v668, %v665
  %v870 = vpack.c.b16 %v672, %v669
  %v871 = vpack.c.b16 %v673, %v670
  %v872 = vpack.c.b16 %v674, %v671
  %v873 = vpack.c.b16 %v678, %v675
  %v874 = vpack.c.b16 %v679, %v676
  %v875 = vpack.c.b16 %v680, %v677
  %v876 = vpack.c.b16 %v684, %v681
  %v877 = vpack.c.b16 %v685, %v682
  %v878 = vpack.c.b16 %v686, %v683
  %v879 = vpack.c.b16 %v690, %v687
  %v880 = vpack.c.b16 %v691, %v688
  %v881 = vpack.c.b16 %v692, %v689
  %v882 = vpack.c.b16 %v696, %v693
  %v883 = vpack.c.b16 %v697, %v694
  %v884 = vpack.c.b16 %v698, %v695
  %v885 = vpack.c.b16 %v702, %v699
  %v886 = vpack.c.b16 %v703, %v700
  %v887 = vpack.c.b16 %v704, %v701
  %v888 = vpack.c.b16 %v708, %v705
  %v889 = vpack.c.b16 %v709, %v706
  %v890 = vpack.c.b16 %v710, %v707
  %v891 = vpack.c.b16 %v714, %v711
  %v892 = vpack.c.b16 %v715, %v712
  %v893 = vpack.c.b16 %v716, %v713
  %v894 = vpack.c.b16 %v720, %v717
  %v895 = vpack.c.b16 %v721, %v718
  %v896 = vpack.c.b16 %v722, %v719
  %v897 = vpack.c.b16 %v726, %v723
  %v898 = vpack.c.b16 %v727, %v724
  %v899 = vpack.c.b16 %v728, %v725
  %v900 = vpack.c.b16 %v732, %v729
  %v901 = vpack.c.b16 %v733, %v730
  %v902 = vpack.c.b16 %v734, %v731
  %v903 = vpack.c.b16 %v738, %v735
  %v904 = vpack.c.b16 %v739, %v736
  %v905 = vpack.c.b16 %v740, %v737
  %v906 = vpack.c.b16 %v744, %v741
  %v907 = vpack.c.b16 %v745, %v742
  %v908 = vpack.c.b16 %v746, %v743
  %v909 = vpack.c.b16 %v750, %v747
  %v910 = vpack.c.b16 %v751, %v748
  %v911 = vpack.c.b16 %v752, %v749
  %v912 = vpack.c.b16 %v756, %v753
  %v913 = vpack.c.b16 %v757, %v754
  %v914 = vpack.c.b16 %v758, %v755
  %v915 = vpack.c.b16 %v762, %v759
  %v916 = vpack.c.b16 %v763, %v760
  %v917 = vpack.c.b16 %v764, %v761
  %v918 = vpack.c.b16 %v768, %v765
  %v919 = vpack.c.b16 %v769, %v766
  %v920 = vpack.c.b16 %v770, %v767
  %v921 = vpack.c.b16 %v774, %v771
  %v922 = vpack.c.b16 %v775, %v772
  %v923 = vpack.c.b16 %v776, %v773
  %vm1071 = vcmask 130048
  %v1073 = vsel %vm1071, %v280, 0
  %1075 = vmatprep.subr.bf16.mxu0 %v778
  %1076 = vmatpush1.bf16.msra.mxu0 %v777
  %1077 = vmatprep.subr.bf16.mxu0 %v781
  %1078 = vmatpush1.bf16.msra.mxu0 %v780
  %1079 = vmatprep.subr.bf16.mxu0 %v784
  %1080 = vmatpush1.bf16.msra.mxu0 %v783
  %1081 = vmatprep.subr.bf16.mxu0 %v787
  %1082 = vmatpush1.bf16.msra.mxu0 %v786
  %1083 = vmatprep.subr.bf16.mxu0 %v790
  %1084 = vmatpush1.bf16.msra.mxu0 %v789
  %1085 = vmatprep.subr.bf16.mxu0 %v793
  %1086 = vmatpush1.bf16.msra.mxu0 %v792
  %1087 = vmatprep.subr.bf16.mxu0 %v796
  %1088 = vmatpush1.bf16.msra.mxu0 %v795
  %1089 = vmatprep.subr.bf16.mxu0 %v799
  %1090 = vmatpush1.bf16.msra.mxu0 %v798
  %1091 = vmatprep.subr.bf16.mxu0 %v802
  %1092 = vmatpush1.bf16.msra.mxu0 %v801
  %1093 = vmatprep.subr.bf16.mxu0 %v805
  %1094 = vmatpush1.bf16.msra.mxu0 %v804
  %1095 = vmatprep.subr.bf16.mxu0 %v808
  %1096 = vmatpush1.bf16.msra.mxu0 %v807
  %1097 = vmatprep.subr.bf16.mxu0 %v811
  %1098 = vmatpush1.bf16.msra.mxu0 %v810
  %1099 = vmatprep.subr.bf16.mxu0 %v814
  %1100 = vmatpush1.bf16.msra.mxu0 %v813
  %1101 = vmatprep.subr.bf16.mxu0 %v817
  %1102 = vmatpush1.bf16.msra.mxu0 %v816
  %1103 = vmatprep.subr.bf16.mxu0 %v820
  %1104 = vmatpush1.bf16.msra.mxu0 %v819
  %1105 = vmatprep.subr.bf16.mxu0 %v823
  %1106 = vmatpush1.bf16.msra.mxu0 %v822
  %1107 = vmatprep.mubr.bf16.mxu0 %v275
  %1108 = vmatmul.mubr.bf16.gmra.mrb[0].mxu0 %v274
  %v1109 = vpop.f32.mrb[0].mxu0
  %v1110 = vadd.f32 %v240, %v1109
  %v1111 = vpop.f32.mrb[0].mxu0
  %v1112 = vadd.f32 %v244, %v1111
  %v1113 = vpop.f32.mrb[0].mxu0
  %v1114 = vadd.f32 %v240, %v1113
  %v1115 = vpop.f32.mrb[0].mxu0
  %v1116 = vadd.f32 %v244, %v1115
  %1117 = vdwg.mxu0
  %1118 = vmatprep.subr.bf16.mxu0 %v826
  %1119 = vmatpush1.bf16.msra.mxu0 %v825
  %1120 = vmatprep.subr.bf16.mxu0 %v829
  %1121 = vmatpush1.bf16.msra.mxu0 %v828
  %1122 = vmatprep.subr.bf16.mxu0 %v832
  %1123 = vmatpush1.bf16.msra.mxu0 %v831
  %1124 = vmatprep.subr.bf16.mxu0 %v835
  %1125 = vmatpush1.bf16.msra.mxu0 %v834
  %1126 = vmatprep.subr.bf16.mxu0 %v838
  %1127 = vmatpush1.bf16.msra.mxu0 %v837
  %1128 = vmatprep.subr.bf16.mxu0 %v841
  %1129 = vmatpush1.bf16.msra.mxu0 %v840
  %1130 = vmatprep.subr.bf16.mxu0 %v844
  %1131 = vmatpush1.bf16.msra.mxu0 %v843
  %1132 = vmatprep.subr.bf16.mxu0 %v847
  %1133 = vmatpush1.bf16.msra.mxu0 %v846
  %1134 = vmatprep.subr.bf16.mxu0 %v850
  %1135 = vmatpush1.bf16.msra.mxu0 %v849
  %1136 = vmatprep.subr.bf16.mxu0 %v853
  %1137 = vmatpush1.bf16.msra.mxu0 %v852
  %1138 = vmatprep.subr.bf16.mxu0 %v856
  %1139 = vmatpush1.bf16.msra.mxu0 %v855
  %1140 = vmatprep.subr.bf16.mxu0 %v859
  %1141 = vmatpush1.bf16.msra.mxu0 %v858
  %1142 = vmatprep.subr.bf16.mxu0 %v862
  %1143 = vmatpush1.bf16.msra.mxu0 %v861
  %1144 = vmatprep.subr.bf16.mxu0 %v865
  %1145 = vmatpush1.bf16.msra.mxu0 %v864
  %1146 = vmatprep.subr.bf16.mxu0 %v868
  %1147 = vmatpush1.bf16.msra.mxu0 %v867
  %1148 = vmatprep.subr.bf16.mxu0 %v871
  %1149 = vmatpush1.bf16.msra.mxu0 %v870
  %1150 = vmatprep.mubr.bf16.mxu0 %v277
  %1151 = vmatmul.mubr.bf16.gmra.mrb[0].mxu0 %v276
  %v1152 = vpop.f32.mrb[0].mxu0
  %v1153 = vadd.f32 %v1110, %v1152
  %v1154 = vpop.f32.mrb[0].mxu0
  %v1155 = vadd.f32 %v1112, %v1154
  %v1156 = vpop.f32.mrb[0].mxu0
  %v1157 = vadd.f32 %v1114, %v1156
  %v1158 = vpop.f32.mrb[0].mxu0
  %v1159 = vadd.f32 %v1116, %v1158
  %1160 = vdwg.mxu0
  %1161 = vmatprep.subr.bf16.mxu0 %v874
  %1162 = vmatpush1.bf16.msra.mxu0 %v873
  %1163 = vmatprep.subr.bf16.mxu0 %v877
  %1164 = vmatpush1.bf16.msra.mxu0 %v876
  %1165 = vmatprep.subr.bf16.mxu0 %v880
  %1166 = vmatpush1.bf16.msra.mxu0 %v879
  %1167 = vmatprep.subr.bf16.mxu0 %v883
  %1168 = vmatpush1.bf16.msra.mxu0 %v882
  %1169 = vmatprep.subr.bf16.mxu0 %v886
  %1170 = vmatpush1.bf16.msra.mxu0 %v885
  %1171 = vmatprep.subr.bf16.mxu0 %v889
  %1172 = vmatpush1.bf16.msra.mxu0 %v888
  %1173 = vmatprep.subr.bf16.mxu0 %v892
  %1174 = vmatpush1.bf16.msra.mxu0 %v891
  %1175 = vmatprep.subr.bf16.mxu0 %v895
  %1176 = vmatpush1.bf16.msra.mxu0 %v894
  %1177 = vmatprep.subr.bf16.mxu0 %v898
  %1178 = vmatpush1.bf16.msra.mxu0 %v897
  %1179 = vmatprep.subr.bf16.mxu0 %v901
  %1180 = vmatpush1.bf16.msra.mxu0 %v900
  %1181 = vmatprep.subr.bf16.mxu0 %v904
  %1182 = vmatpush1.bf16.msra.mxu0 %v903
  %1183 = vmatprep.subr.bf16.mxu0 %v907
  %1184 = vmatpush1.bf16.msra.mxu0 %v906
  %1185 = vmatprep.subr.bf16.mxu0 %v910
  %1186 = vmatpush1.bf16.msra.mxu0 %v909
  %1187 = vmatprep.subr.bf16.mxu0 %v913
  %1188 = vmatpush1.bf16.msra.mxu0 %v912
  %1189 = vmatprep.subr.bf16.mxu0 %v916
  %1190 = vmatpush1.bf16.msra.mxu0 %v915
  %1191 = vmatprep.subr.bf16.mxu0 %v919
  %1192 = vmatpush1.bf16.msra.mxu0 %v918
  %1193 = vmatprep.mubr.bf16.mxu0 %v279
  %1194 = vmatmul.mubr.bf16.gmra.mrb[0].mxu0 %v278
  %v1195 = vpop.f32.mrb[0].mxu0
  %v1196 = vadd.f32 %v1153, %v1195
  %v1197 = vpop.f32.mrb[0].mxu0
  %v1198 = vadd.f32 %v1155, %v1197
  %v1199 = vpop.f32.mrb[0].mxu0
  %v1200 = vadd.f32 %v1157, %v1199
  %v1201 = vpop.f32.mrb[0].mxu0
  %v1202 = vadd.f32 %v1159, %v1201
  %1203 = vdwg.mxu0
  %1204 = vmatprep.subr.bf16.mxu0 %v922
  %1205 = vmatpush1.bf16.msra.mxu0 %v921
  %1206 = vmatprep.subr.bf16.mxu0 0
  %1207 = vmatpush1.bf16.msra.mxu0 0
  %1208 = vmatprep.subr.bf16.mxu0 0
  %1209 = vmatpush1.bf16.msra.mxu0 0
  %1210 = vmatprep.subr.bf16.mxu0 0
  %1211 = vmatpush1.bf16.msra.mxu0 0
  %1212 = vmatprep.subr.bf16.mxu0 0
  %1213 = vmatpush1.bf16.msra.mxu0 0
  %1214 = vmatprep.subr.bf16.mxu0 0
  %1215 = vmatpush1.bf16.msra.mxu0 0
  %1216 = vmatprep.subr.bf16.mxu0 0
  %1217 = vmatpush1.bf16.msra.mxu0 0
  %1218 = vmatprep.subr.bf16.mxu0 0
  %1219 = vmatpush1.bf16.msra.mxu0 0
  %1220 = vmatprep.subr.bf16.mxu0 0
  %1221 = vmatpush1.bf16.msra.mxu0 0
  %1222 = vmatprep.subr.bf16.mxu0 0
  %1223 = vmatpush1.bf16.msra.mxu0 0
  %1224 = vmatprep.subr.bf16.mxu0 0
  %1225 = vmatpush1.bf16.msra.mxu0 0
  %1226 = vmatprep.subr.bf16.mxu0 0
  %1227 = vmatpush1.bf16.msra.mxu0 0
  %1228 = vmatprep.subr.bf16.mxu0 0
  %1229 = vmatpush1.bf16.msra.mxu0 0
  %1230 = vmatprep.subr.bf16.mxu0 0
  %1231 = vmatpush1.bf16.msra.mxu0 0
  %1232 = vmatprep.subr.bf16.mxu0 0
  %1233 = vmatpush1.bf16.msra.mxu0 0
  %1234 = vmatprep.subr.bf16.mxu0 0
  %1235 = vmatpush1.bf16.msra.mxu0 0
  %1236 = vmatprep.mubr.bf16.mxu0 0
  %1237 = vmatmul.mubr.bf16.gmra.mrb[0].mxu0 %v1073
  %v1238 = vpop.f32.mrb[0].mxu0
  %v1239 = vadd.f32 %v1196, %v1238
  %v1240 = vpop.f32.mrb[0].mxu0
  %v1241 = vadd.f32 %v1198, %v1240
  %v1242 = vpop.f32.mrb[0].mxu0
  %v1243 = vadd.f32 %v1200, %v1242
  %v1244 = vpop.f32.mrb[0].mxu0
  %v1245 = vadd.f32 %v1202, %v1244
  %1246 = vdwg.mxu0
  %1247 = vmatprep.subr.bf16.mxu0 0
  %1248 = vmatpush1.bf16.msra.mxu0 %v779
  %1249 = vmatprep.subr.bf16.mxu0 0
  %1250 = vmatpush1.bf16.msra.mxu0 %v782
  %1251 = vmatprep.subr.bf16.mxu0 0
  %1252 = vmatpush1.bf16.msra.mxu0 %v785
  %1253 = vmatprep.subr.bf16.mxu0 0
  %1254 = vmatpush1.bf16.msra.mxu0 %v788
  %1255 = vmatprep.subr.bf16.mxu0 0
  %1256 = vmatpush1.bf16.msra.mxu0 %v791
  %1257 = vmatprep.subr.bf16.mxu0 0
  %1258 = vmatpush1.bf16.msra.mxu0 %v794
  %1259 = vmatprep.subr.bf16.mxu0 0
  %1260 = vmatpush1.bf16.msra.mxu0 %v797
  %1261 = vmatprep.subr.bf16.mxu0 0
  %1262 = vmatpush1.bf16.msra.mxu0 %v800
  %1263 = vmatprep.subr.bf16.mxu0 0
  %1264 = vmatpush1.bf16.msra.mxu0 %v803
  %1265 = vmatprep.subr.bf16.mxu0 0
  %1266 = vmatpush1.bf16.msra.mxu0 %v806
  %1267 = vmatprep.subr.bf16.mxu0 0
  %1268 = vmatpush1.bf16.msra.mxu0 %v809
  %1269 = vmatprep.subr.bf16.mxu0 0
  %1270 = vmatpush1.bf16.msra.mxu0 %v812
  %1271 = vmatprep.subr.bf16.mxu0 0
  %1272 = vmatpush1.bf16.msra.mxu0 %v815
  %1273 = vmatprep.subr.bf16.mxu0 0
  %1274 = vmatpush1.bf16.msra.mxu0 %v818
  %1275 = vmatprep.subr.bf16.mxu0 0
  %1276 = vmatpush1.bf16.msra.mxu0 %v821
  %1277 = vmatprep.subr.bf16.mxu0 0
  %1278 = vmatpush1.bf16.msra.mxu0 %v824
  %1279 = vmatprep.mubr.bf16.mxu0 %v275
  %1280 = vmatmul.mubr.bf16.gmra.mrb[0].mxu0 %v274
  %v1281 = vpop.f32.mrb[0].mxu0
  %v1282 = vadd.f32 %v248, %v1281
  %v1283 = vpop.f32.mrb[0].mxu0
  %v1284 = vpop.f32.mrb[0].mxu0
  %v1285 = vadd.f32 %v248, %v1284
  %v1286 = vpop.f32.mrb[0].mxu0
  %1287 = vdwg.mxu0
  %1288 = vmatprep.subr.bf16.mxu0 0
  %1289 = vmatpush1.bf16.msra.mxu0 %v827
  %1290 = vmatprep.subr.bf16.mxu0 0
  %1291 = vmatpush1.bf16.msra.mxu0 %v830
  %1292 = vmatprep.subr.bf16.mxu0 0
  %1293 = vmatpush1.bf16.msra.mxu0 %v833
  %1294 = vmatprep.subr.bf16.mxu0 0
  %1295 = vmatpush1.bf16.msra.mxu0 %v836
  %1296 = vmatprep.subr.bf16.mxu0 0
  %1297 = vmatpush1.bf16.msra.mxu0 %v839
  %1298 = vmatprep.subr.bf16.mxu0 0
  %1299 = vmatpush1.bf16.msra.mxu0 %v842
  %1300 = vmatprep.subr.bf16.mxu0 0
  %1301 = vmatpush1.bf16.msra.mxu0 %v845
  %1302 = vmatprep.subr.bf16.mxu0 0
  %1303 = vmatpush1.bf16.msra.mxu0 %v848
  %1304 = vmatprep.subr.bf16.mxu0 0
  %1305 = vmatpush1.bf16.msra.mxu0 %v851
  %1306 = vmatprep.subr.bf16.mxu0 0
  %1307 = vmatpush1.bf16.msra.mxu0 %v854
  %1308 = vmatprep.subr.bf16.mxu0 0
  %1309 = vmatpush1.bf16.msra.mxu0 %v857
  %1310 = vmatprep.subr.bf16.mxu0 0
  %1311 = vmatpush1.bf16.msra.mxu0 %v860
  %1312 = vmatprep.subr.bf16.mxu0 0
  %1313 = vmatpush1.bf16.msra.mxu0 %v863
  %1314 = vmatprep.subr.bf16.mxu0 0
  %1315 = vmatpush1.bf16.msra.mxu0 %v866
  %1316 = vmatprep.subr.bf16.mxu0 0
  %1317 = vmatpush1.bf16.msra.mxu0 %v869
  %1318 = vmatprep.subr.bf16.mxu0 0
  %1319 = vmatpush1.bf16.msra.mxu0 %v872
  %1320 = vmatprep.mubr.bf16.mxu0 %v277
  %1321 = vmatmul.mubr.bf16.gmra.mrb[0].mxu0 %v276
  %v1322 = vpop.f32.mrb[0].mxu0
  %v1323 = vadd.f32 %v1282, %v1322
  %v1324 = vpop.f32.mrb[0].mxu0
  %v1325 = vpop.f32.mrb[0].mxu0
  %v1326 = vadd.f32 %v1285, %v1325
  %v1327 = vpop.f32.mrb[0].mxu0
  %1328 = vdwg.mxu0
  %1329 = vmatprep.subr.bf16.mxu0 0
  %1330 = vmatpush1.bf16.msra.mxu0 %v875
  %1331 = vmatprep.subr.bf16.mxu0 0
  %1332 = vmatpush1.bf16.msra.mxu0 %v878
  %1333 = vmatprep.subr.bf16.mxu0 0
  %1334 = vmatpush1.bf16.msra.mxu0 %v881
  %1335 = vmatprep.subr.bf16.mxu0 0
  %1336 = vmatpush1.bf16.msra.mxu0 %v884
  %1337 = vmatprep.subr.bf16.mxu0 0
  %1338 = vmatpush1.bf16.msra.mxu0 %v887
  %1339 = vmatprep.subr.bf16.mxu0 0
  %1340 = vmatpush1.bf16.msra.mxu0 %v890
  %1341 = vmatprep.subr.bf16.mxu0 0
  %1342 = vmatpush1.bf16.msra.mxu0 %v893
  %1343 = vmatprep.subr.bf16.mxu0 0
  %1344 = vmatpush1.bf16.msra.mxu0 %v896
  %1345 = vmatprep.subr.bf16.mxu0 0
  %1346 = vmatpush1.bf16.msra.mxu0 %v899
  %1347 = vmatprep.subr.bf16.mxu0 0
  %1348 = vmatpush1.bf16.msra.mxu0 %v902
  %1349 = vmatprep.subr.bf16.mxu0 0
  %1350 = vmatpush1.bf16.msra.mxu0 %v905
  %1351 = vmatprep.subr.bf16.mxu0 0
  %1352 = vmatpush1.bf16.msra.mxu0 %v908
  %1353 = vmatprep.subr.bf16.mxu0 0
  %1354 = vmatpush1.bf16.msra.mxu0 %v911
  %1355 = vmatprep.subr.bf16.mxu0 0
  %1356 = vmatpush1.bf16.msra.mxu0 %v914
  %1357 = vmatprep.subr.bf16.mxu0 0
  %1358 = vmatpush1.bf16.msra.mxu0 %v917
  %1359 = vmatprep.subr.bf16.mxu0 0
  %1360 = vmatpush1.bf16.msra.mxu0 %v920
  %1361 = vmatprep.mubr.bf16.mxu0 %v279
  %1362 = vmatmul.mubr.bf16.gmra.mrb[0].mxu0 %v278
  %v1363 = vpop.f32.mrb[0].mxu0
  %v1364 = vadd.f32 %v1323, %v1363
  %v1365 = vpop.f32.mrb[0].mxu0
  %v1366 = vpop.f32.mrb[0].mxu0
  %v1367 = vadd.f32 %v1326, %v1366
  %v1368 = vpop.f32.mrb[0].mxu0
  %1369 = vdwg.mxu0
  %1370 = vmatprep.subr.bf16.mxu0 0
  %1371 = vmatpush1.bf16.msra.mxu0 %v923
  %1372 = vmatprep.subr.bf16.mxu0 0
  %1373 = vmatpush1.bf16.msra.mxu0 0
  %1374 = vmatprep.subr.bf16.mxu0 0
  %1375 = vmatpush1.bf16.msra.mxu0 0
  %1376 = vmatprep.subr.bf16.mxu0 0
  %1377 = vmatpush1.bf16.msra.mxu0 0
  %1378 = vmatprep.subr.bf16.mxu0 0
  %1379 = vmatpush1.bf16.msra.mxu0 0
  %1380 = vmatprep.subr.bf16.mxu0 0
  %1381 = vmatpush1.bf16.msra.mxu0 0
  %1382 = vmatprep.subr.bf16.mxu0 0
  %1383 = vmatpush1.bf16.msra.mxu0 0
  %1384 = vmatprep.subr.bf16.mxu0 0
  %1385 = vmatpush1.bf16.msra.mxu0 0
  %1386 = vmatprep.subr.bf16.mxu0 0
  %1387 = vmatpush1.bf16.msra.mxu0 0
  %1388 = vmatprep.subr.bf16.mxu0 0
  %1389 = vmatpush1.bf16.msra.mxu0 0
  %1390 = vmatprep.subr.bf16.mxu0 0
  %1391 = vmatpush1.bf16.msra.mxu0 0
  %1392 = vmatprep.subr.bf16.mxu0 0
  %1393 = vmatpush1.bf16.msra.mxu0 0
  %1394 = vmatprep.subr.bf16.mxu0 0
  %1395 = vmatpush1.bf16.msra.mxu0 0
  %1396 = vmatprep.subr.bf16.mxu0 0
  %1397 = vmatpush1.bf16.msra.mxu0 0
  %1398 = vmatprep.subr.bf16.mxu0 0
  %1399 = vmatpush1.bf16.msra.mxu0 0
  %1400 = vmatprep.subr.bf16.mxu0 0
  %1401 = vmatpush1.bf16.msra.mxu0 0
  %1402 = vmatprep.mubr.bf16.mxu0 0
  %1403 = vmatmul.mubr.bf16.gmra.mrb[0].mxu0 %v1073
  %v1404 = vpop.f32.mrb[0].mxu0
  %v1405 = vadd.f32 %v1364, %v1404
  %v1406 = vpop.f32.mrb[0].mxu0
  %v1407 = vpop.f32.mrb[0].mxu0
  %v1408 = vadd.f32 %v1367, %v1407
  %v1409 = vpop.f32.mrb[0].mxu0
  %1410 = vdwg.mxu0
  %v1411 = vmax.f32 %v1239, 0.0
  %v1412 = vmax.f32 %v1241, 0.0
  %v1413 = vmax.f32 %v1405, 0.0
  %v1414 = vmax.f32 %v1243, 0.0
  %v1415 = vmax.f32 %v1245, 0.0
  %v1416 = vmax.f32 %v1408, 0.0
  %v1417 = vadd.f32 %v1411, %v1412
  %vm1418 = vcmask 179200
  %v1419 = vsel %vm1418, %v1413, 0.0
  %v1420 = vadd.f32 %v1417, %v1419
  %1421 = vadd.xlane.f32.xlu0 %v1420
  %v1422 = vpop.xlane.xlu0 %1421
  %v1423 = vadd.f32 %v1414, %v1415
  %v1424 = vsel %vm1418, %v1416, 0.0
  %v1425 = vadd.f32 %v1423, %v1424
  %1426 = vadd.xlane.f32.xlu0 %v1425
  %v1427 = vpop.xlane.xlu0 %1426
  %v1428 = vrcp.pop 278.0
  %v1429 = vmul.f32 %v1422, %v1428
  %v1430 = vmul.f32 %v1427, %v1428
  %v1431 = vsub.f32 %v1411, %v1429
  %v1432 = vsub.f32 %v1412, %v1429
  %v1433 = vsub.f32 %v1413, %v1429
  %v1434 = vsub.f32 %v1414, %v1430
  %v1435 = vsub.f32 %v1415, %v1430
  %v1436 = vsub.f32 %v1416, %v1430
  %v1437 = vmul.f32 %v1431, %v1431
  %v1438 = vmul.f32 %v1432, %v1432
  %v1439 = vmul.f32 %v1433, %v1433
  %v1440 = vmul.f32 %v1434, %v1434
  %v1441 = vmul.f32 %v1435, %v1435
  %v1442 = vmul.f32 %v1436, %v1436
  %v1443 = vadd.f32 %v1437, %v1438
  %v1444 = vsel %vm1418, %v1439, 0.0
  %v1445 = vadd.f32 %v1443, %v1444
  %1446 = vadd.xlane.f32.xlu0 %v1445
  %v1447 = vpop.xlane.xlu0 %1446
  %v1448 = vadd.f32 %v1440, %v1441
  %v1449 = vsel %vm1418, %v1442, 0.0
  %v1450 = vadd.f32 %v1448, %v1449
  %1451 = vadd.xlane.f32.xlu0 %v1450
  %v1452 = vpop.xlane.xlu0 %1451
  %v1453 = vmul.f32 %v1447, %v1428
  %v1454 = vmul.f32 %v1452, %v1428
  %v1455 = vadd.f32 %v1453, 1e-05
  %v1456 = vadd.f32 %v1454, 1e-05
  %v1457 = vrsqrt.pop %v1455
  %v1458 = vrsqrt.pop %v1456
  %s1459 = scalar_lea.vmem %s3, 1
  %v1460 = vld [vmem:[%s1459] ss:$4 sm:$0x7]
  %v1462 = vlaneseq
  %v1463 = vshrl.u32 %v1462, 7
  %v1464 = vsub.s32 0, %v1463
  %v1465 = vrot.slane %v1460, %v1464
  %v1466 = vlaneseq
  %v1467 = vshrl.u32 %v1466, 7
  %v1468 = vsub.s32 1, %v1467
  %v1469 = vrot.slane %v1460, %v1468
  %v1470 = vlaneseq
  %v1471 = vshrl.u32 %v1470, 7
  %v1472 = vsub.s32 2, %v1471
  %v1473 = vrot.slane %v1460, %v1472
  %v1477 = vmul.f32 %v1457, %v1465
  %v1478 = vmul.f32 %v1457, %v1469
  %v1479 = vmul.f32 %v1457, %v1473
  %v1480 = vmul.f32 %v1458, %v1465
  %v1481 = vmul.f32 %v1458, %v1469
  %v1482 = vmul.f32 %v1458, %v1473
  %v1483 = vmul.f32 %v1431, %v1477
  %v1484 = vmul.f32 %v1432, %v1478
  %v1485 = vmul.f32 %v1433, %v1479
  %v1486 = vmul.f32 %v1434, %v1480
  %v1487 = vmul.f32 %v1435, %v1481
  %v1488 = vmul.f32 %v1436, %v1482
  %s1489 = scalar_lea.vmem %s3, 2
  %v1490 = vld [vmem:[%s1489] ss:$4 sm:$0x7]
  %v1492 = vlaneseq
  %v1493 = vshrl.u32 %v1492, 7
  %v1494 = vsub.s32 0, %v1493
  %v1495 = vrot.slane %v1490, %v1494
  %v1496 = vlaneseq
  %v1497 = vshrl.u32 %v1496, 7
  %v1498 = vsub.s32 1, %v1497
  %v1499 = vrot.slane %v1490, %v1498
  %v1500 = vlaneseq
  %v1501 = vshrl.u32 %v1500, 7
  %v1502 = vsub.s32 2, %v1501
  %v1503 = vrot.slane %v1490, %v1502
  %v1507 = vadd.f32 %v1483, %v1495
  %v1508 = vadd.f32 %v1484, %v1499
  %v1509 = vadd.f32 %v1485, %v1503
  %v1510 = vadd.f32 %v1486, %v1495
  %v1511 = vadd.f32 %v1487, %v1499
  %v1512 = vadd.f32 %v1488, %v1503
  %v1513 = vpack.c.bf16 %v1510, %v1507
  %v1514 = vpack.c.bf16 %v1511, %v1508
  %v1515 = vpack.c.bf16 %v1512, %v1509
  %v1519 = vunpack.c.l.b16 %v1513
  %v1520 = vunpack.c.l.b16 %v1514
  %v1521 = vunpack.c.l.b16 %v1515
  %v1522 = vunpack.c.h.b16 %v1513
  %v1523 = vunpack.c.h.b16 %v1514
  %v1524 = vunpack.c.h.b16 %v1515
  %v1525 = vpack.c.b16 %v1520, %v1519
  %v1526 = vpack.c.b16 %v1521, %v1521
  %v1527 = vpack.c.b16 %v1523, %v1522
  %v1528 = vpack.c.b16 %v1524, %v1524
  %1533 = vst [vmem:[%s7] sm:$0xff] %v1525
  %vm1534 = vcmask 175104
  %1535 = vst.msk [vmem:[%s7 + $0x8] sm:$0xf] %vm1534, %v1526
  %1536 = vst [vmem:[%s7 + $0xc] sm:$0xff] %v1527
  %1537 = vst.msk [vmem:[%s7 + $0x14] sm:$0xf] %vm1534, %v1528
  %v1538 = vld [vmem:[%s2] sm:$0xff]
  %v1539 = vld [vmem:[%s2 + $0x8] sm:$0xf]
  %v1540 = vld [vmem:[%s2 + $0xc] sm:$0xff]
  %v1541 = vld [vmem:[%s2 + $0x14] sm:$0xf]
  %v1542 = vld [vmem:[%s2 + $0x18] sm:$0xff]
  %v1543 = vld [vmem:[%s2 + $0x20] sm:$0xf]
  %v1544 = vld [vmem:[%s2 + $0x24] sm:$0xff]
  %v1545 = vld [vmem:[%s2 + $0x2c] sm:$0xf]
  %v1546 = vld [vmem:[%s2 + $0x30] sm:$0xff]
  %v1547 = vld [vmem:[%s2 + $0x38] sm:$0xf]
  %v1548 = vld [vmem:[%s2 + $0x3c] sm:$0xff]
  %v1549 = vld [vmem:[%s2 + $0x44] sm:$0xf]
  %v1550 = vld [vmem:[%s2 + $0x48] sm:$0xff]
  %v1551 = vld [vmem:[%s2 + $0x50] sm:$0xf]
  %v1552 = vld [vmem:[%s2 + $0x54] sm:$0xff]
  %v1553 = vld [vmem:[%s2 + $0x5c] sm:$0xf]
  %v1554 = vld [vmem:[%s2 + $0x60] sm:$0xff]
  %v1555 = vld [vmem:[%s2 + $0x68] sm:$0xf]
  %v1556 = vld [vmem:[%s2 + $0x6c] sm:$0xff]
  %v1557 = vld [vmem:[%s2 + $0x74] sm:$0xf]
  %v1558 = vld [vmem:[%s2 + $0x78] sm:$0xff]
  %v1559 = vld [vmem:[%s2 + $0x80] sm:$0xf]
  %v1560 = vld [vmem:[%s2 + $0x84] sm:$0xff]
  %v1561 = vld [vmem:[%s2 + $0x8c] sm:$0xf]
  %v1562 = vld [vmem:[%s2 + $0x90] sm:$0xff]
  %v1563 = vld [vmem:[%s2 + $0x98] sm:$0xf]
  %v1564 = vld [vmem:[%s2 + $0x9c] sm:$0xff]
  %v1565 = vld [vmem:[%s2 + $0xa4] sm:$0xf]
  %v1566 = vld [vmem:[%s2 + $0xa8] sm:$0xff]
  %v1567 = vld [vmem:[%s2 + $0xb0] sm:$0xf]
  %v1568 = vld [vmem:[%s2 + $0xb4] sm:$0xff]
  %v1569 = vld [vmem:[%s2 + $0xbc] sm:$0xf]
  %v1570 = vld [vmem:[%s2 + $0xc0] sm:$0xff]
  %v1571 = vld [vmem:[%s2 + $0xc8] sm:$0xf]
  %v1572 = vld [vmem:[%s2 + $0xcc] sm:$0xff]
  %v1573 = vld [vmem:[%s2 + $0xd4] sm:$0xf]
  %v1574 = vld [vmem:[%s2 + $0xd8] sm:$0xff]
  %v1575 = vld [vmem:[%s2 + $0xe0] sm:$0xf]
  %v1576 = vld [vmem:[%s2 + $0xe4] sm:$0xff]
  %v1577 = vld [vmem:[%s2 + $0xec] sm:$0xf]
  %v1578 = vld [vmem:[%s2 + $0xf0] sm:$0xff]
  %v1579 = vld [vmem:[%s2 + $0xf8] sm:$0xf]
  %v1580 = vld [vmem:[%s2 + $0xfc] sm:$0xff]
  %v1581 = vld [vmem:[%s2 + $0x104] sm:$0xf]
  %v1582 = vld [vmem:[%s2 + $0x108] sm:$0xff]
  %v1583 = vld [vmem:[%s2 + $0x110] sm:$0xf]
  %v1584 = vld [vmem:[%s2 + $0x114] sm:$0xff]
  %v1585 = vld [vmem:[%s2 + $0x11c] sm:$0xf]
  %v1586 = vld [vmem:[%s2 + $0x120] sm:$0xff]
  %v1587 = vld [vmem:[%s2 + $0x128] sm:$0xf]
  %v1588 = vld [vmem:[%s2 + $0x12c] sm:$0xff]
  %v1589 = vld [vmem:[%s2 + $0x134] sm:$0xf]
  %v1590 = vld [vmem:[%s2 + $0x138] sm:$0xff]
  %v1591 = vld [vmem:[%s2 + $0x140] sm:$0xf]
  %v1592 = vld [vmem:[%s2 + $0x144] sm:$0xff]
  %v1593 = vld [vmem:[%s2 + $0x14c] sm:$0xf]
  %v1594 = vld [vmem:[%s2 + $0x150] sm:$0xff]
  %v1595 = vld [vmem:[%s2 + $0x158] sm:$0xf]
  %v1596 = vld [vmem:[%s2 + $0x15c] sm:$0xff]
  %v1597 = vld [vmem:[%s2 + $0x164] sm:$0xf]
  %v1598 = vld [vmem:[%s2 + $0x168] sm:$0xff]
  %v1599 = vld [vmem:[%s2 + $0x170] sm:$0xf]
  %v1600 = vld [vmem:[%s2 + $0x174] sm:$0xff]
  %v1601 = vld [vmem:[%s2 + $0x17c] sm:$0xf]
  %v1602 = vld [vmem:[%s2 + $0x180] sm:$0xff]
  %v1603 = vld [vmem:[%s2 + $0x188] sm:$0xf]
  %v1604 = vld [vmem:[%s2 + $0x18c] sm:$0xff]
  %v1605 = vld [vmem:[%s2 + $0x194] sm:$0xf]
  %v1606 = vld [vmem:[%s2 + $0x198] sm:$0x77]
  %v1607 = vld [vmem:[%s2 + $0x1a0] sm:$0x7]
  %s1608 = scalar_lea.vmem %s3, 12
  %v1609 = vld [vmem:[%s1608] ss:$4 sm:$0x7]
  %v1611 = vlaneseq
  %v1612 = vshrl.u32 %v1611, 7
  %v1613 = vsub.s32 0, %v1612
  %v1614 = vrot.slane %v1609, %v1613
  %v1615 = vlaneseq
  %v1616 = vshrl.u32 %v1615, 7
  %v1617 = vsub.s32 1, %v1616
  %v1618 = vrot.slane %v1609, %v1617
  %v1619 = vlaneseq
  %v1620 = vshrl.u32 %v1619, 7
  %v1621 = vsub.s32 2, %v1620
  %v1622 = vrot.slane %v1609, %v1621
  %v1696 = vunpack.c.l.b16 %v1538
  %v1697 = vunpack.c.h.b16 %v1538
  %v1698 = vunpack.c.l.b16 %v1539
  %v1699 = vunpack.c.l.b16 %v1540
  %v1700 = vunpack.c.h.b16 %v1540
  %v1701 = vunpack.c.l.b16 %v1541
  %v1702 = vunpack.c.l.b16 %v1542
  %v1703 = vunpack.c.h.b16 %v1542
  %v1704 = vunpack.c.l.b16 %v1543
  %v1705 = vunpack.c.l.b16 %v1544
  %v1706 = vunpack.c.h.b16 %v1544
  %v1707 = vunpack.c.l.b16 %v1545
  %v1708 = vunpack.c.l.b16 %v1546
  %v1709 = vunpack.c.h.b16 %v1546
  %v1710 = vunpack.c.l.b16 %v1547
  %v1711 = vunpack.c.l.b16 %v1548
  %v1712 = vunpack.c.h.b16 %v1548
  %v1713 = vunpack.c.l.b16 %v1549
  %v1714 = vunpack.c.l.b16 %v1550
  %v1715 = vunpack.c.h.b16 %v1550
  %v1716 = vunpack.c.l.b16 %v1551
  %v1717 = vunpack.c.l.b16 %v1552
  %v1718 = vunpack.c.h.b16 %v1552
  %v1719 = vunpack.c.l.b16 %v1553
  %v1720 = vunpack.c.l.b16 %v1554
  %v1721 = vunpack.c.h.b16 %v1554
  %v1722 = vunpack.c.l.b16 %v1555
  %v1723 = vunpack.c.l.b16 %v1556
  %v1724 = vunpack.c.h.b16 %v1556
  %v1725 = vunpack.c.l.b16 %v1557
  %v1726 = vunpack.c.l.b16 %v1558
  %v1727 = vunpack.c.h.b16 %v1558
  %v1728 = vunpack.c.l.b16 %v1559
  %v1729 = vunpack.c.l.b16 %v1560
  %v1730 = vunpack.c.h.b16 %v1560
  %v1731 = vunpack.c.l.b16 %v1561
  %v1732 = vunpack.c.l.b16 %v1562
  %v1733 = vunpack.c.h.b16 %v1562
  %v1734 = vunpack.c.l.b16 %v1563
  %v1735 = vunpack.c.l.b16 %v1564
  %v1736 = vunpack.c.h.b16 %v1564
  %v1737 = vunpack.c.l.b16 %v1565
  %v1738 = vunpack.c.l.b16 %v1566
  %v1739 = vunpack.c.h.b16 %v1566
  %v1740 = vunpack.c.l.b16 %v1567
  %v1741 = vunpack.c.l.b16 %v1568
  %v1742 = vunpack.c.h.b16 %v1568
  %v1743 = vunpack.c.l.b16 %v1569
  %v1744 = vunpack.c.l.b16 %v1570
  %v1745 = vunpack.c.h.b16 %v1570
  %v1746 = vunpack.c.l.b16 %v1571
  %v1747 = vunpack.c.l.b16 %v1572
  %v1748 = vunpack.c.h.b16 %v1572
  %v1749 = vunpack.c.l.b16 %v1573
  %v1750 = vunpack.c.l.b16 %v1574
  %v1751 = vunpack.c.h.b16 %v1574
  %v1752 = vunpack.c.l.b16 %v1575
  %v1753 = vunpack.c.l.b16 %v1576
  %v1754 = vunpack.c.h.b16 %v1576
  %v1755 = vunpack.c.l.b16 %v1577
  %v1756 = vunpack.c.l.b16 %v1578
  %v1757 = vunpack.c.h.b16 %v1578
  %v1758 = vunpack.c.l.b16 %v1579
  %v1759 = vunpack.c.l.b16 %v1580
  %v1760 = vunpack.c.h.b16 %v1580
  %v1761 = vunpack.c.l.b16 %v1581
  %v1762 = vunpack.c.l.b16 %v1582
  %v1763 = vunpack.c.h.b16 %v1582
  %v1764 = vunpack.c.l.b16 %v1583
  %v1765 = vunpack.c.l.b16 %v1584
  %v1766 = vunpack.c.h.b16 %v1584
  %v1767 = vunpack.c.l.b16 %v1585
  %v1768 = vunpack.c.l.b16 %v1586
  %v1769 = vunpack.c.h.b16 %v1586
  %v1770 = vunpack.c.l.b16 %v1587
  %v1771 = vunpack.c.l.b16 %v1588
  %v1772 = vunpack.c.h.b16 %v1588
  %v1773 = vunpack.c.l.b16 %v1589
  %v1774 = vunpack.c.l.b16 %v1590
  %v1775 = vunpack.c.h.b16 %v1590
  %v1776 = vunpack.c.l.b16 %v1591
  %v1777 = vunpack.c.l.b16 %v1592
  %v1778 = vunpack.c.h.b16 %v1592
  %v1779 = vunpack.c.l.b16 %v1593
  %v1780 = vunpack.c.l.b16 %v1594
  %v1781 = vunpack.c.h.b16 %v1594
  %v1782 = vunpack.c.l.b16 %v1595
  %v1783 = vunpack.c.l.b16 %v1596
  %v1784 = vunpack.c.h.b16 %v1596
  %v1785 = vunpack.c.l.b16 %v1597
  %v1786 = vunpack.c.l.b16 %v1598
  %v1787 = vunpack.c.h.b16 %v1598
  %v1788 = vunpack.c.l.b16 %v1599
  %v1789 = vunpack.c.l.b16 %v1600
  %v1790 = vunpack.c.h.b16 %v1600
  %v1791 = vunpack.c.l.b16 %v1601
  %v1792 = vunpack.c.l.b16 %v1602
  %v1793 = vunpack.c.h.b16 %v1602
  %v1794 = vunpack.c.l.b16 %v1603
  %v1795 = vunpack.c.l.b16 %v1604
  %v1796 = vunpack.c.h.b16 %v1604
  %v1797 = vunpack.c.l.b16 %v1605
  %v1798 = vunpack.c.l.b16 %v1606
  %v1799 = vunpack.c.h.b16 %v1606
  %v1800 = vunpack.c.l.b16 %v1607
  %v1801 = vpack.c.b16 %v1699, %v1696
  %v1802 = vpack.c.b16 %v1700, %v1697
  %v1803 = vpack.c.b16 %v1701, %v1698
  %v1804 = vpack.c.b16 %v1705, %v1702
  %v1805 = vpack.c.b16 %v1706, %v1703
  %v1806 = vpack.c.b16 %v1707, %v1704
  %v1807 = vpack.c.b16 %v1711, %v1708
  %v1808 = vpack.c.b16 %v1712, %v1709
  %v1809 = vpack.c.b16 %v1713, %v1710
  %v1810 = vpack.c.b16 %v1717, %v1714
  %v1811 = vpack.c.b16 %v1718, %v1715
  %v1812 = vpack.c.b16 %v1719, %v1716
  %v1813 = vpack.c.b16 %v1723, %v1720
  %v1814 = vpack.c.b16 %v1724, %v1721
  %v1815 = vpack.c.b16 %v1725, %v1722
  %v1816 = vpack.c.b16 %v1729, %v1726
  %v1817 = vpack.c.b16 %v1730, %v1727
  %v1818 = vpack.c.b16 %v1731, %v1728
  %v1819 = vpack.c.b16 %v1735, %v1732
  %v1820 = vpack.c.b16 %v1736, %v1733
  %v1821 = vpack.c.b16 %v1737, %v1734
  %v1822 = vpack.c.b16 %v1741, %v1738
  %v1823 = vpack.c.b16 %v1742, %v1739
  %v1824 = vpack.c.b16 %v1743, %v1740
  %v1825 = vpack.c.b16 %v1747, %v1744
  %v1826 = vpack.c.b16 %v1748, %v1745
  %v1827 = vpack.c.b16 %v1749, %v1746
  %v1828 = vpack.c.b16 %v1753, %v1750
  %v1829 = vpack.c.b16 %v1754, %v1751
  %v1830 = vpack.c.b16 %v1755, %v1752
  %v1831 = vpack.c.b16 %v1759, %v1756
  %v1832 = vpack.c.b16 %v1760, %v1757
  %v1833 = vpack.c.b16 %v1761, %v1758
  %v1834 = vpack.c.b16 %v1765, %v1762
  %v1835 = vpack.c.b16 %v1766, %v1763
  %v1836 = vpack.c.b16 %v1767, %v1764
  %v1837 = vpack.c.b16 %v1771, %v1768
  %v1838 = vpack.c.b16 %v1772, %v1769
  %v1839 = vpack.c.b16 %v1773, %v1770
  %v1840 = vpack.c.b16 %v1777, %v1774
  %v1841 = vpack.c.b16 %v1778, %v1775
  %v1842 = vpack.c.b16 %v1779, %v1776
  %v1843 = vpack.c.b16 %v1783, %v1780
  %v1844 = vpack.c.b16 %v1784, %v1781
  %v1845 = vpack.c.b16 %v1785, %v1782
  %v1846 = vpack.c.b16 %v1789, %v1786
  %v1847 = vpack.c.b16 %v1790, %v1787
  %v1848 = vpack.c.b16 %v1791, %v1788
  %v1849 = vpack.c.b16 %v1795, %v1792
  %v1850 = vpack.c.b16 %v1796, %v1793
  %v1851 = vpack.c.b16 %v1797, %v1794
  %v1852 = vpack.c.b16 %v1798, %v1798
  %v1853 = vpack.c.b16 %v1799, %v1799
  %v1854 = vpack.c.b16 %v1800, %v1800
  %v1907 = vsel %vm1418, %v1515, 0
  %vm1909 = vcmask 1042432
  %v1911 = vsel %vm1909, %v1852, 0
  %v1914 = vsel %vm1909, %v1853, 0
  %v1917 = vsel %vm1909, %v1854, 0
  %1919 = vmatprep.subr.bf16.mxu0 %v1802
  %1920 = vmatpush1.bf16.msra.mxu0 %v1801
  %1921 = vmatprep.subr.bf16.mxu0 %v1805
  %1922 = vmatpush1.bf16.msra.mxu0 %v1804
  %1923 = vmatprep.subr.bf16.mxu0 %v1808
  %1924 = vmatpush1.bf16.msra.mxu0 %v1807
  %1925 = vmatprep.subr.bf16.mxu0 %v1811
  %1926 = vmatpush1.bf16.msra.mxu0 %v1810
  %1927 = vmatprep.subr.bf16.mxu0 %v1814
  %1928 = vmatpush1.bf16.msra.mxu0 %v1813
  %1929 = vmatprep.subr.bf16.mxu0 %v1817
  %1930 = vmatpush1.bf16.msra.mxu0 %v1816
  %1931 = vmatprep.subr.bf16.mxu0 %v1820
  %1932 = vmatpush1.bf16.msra.mxu0 %v1819
  %1933 = vmatprep.subr.bf16.mxu0 %v1823
  %1934 = vmatpush1.bf16.msra.mxu0 %v1822
  %1935 = vmatprep.subr.bf16.mxu0 %v1826
  %1936 = vmatpush1.bf16.msra.mxu0 %v1825
  %1937 = vmatprep.subr.bf16.mxu0 %v1829
  %1938 = vmatpush1.bf16.msra.mxu0 %v1828
  %1939 = vmatprep.subr.bf16.mxu0 %v1832
  %1940 = vmatpush1.bf16.msra.mxu0 %v1831
  %1941 = vmatprep.subr.bf16.mxu0 %v1835
  %1942 = vmatpush1.bf16.msra.mxu0 %v1834
  %1943 = vmatprep.subr.bf16.mxu0 %v1838
  %1944 = vmatpush1.bf16.msra.mxu0 %v1837
  %1945 = vmatprep.subr.bf16.mxu0 %v1841
  %1946 = vmatpush1.bf16.msra.mxu0 %v1840
  %1947 = vmatprep.subr.bf16.mxu0 %v1844
  %1948 = vmatpush1.bf16.msra.mxu0 %v1843
  %1949 = vmatprep.subr.bf16.mxu0 %v1847
  %1950 = vmatpush1.bf16.msra.mxu0 %v1846
  %1951 = vmatprep.mubr.bf16.mxu0 %v1514
  %1952 = vmatmul.mubr.bf16.gmra.mrb[0].mxu0 %v1513
  %v1953 = vpop.f32.mrb[0].mxu0
  %v1954 = vadd.f32 %v1614, %v1953
  %v1955 = vpop.f32.mrb[0].mxu0
  %v1956 = vadd.f32 %v1618, %v1955
  %v1957 = vpop.f32.mrb[0].mxu0
  %v1958 = vadd.f32 %v1614, %v1957
  %v1959 = vpop.f32.mrb[0].mxu0
  %v1960 = vadd.f32 %v1618, %v1959
  %1961 = vdwg.mxu0
  %1962 = vmatprep.subr.bf16.mxu0 %v1850
  %1963 = vmatpush1.bf16.msra.mxu0 %v1849
  %1964 = vmatprep.subr.bf16.mxu0 %v1914
  %1965 = vmatpush1.bf16.msra.mxu0 %v1911
  %1966 = vmatprep.subr.bf16.mxu0 0
  %1967 = vmatpush1.bf16.msra.mxu0 0
  %1968 = vmatprep.subr.bf16.mxu0 0
  %1969 = vmatpush1.bf16.msra.mxu0 0
  %1970 = vmatprep.subr.bf16.mxu0 0
  %1971 = vmatpush1.bf16.msra.mxu0 0
  %1972 = vmatprep.subr.bf16.mxu0 0
  %1973 = vmatpush1.bf16.msra.mxu0 0
  %1974 = vmatprep.subr.bf16.mxu0 0
  %1975 = vmatpush1.bf16.msra.mxu0 0
  %1976 = vmatprep.subr.bf16.mxu0 0
  %1977 = vmatpush1.bf16.msra.mxu0 0
  %1978 = vmatprep.subr.bf16.mxu0 0
  %1979 = vmatpush1.bf16.msra.mxu0 0
  %1980 = vmatprep.subr.bf16.mxu0 0
  %1981 = vmatpush1.bf16.msra.mxu0 0
  %1982 = vmatprep.subr.bf16.mxu0 0
  %1983 = vmatpush1.bf16.msra.mxu0 0
  %1984 = vmatprep.subr.bf16.mxu0 0
  %1985 = vmatpush1.bf16.msra.mxu0 0
  %1986 = vmatprep.subr.bf16.mxu0 0
  %1987 = vmatpush1.bf16.msra.mxu0 0
  %1988 = vmatprep.subr.bf16.mxu0 0
  %1989 = vmatpush1.bf16.msra.mxu0 0
  %1990 = vmatprep.subr.bf16.mxu0 0
  %1991 = vmatpush1.bf16.msra.mxu0 0
  %1992 = vmatprep.subr.bf16.mxu0 0
  %1993 = vmatpush1.bf16.msra.mxu0 0
  %1994 = vmatprep.mubr.bf16.mxu0 0
  %1995 = vmatmul.mubr.bf16.gmra.mrb[0].mxu0 %v1907
  %v1996 = vpop.f32.mrb[0].mxu0
  %v1997 = vadd.f32 %v1954, %v1996
  %v1998 = vpop.f32.mrb[0].mxu0
  %v1999 = vadd.f32 %v1956, %v1998
  %v2000 = vpop.f32.mrb[0].mxu0
  %v2001 = vadd.f32 %v1958, %v2000
  %v2002 = vpop.f32.mrb[0].mxu0
  %v2003 = vadd.f32 %v1960, %v2002
  %2004 = vdwg.mxu0
  %2005 = vmatprep.subr.bf16.mxu0 0
  %2006 = vmatpush1.bf16.msra.mxu0 %v1803
  %2007 = vmatprep.subr.bf16.mxu0 0
  %2008 = vmatpush1.bf16.msra.mxu0 %v1806
  %2009 = vmatprep.subr.bf16.mxu0 0
  %2010 = vmatpush1.bf16.msra.mxu0 %v1809
  %2011 = vmatprep.subr.bf16.mxu0 0
  %2012 = vmatpush1.bf16.msra.mxu0 %v1812
  %2013 = vmatprep.subr.bf16.mxu0 0
  %2014 = vmatpush1.bf16.msra.mxu0 %v1815
  %2015 = vmatprep.subr.bf16.mxu0 0
  %2016 = vmatpush1.bf16.msra.mxu0 %v1818
  %2017 = vmatprep.subr.bf16.mxu0 0
  %2018 = vmatpush1.bf16.msra.mxu0 %v1821
  %2019 = vmatprep.subr.bf16.mxu0 0
  %2020 = vmatpush1.bf16.msra.mxu0 %v1824
  %2021 = vmatprep.subr.bf16.mxu0 0
  %2022 = vmatpush1.bf16.msra.mxu0 %v1827
  %2023 = vmatprep.subr.bf16.mxu0 0
  %2024 = vmatpush1.bf16.msra.mxu0 %v1830
  %2025 = vmatprep.subr.bf16.mxu0 0
  %2026 = vmatpush1.bf16.msra.mxu0 %v1833
  %2027 = vmatprep.subr.bf16.mxu0 0
  %2028 = vmatpush1.bf16.msra.mxu0 %v1836
  %2029 = vmatprep.subr.bf16.mxu0 0
  %2030 = vmatpush1.bf16.msra.mxu0 %v1839
  %2031 = vmatprep.subr.bf16.mxu0 0
  %2032 = vmatpush1.bf16.msra.mxu0 %v1842
  %2033 = vmatprep.subr.bf16.mxu0 0
  %2034 = vmatpush1.bf16.msra.mxu0 %v1845
  %2035 = vmatprep.subr.bf16.mxu0 0
  %2036 = vmatpush1.bf16.msra.mxu0 %v1848
  %2037 = vmatprep.mubr.bf16.mxu0 %v1514
  %2038 = vmatmul.mubr.bf16.gmra.mrb[0].mxu0 %v1513
  %v2039 = vpop.f32.mrb[0].mxu0
  %v2040 = vadd.f32 %v1622, %v2039
  %v2041 = vpop.f32.mrb[0].mxu0
  %v2042 = vpop.f32.mrb[0].mxu0
  %v2043 = vadd.f32 %v1622, %v2042
  %v2044 = vpop.f32.mrb[0].mxu0
  %2045 = vdwg.mxu0
  %2046 = vmatprep.subr.bf16.mxu0 0
  %2047 = vmatpush1.bf16.msra.mxu0 %v1851
  %2048 = vmatprep.subr.bf16.mxu0 0
  %2049 = vmatpush1.bf16.msra.mxu0 %v1917
  %2050 = vmatprep.subr.bf16.mxu0 0
  %2051 = vmatpush1.bf16.msra.mxu0 0
  %2052 = vmatprep.subr.bf16.mxu0 0
  %2053 = vmatpush1.bf16.msra.mxu0 0
  %2054 = vmatprep.subr.bf16.mxu0 0
  %2055 = vmatpush1.bf16.msra.mxu0 0
  %2056 = vmatprep.subr.bf16.mxu0 0
  %2057 = vmatpush1.bf16.msra.mxu0 0
  %2058 = vmatprep.subr.bf16.mxu0 0
  %2059 = vmatpush1.bf16.msra.mxu0 0
  %2060 = vmatprep.subr.bf16.mxu0 0
  %2061 = vmatpush1.bf16.msra.mxu0 0
  %2062 = vmatprep.subr.bf16.mxu0 0
  %2063 = vmatpush1.bf16.msra.mxu0 0
  %2064 = vmatprep.subr.bf16.mxu0 0
  %2065 = vmatpush1.bf16.msra.mxu0 0
  %2066 = vmatprep.subr.bf16.mxu0 0
  %2067 = vmatpush1.bf16.msra.mxu0 0
  %2068 = vmatprep.subr.bf16.mxu0 0
  %2069 = vmatpush1.bf16.msra.mxu0 0
  %2070 = vmatprep.subr.bf16.mxu0 0
  %2071 = vmatpush1.bf16.msra.mxu0 0
  %2072 = vmatprep.subr.bf16.mxu0 0
  %2073 = vmatpush1.bf16.msra.mxu0 0
  %2074 = vmatprep.subr.bf16.mxu0 0
  %2075 = vmatpush1.bf16.msra.mxu0 0
  %2076 = vmatprep.subr.bf16.mxu0 0
  %2077 = vmatpush1.bf16.msra.mxu0 0
  %2078 = vmatprep.mubr.bf16.mxu0 0
  %2079 = vmatmul.mubr.bf16.gmra.mrb[0].mxu0 %v1907
  %v2080 = vpop.f32.mrb[0].mxu0
  %v2081 = vadd.f32 %v2040, %v2080
  %v2082 = vpop.f32.mrb[0].mxu0
  %v2083 = vpop.f32.mrb[0].mxu0
  %v2084 = vadd.f32 %v2043, %v2083
  %v2085 = vpop.f32.mrb[0].mxu0
  %2086 = vdwg.mxu0
  %v2087 = vmax.f32 %v1997, 0.0
  %v2088 = vmax.f32 %v1999, 0.0
  %v2089 = vmax.f32 %v2081, 0.0
  %v2090 = vmax.f32 %v2001, 0.0
  %v2091 = vmax.f32 %v2003, 0.0
  %v2092 = vmax.f32 %v2084, 0.0
  %v2093 = vadd.f32 %v2087, %v2088
  %v2094 = vsel %vm1418, %v2089, 0.0
  %v2095 = vadd.f32 %v2093, %v2094
  %2096 = vadd.xlane.f32.xlu0 %v2095
  %v2097 = vpop.xlane.xlu0 %2096
  %v2098 = vadd.f32 %v2090, %v2091
  %v2099 = vsel %vm1418, %v2092, 0.0
  %v2100 = vadd.f32 %v2098, %v2099
  %2101 = vadd.xlane.f32.xlu0 %v2100
  %v2102 = vpop.xlane.xlu0 %2101
  %v2103 = vmul.f32 %v2097, %v1428
  %v2104 = vmul.f32 %v2102, %v1428
  %v2105 = vsub.f32 %v2087, %v2103
  %v2106 = vsub.f32 %v2088, %v2103
  %v2107 = vsub.f32 %v2089, %v2103
  %v2108 = vsub.f32 %v2090, %v2104
  %v2109 = vsub.f32 %v2091, %v2104
  %v2110 = vsub.f32 %v2092, %v2104
  %v2111 = vmul.f32 %v2105, %v2105
  %v2112 = vmul.f32 %v2106, %v2106
  %v2113 = vmul.f32 %v2107, %v2107
  %v2114 = vmul.f32 %v2108, %v2108
  %v2115 = vmul.f32 %v2109, %v2109
  %v2116 = vmul.f32 %v2110, %v2110
  %v2117 = vadd.f32 %v2111, %v2112
  %v2118 = vsel %vm1418, %v2113, 0.0
  %v2119 = vadd.f32 %v2117, %v2118
  %2120 = vadd.xlane.f32.xlu0 %v2119
  %v2121 = vpop.xlane.xlu0 %2120
  %v2122 = vadd.f32 %v2114, %v2115
  %v2123 = vsel %vm1418, %v2116, 0.0
  %v2124 = vadd.f32 %v2122, %v2123
  %2125 = vadd.xlane.f32.xlu0 %v2124
  %v2126 = vpop.xlane.xlu0 %2125
  %v2127 = vmul.f32 %v2121, %v1428
  %v2128 = vmul.f32 %v2126, %v1428
  %v2129 = vadd.f32 %v2127, 1e-05
  %v2130 = vadd.f32 %v2128, 1e-05
  %v2131 = vrsqrt.pop %v2129
  %v2132 = vrsqrt.pop %v2130
  %s2133 = scalar_lea.vmem %s1608, 1
  %v2134 = vld [vmem:[%s2133] ss:$4 sm:$0x7]
  %v2136 = vlaneseq
  %v2137 = vshrl.u32 %v2136, 7
  %v2138 = vsub.s32 0, %v2137
  %v2139 = vrot.slane %v2134, %v2138
  %v2140 = vlaneseq
  %v2141 = vshrl.u32 %v2140, 7
  %v2142 = vsub.s32 1, %v2141
  %v2143 = vrot.slane %v2134, %v2142
  %v2144 = vlaneseq
  %v2145 = vshrl.u32 %v2144, 7
  %v2146 = vsub.s32 2, %v2145
  %v2147 = vrot.slane %v2134, %v2146
  %v2151 = vmul.f32 %v2131, %v2139
  %v2152 = vmul.f32 %v2131, %v2143
  %v2153 = vmul.f32 %v2131, %v2147
  %v2154 = vmul.f32 %v2132, %v2139
  %v2155 = vmul.f32 %v2132, %v2143
  %v2156 = vmul.f32 %v2132, %v2147
  %v2157 = vmul.f32 %v2105, %v2151
  %v2158 = vmul.f32 %v2106, %v2152
  %v2159 = vmul.f32 %v2107, %v2153
  %v2160 = vmul.f32 %v2108, %v2154
  %v2161 = vmul.f32 %v2109, %v2155
  %v2162 = vmul.f32 %v2110, %v2156
  %s2163 = scalar_lea.vmem %s1608, 2
  %v2164 = vld [vmem:[%s2163] ss:$4 sm:$0x7]
  %v2166 = vlaneseq
  %v2167 = vshrl.u32 %v2166, 7
  %v2168 = vsub.s32 0, %v2167
  %v2169 = vrot.slane %v2164, %v2168
  %v2170 = vlaneseq
  %v2171 = vshrl.u32 %v2170, 7
  %v2172 = vsub.s32 1, %v2171
  %v2173 = vrot.slane %v2164, %v2172
  %v2174 = vlaneseq
  %v2175 = vshrl.u32 %v2174, 7
  %v2176 = vsub.s32 2, %v2175
  %v2177 = vrot.slane %v2164, %v2176
  %v2181 = vadd.f32 %v2157, %v2169
  %v2182 = vadd.f32 %v2158, %v2173
  %v2183 = vadd.f32 %v2159, %v2177
  %v2184 = vadd.f32 %v2160, %v2169
  %v2185 = vadd.f32 %v2161, %v2173
  %v2186 = vadd.f32 %v2162, %v2177
  %v2187 = vpack.c.bf16 %v2184, %v2181
  %v2188 = vpack.c.bf16 %v2185, %v2182
  %v2189 = vpack.c.bf16 %v2186, %v2183
  %v2193 = vunpack.c.l.b16 %v2187
  %v2194 = vunpack.c.l.b16 %v2188
  %v2195 = vunpack.c.l.b16 %v2189
  %v2196 = vunpack.c.h.b16 %v2187
  %v2197 = vunpack.c.h.b16 %v2188
  %v2198 = vunpack.c.h.b16 %v2189
  %v2199 = vpack.c.b16 %v2194, %v2193
  %v2200 = vpack.c.b16 %v2195, %v2195
  %v2201 = vpack.c.b16 %v2197, %v2196
  %v2202 = vpack.c.b16 %v2198, %v2198
  %2207 = vst [vmem:[%s8] sm:$0xff] %v2199
  %2208 = vst.msk [vmem:[%s8 + $0x8] sm:$0xf] %vm1534, %v2200
  %2209 = vst [vmem:[%s8 + $0xc] sm:$0xff] %v2201
  %2210 = vst.msk [vmem:[%s8 + $0x14] sm:$0xf] %vm1534, %v2202
  %s2211 = scalar_lea.vmem %s2, 420
  %v2212 = vld [vmem:[%s2211] sm:$0xff]
  %v2213 = vld [vmem:[%s2211 + $0x8] sm:$0xf]
  %v2214 = vld [vmem:[%s2211 + $0xc] sm:$0xff]
  %v2215 = vld [vmem:[%s2211 + $0x14] sm:$0xf]
  %v2216 = vld [vmem:[%s2211 + $0x18] sm:$0xff]
  %v2217 = vld [vmem:[%s2211 + $0x20] sm:$0xf]
  %v2218 = vld [vmem:[%s2211 + $0x24] sm:$0xff]
  %v2219 = vld [vmem:[%s2211 + $0x2c] sm:$0xf]
  %v2220 = vld [vmem:[%s2211 + $0x30] sm:$0xff]
  %v2221 = vld [vmem:[%s2211 + $0x38] sm:$0xf]
  %v2222 = vld [vmem:[%s2211 + $0x3c] sm:$0xff]
  %v2223 = vld [vmem:[%s2211 + $0x44] sm:$0xf]
  %v2224 = vld [vmem:[%s2211 + $0x48] sm:$0xff]
  %v2225 = vld [vmem:[%s2211 + $0x50] sm:$0xf]
  %v2226 = vld [vmem:[%s2211 + $0x54] sm:$0xff]
  %v2227 = vld [vmem:[%s2211 + $0x5c] sm:$0xf]
  %v2228 = vld [vmem:[%s2211 + $0x60] sm:$0xff]
  %v2229 = vld [vmem:[%s2211 + $0x68] sm:$0xf]
  %v2230 = vld [vmem:[%s2211 + $0x6c] sm:$0xff]
  %v2231 = vld [vmem:[%s2211 + $0x74] sm:$0xf]
  %v2232 = vld [vmem:[%s2211 + $0x78] sm:$0xff]
  %v2233 = vld [vmem:[%s2211 + $0x80] sm:$0xf]
  %v2234 = vld [vmem:[%s2211 + $0x84] sm:$0xff]
  %v2235 = vld [vmem:[%s2211 + $0x8c] sm:$0xf]
  %v2236 = vld [vmem:[%s2211 + $0x90] sm:$0xff]
  %v2237 = vld [vmem:[%s2211 + $0x98] sm:$0xf]
  %v2238 = vld [vmem:[%s2211 + $0x9c] sm:$0xff]
  %v2239 = vld [vmem:[%s2211 + $0xa4] sm:$0xf]
  %v2240 = vld [vmem:[%s2211 + $0xa8] sm:$0xff]
  %v2241 = vld [vmem:[%s2211 + $0xb0] sm:$0xf]
  %v2242 = vld [vmem:[%s2211 + $0xb4] sm:$0xff]
  %v2243 = vld [vmem:[%s2211 + $0xbc] sm:$0xf]
  %v2244 = vld [vmem:[%s2211 + $0xc0] sm:$0xff]
  %v2245 = vld [vmem:[%s2211 + $0xc8] sm:$0xf]
  %v2246 = vld [vmem:[%s2211 + $0xcc] sm:$0xff]
  %v2247 = vld [vmem:[%s2211 + $0xd4] sm:$0xf]
  %v2248 = vld [vmem:[%s2211 + $0xd8] sm:$0xff]
  %v2249 = vld [vmem:[%s2211 + $0xe0] sm:$0xf]
  %v2250 = vld [vmem:[%s2211 + $0xe4] sm:$0xff]
  %v2251 = vld [vmem:[%s2211 + $0xec] sm:$0xf]
  %v2252 = vld [vmem:[%s2211 + $0xf0] sm:$0xff]
  %v2253 = vld [vmem:[%s2211 + $0xf8] sm:$0xf]
  %v2254 = vld [vmem:[%s2211 + $0xfc] sm:$0xff]
  %v2255 = vld [vmem:[%s2211 + $0x104] sm:$0xf]
  %v2256 = vld [vmem:[%s2211 + $0x108] sm:$0xff]
  %v2257 = vld [vmem:[%s2211 + $0x110] sm:$0xf]
  %v2258 = vld [vmem:[%s2211 + $0x114] sm:$0xff]
  %v2259 = vld [vmem:[%s2211 + $0x11c] sm:$0xf]
  %v2260 = vld [vmem:[%s2211 + $0x120] sm:$0xff]
  %v2261 = vld [vmem:[%s2211 + $0x128] sm:$0xf]
  %v2262 = vld [vmem:[%s2211 + $0x12c] sm:$0xff]
  %v2263 = vld [vmem:[%s2211 + $0x134] sm:$0xf]
  %v2264 = vld [vmem:[%s2211 + $0x138] sm:$0xff]
  %v2265 = vld [vmem:[%s2211 + $0x140] sm:$0xf]
  %v2266 = vld [vmem:[%s2211 + $0x144] sm:$0xff]
  %v2267 = vld [vmem:[%s2211 + $0x14c] sm:$0xf]
  %v2268 = vld [vmem:[%s2211 + $0x150] sm:$0xff]
  %v2269 = vld [vmem:[%s2211 + $0x158] sm:$0xf]
  %v2270 = vld [vmem:[%s2211 + $0x15c] sm:$0xff]
  %v2271 = vld [vmem:[%s2211 + $0x164] sm:$0xf]
  %v2272 = vld [vmem:[%s2211 + $0x168] sm:$0xff]
  %v2273 = vld [vmem:[%s2211 + $0x170] sm:$0xf]
  %v2274 = vld [vmem:[%s2211 + $0x174] sm:$0xff]
  %v2275 = vld [vmem:[%s2211 + $0x17c] sm:$0xf]
  %v2276 = vld [vmem:[%s2211 + $0x180] sm:$0xff]
  %v2277 = vld [vmem:[%s2211 + $0x188] sm:$0xf]
  %v2278 = vld [vmem:[%s2211 + $0x18c] sm:$0xff]
  %v2279 = vld [vmem:[%s2211 + $0x194] sm:$0xf]
  %v2280 = vld [vmem:[%s2211 + $0x198] sm:$0x77]
  %v2281 = vld [vmem:[%s2211 + $0x1a0] sm:$0x7]
  %s2282 = scalar_lea.vmem %s3, 24
  %v2283 = vld [vmem:[%s2282] ss:$4 sm:$0x7]
  %v2285 = vlaneseq
  %v2286 = vshrl.u32 %v2285, 7
  %v2287 = vsub.s32 0, %v2286
  %v2288 = vrot.slane %v2283, %v2287
  %v2289 = vlaneseq
  %v2290 = vshrl.u32 %v2289, 7
  %v2291 = vsub.s32 1, %v2290
  %v2292 = vrot.slane %v2283, %v2291
  %v2293 = vlaneseq
  %v2294 = vshrl.u32 %v2293, 7
  %v2295 = vsub.s32 2, %v2294
  %v2296 = vrot.slane %v2283, %v2295
  %v2370 = vunpack.c.l.b16 %v2212
  %v2371 = vunpack.c.h.b16 %v2212
  %v2372 = vunpack.c.l.b16 %v2213
  %v2373 = vunpack.c.l.b16 %v2214
  %v2374 = vunpack.c.h.b16 %v2214
  %v2375 = vunpack.c.l.b16 %v2215
  %v2376 = vunpack.c.l.b16 %v2216
  %v2377 = vunpack.c.h.b16 %v2216
  %v2378 = vunpack.c.l.b16 %v2217
  %v2379 = vunpack.c.l.b16 %v2218
  %v2380 = vunpack.c.h.b16 %v2218
  %v2381 = vunpack.c.l.b16 %v2219
  %v2382 = vunpack.c.l.b16 %v2220
  %v2383 = vunpack.c.h.b16 %v2220
  %v2384 = vunpack.c.l.b16 %v2221
  %v2385 = vunpack.c.l.b16 %v2222
  %v2386 = vunpack.c.h.b16 %v2222
  %v2387 = vunpack.c.l.b16 %v2223
  %v2388 = vunpack.c.l.b16 %v2224
  %v2389 = vunpack.c.h.b16 %v2224
  %v2390 = vunpack.c.l.b16 %v2225
  %v2391 = vunpack.c.l.b16 %v2226
  %v2392 = vunpack.c.h.b16 %v2226
  %v2393 = vunpack.c.l.b16 %v2227
  %v2394 = vunpack.c.l.b16 %v2228
  %v2395 = vunpack.c.h.b16 %v2228
  %v2396 = vunpack.c.l.b16 %v2229
  %v2397 = vunpack.c.l.b16 %v2230
  %v2398 = vunpack.c.h.b16 %v2230
  %v2399 = vunpack.c.l.b16 %v2231
  %v2400 = vunpack.c.l.b16 %v2232
  %v2401 = vunpack.c.h.b16 %v2232
  %v2402 = vunpack.c.l.b16 %v2233
  %v2403 = vunpack.c.l.b16 %v2234
  %v2404 = vunpack.c.h.b16 %v2234
  %v2405 = vunpack.c.l.b16 %v2235
  %v2406 = vunpack.c.l.b16 %v2236
  %v2407 = vunpack.c.h.b16 %v2236
  %v2408 = vunpack.c.l.b16 %v2237
  %v2409 = vunpack.c.l.b16 %v2238
  %v2410 = vunpack.c.h.b16 %v2238
  %v2411 = vunpack.c.l.b16 %v2239
  %v2412 = vunpack.c.l.b16 %v2240
  %v2413 = vunpack.c.h.b16 %v2240
  %v2414 = vunpack.c.l.b16 %v2241
  %v2415 = vunpack.c.l.b16 %v2242
  %v2416 = vunpack.c.h.b16 %v2242
  %v2417 = vunpack.c.l.b16 %v2243
  %v2418 = vunpack.c.l.b16 %v2244
  %v2419 = vunpack.c.h.b16 %v2244
  %v2420 = vunpack.c.l.b16 %v2245
  %v2421 = vunpack.c.l.b16 %v2246
  %v2422 = vunpack.c.h.b16 %v2246
  %v2423 = vunpack.c.l.b16 %v2247
  %v2424 = vunpack.c.l.b16 %v2248
  %v2425 = vunpack.c.h.b16 %v2248
  %v2426 = vunpack.c.l.b16 %v2249
  %v2427 = vunpack.c.l.b16 %v2250
  %v2428 = vunpack.c.h.b16 %v2250
  %v2429 = vunpack.c.l.b16 %v2251
  %v2430 = vunpack.c.l.b16 %v2252
  %v2431 = vunpack.c.h.b16 %v2252
  %v2432 = vunpack.c.l.b16 %v2253
  %v2433 = vunpack.c.l.b16 %v2254
  %v2434 = vunpack.c.h.b16 %v2254
  %v2435 = vunpack.c.l.b16 %v2255
  %v2436 = vunpack.c.l.b16 %v2256
  %v2437 = vunpack.c.h.b16 %v2256
  %v2438 = vunpack.c.l.b16 %v2257
  %v2439 = vunpack.c.l.b16 %v2258
  %v2440 = vunpack.c.h.b16 %v2258
  %v2441 = vunpack.c.l.b16 %v2259
  %v2442 = vunpack.c.l.b16 %v2260
  %v2443 = vunpack.c.h.b16 %v2260
  %v2444 = vunpack.c.l.b16 %v2261
  %v2445 = vunpack.c.l.b16 %v2262
  %v2446 = vunpack.c.h.b16 %v2262
  %v2447 = vunpack.c.l.b16 %v2263
  %v2448 = vunpack.c.l.b16 %v2264
  %v2449 = vunpack.c.h.b16 %v2264
  %v2450 = vunpack.c.l.b16 %v2265
  %v2451 = vunpack.c.l.b16 %v2266
  %v2452 = vunpack.c.h.b16 %v2266
  %v2453 = vunpack.c.l.b16 %v2267
  %v2454 = vunpack.c.l.b16 %v2268
  %v2455 = vunpack.c.h.b16 %v2268
  %v2456 = vunpack.c.l.b16 %v2269
  %v2457 = vunpack.c.l.b16 %v2270
  %v2458 = vunpack.c.h.b16 %v2270
  %v2459 = vunpack.c.l.b16 %v2271
  %v2460 = vunpack.c.l.b16 %v2272
  %v2461 = vunpack.c.h.b16 %v2272
  %v2462 = vunpack.c.l.b16 %v2273
  %v2463 = vunpack.c.l.b16 %v2274
  %v2464 = vunpack.c.h.b16 %v2274
  %v2465 = vunpack.c.l.b16 %v2275
  %v2466 = vunpack.c.l.b16 %v2276
  %v2467 = vunpack.c.h.b16 %v2276
  %v2468 = vunpack.c.l.b16 %v2277
  %v2469 = vunpack.c.l.b16 %v2278
  %v2470 = vunpack.c.h.b16 %v2278
  %v2471 = vunpack.c.l.b16 %v2279
  %v2472 = vunpack.c.l.b16 %v2280
  %v2473 = vunpack.c.h.b16 %v2280
  %v2474 = vunpack.c.l.b16 %v2281
  %v2475 = vpack.c.b16 %v2373, %v2370
  %v2476 = vpack.c.b16 %v2374, %v2371
  %v2477 = vpack.c.b16 %v2375, %v2372
  %v2478 = vpack.c.b16 %v2379, %v2376
  %v2479 = vpack.c.b16 %v2380, %v2377
  %v2480 = vpack.c.b16 %v2381, %v2378
  %v2481 = vpack.c.b16 %v2385, %v2382
  %v2482 = vpack.c.b16 %v2386, %v2383
  %v2483 = vpack.c.b16 %v2387, %v2384
  %v2484 = vpack.c.b16 %v2391, %v2388
  %v2485 = vpack.c.b16 %v2392, %v2389
  %v2486 = vpack.c.b16 %v2393, %v2390
  %v2487 = vpack.c.b16 %v2397, %v2394
  %v2488 = vpack.c.b16 %v2398, %v2395
  %v2489 = vpack.c.b16 %v2399, %v2396
  %v2490 = vpack.c.b16 %v2403, %v2400
  %v2491 = vpack.c.b16 %v2404, %v2401
  %v2492 = vpack.c.b16 %v2405, %v2402
  %v2493 = vpack.c.b16 %v2409, %v2406
  %v2494 = vpack.c.b16 %v2410, %v2407
  %v2495 = vpack.c.b16 %v2411, %v2408
  %v2496 = vpack.c.b16 %v2415, %v2412
  %v2497 = vpack.c.b16 %v2416, %v2413
  %v2498 = vpack.c.b16 %v2417, %v2414
  %v2499 = vpack.c.b16 %v2421, %v2418
  %v2500 = vpack.c.b16 %v2422, %v2419
  %v2501 = vpack.c.b16 %v2423, %v2420
  %v2502 = vpack.c.b16 %v2427, %v2424
  %v2503 = vpack.c.b16 %v2428, %v2425
  %v2504 = vpack.c.b16 %v2429, %v2426
  %v2505 = vpack.c.b16 %v2433, %v2430
  %v2506 = vpack.c.b16 %v2434, %v2431
  %v2507 = vpack.c.b16 %v2435, %v2432
  %v2508 = vpack.c.b16 %v2439, %v2436
  %v2509 = vpack.c.b16 %v2440, %v2437
  %v2510 = vpack.c.b16 %v2441, %v2438
  %v2511 = vpack.c.b16 %v2445, %v2442
  %v2512 = vpack.c.b16 %v2446, %v2443
  %v2513 = vpack.c.b16 %v2447, %v2444
  %v2514 = vpack.c.b16 %v2451, %v2448
  %v2515 = vpack.c.b16 %v2452, %v2449
  %v2516 = vpack.c.b16 %v2453, %v2450
  %v2517 = vpack.c.b16 %v2457, %v2454
  %v2518 = vpack.c.b16 %v2458, %v2455
  %v2519 = vpack.c.b16 %v2459, %v2456
  %v2520 = vpack.c.b16 %v2463, %v2460
  %v2521 = vpack.c.b16 %v2464, %v2461
  %v2522 = vpack.c.b16 %v2465, %v2462
  %v2523 = vpack.c.b16 %v2469, %v2466
  %v2524 = vpack.c.b16 %v2470, %v2467
  %v2525 = vpack.c.b16 %v2471, %v2468
  %v2526 = vpack.c.b16 %v2472, %v2472
  %v2527 = vpack.c.b16 %v2473, %v2473
  %v2528 = vpack.c.b16 %v2474, %v2474
  %v2581 = vsel %vm1418, %v2189, 0
  %v2584 = vsel %vm1909, %v2526, 0
  %v2587 = vsel %vm1909, %v2527, 0
  %v2590 = vsel %vm1909, %v2528, 0
  %2592 = vmatprep.subr.bf16.mxu0 %v2476
  %2593 = vmatpush1.bf16.msra.mxu0 %v2475
  %2594 = vmatprep.subr.bf16.mxu0 %v2479
  %2595 = vmatpush1.bf16.msra.mxu0 %v2478
  %2596 = vmatprep.subr.bf16.mxu0 %v2482
  %2597 = vmatpush1.bf16.msra.mxu0 %v2481
  %2598 = vmatprep.subr.bf16.mxu0 %v2485
  %2599 = vmatpush1.bf16.msra.mxu0 %v2484
  %2600 = vmatprep.subr.bf16.mxu0 %v2488
  %2601 = vmatpush1.bf16.msra.mxu0 %v2487
  %2602 = vmatprep.subr.bf16.mxu0 %v2491
  %2603 = vmatpush1.bf16.msra.mxu0 %v2490
  %2604 = vmatprep.subr.bf16.mxu0 %v2494
  %2605 = vmatpush1.bf16.msra.mxu0 %v2493
  %2606 = vmatprep.subr.bf16.mxu0 %v2497
  %2607 = vmatpush1.bf16.msra.mxu0 %v2496
  %2608 = vmatprep.subr.bf16.mxu0 %v2500
  %2609 = vmatpush1.bf16.msra.mxu0 %v2499
  %2610 = vmatprep.subr.bf16.mxu0 %v2503
  %2611 = vmatpush1.bf16.msra.mxu0 %v2502
  %2612 = vmatprep.subr.bf16.mxu0 %v2506
  %2613 = vmatpush1.bf16.msra.mxu0 %v2505
  %2614 = vmatprep.subr.bf16.mxu0 %v2509
  %2615 = vmatpush1.bf16.msra.mxu0 %v2508
  %2616 = vmatprep.subr.bf16.mxu0 %v2512
  %2617 = vmatpush1.bf16.msra.mxu0 %v2511
  %2618 = vmatprep.subr.bf16.mxu0 %v2515
  %2619 = vmatpush1.bf16.msra.mxu0 %v2514
  %2620 = vmatprep.subr.bf16.mxu0 %v2518
  %2621 = vmatpush1.bf16.msra.mxu0 %v2517
  %2622 = vmatprep.subr.bf16.mxu0 %v2521
  %2623 = vmatpush1.bf16.msra.mxu0 %v2520
  %2624 = vmatprep.mubr.bf16.mxu0 %v2188
  %2625 = vmatmul.mubr.bf16.gmra.mrb[0].mxu0 %v2187
  %v2626 = vpop.f32.mrb[0].mxu0
  %v2627 = vadd.f32 %v2288, %v2626
  %v2628 = vpop.f32.mrb[0].mxu0
  %v2629 = vadd.f32 %v2292, %v2628
  %v2630 = vpop.f32.mrb[0].mxu0
  %v2631 = vadd.f32 %v2288, %v2630
  %v2632 = vpop.f32.mrb[0].mxu0
  %v2633 = vadd.f32 %v2292, %v2632
  %2634 = vdwg.mxu0
  %2635 = vmatprep.subr.bf16.mxu0 %v2524
  %2636 = vmatpush1.bf16.msra.mxu0 %v2523
  %2637 = vmatprep.subr.bf16.mxu0 %v2587
  %2638 = vmatpush1.bf16.msra.mxu0 %v2584
  %2639 = vmatprep.subr.bf16.mxu0 0
  %2640 = vmatpush1.bf16.msra.mxu0 0
  %2641 = vmatprep.subr.bf16.mxu0 0
  %2642 = vmatpush1.bf16.msra.mxu0 0
  %2643 = vmatprep.subr.bf16.mxu0 0
  %2644 = vmatpush1.bf16.msra.mxu0 0
  %2645 = vmatprep.subr.bf16.mxu0 0
  %2646 = vmatpush1.bf16.msra.mxu0 0
  %2647 = vmatprep.subr.bf16.mxu0 0
  %2648 = vmatpush1.bf16.msra.mxu0 0
  %2649 = vmatprep.subr.bf16.mxu0 0
  %2650 = vmatpush1.bf16.msra.mxu0 0
  %2651 = vmatprep.subr.bf16.mxu0 0
  %2652 = vmatpush1.bf16.msra.mxu0 0
  %2653 = vmatprep.subr.bf16.mxu0 0
  %2654 = vmatpush1.bf16.msra.mxu0 0
  %2655 = vmatprep.subr.bf16.mxu0 0
  %2656 = vmatpush1.bf16.msra.mxu0 0
  %2657 = vmatprep.subr.bf16.mxu0 0
  %2658 = vmatpush1.bf16.msra.mxu0 0
  %2659 = vmatprep.subr.bf16.mxu0 0
  %2660 = vmatpush1.bf16.msra.mxu0 0
  %2661 = vmatprep.subr.bf16.mxu0 0
  %2662 = vmatpush1.bf16.msra.mxu0 0
  %2663 = vmatprep.subr.bf16.mxu0 0
  %2664 = vmatpush1.bf16.msra.mxu0 0
  %2665 = vmatprep.subr.bf16.mxu0 0
  %2666 = vmatpush1.bf16.msra.mxu0 0
  %2667 = vmatprep.mubr.bf16.mxu0 0
  %2668 = vmatmul.mubr.bf16.gmra.mrb[0].mxu0 %v2581
  %v2669 = vpop.f32.mrb[0].mxu0
  %v2670 = vadd.f32 %v2627, %v2669
  %v2671 = vpop.f32.mrb[0].mxu0
  %v2672 = vadd.f32 %v2629, %v2671
  %v2673 = vpop.f32.mrb[0].mxu0
  %v2674 = vadd.f32 %v2631, %v2673
  %v2675 = vpop.f32.mrb[0].mxu0
  %v2676 = vadd.f32 %v2633, %v2675
  %2677 = vdwg.mxu0
  %2678 = vmatprep.subr.bf16.mxu0 0
  %2679 = vmatpush1.bf16.msra.mxu0 %v2477
  %2680 = vmatprep.subr.bf16.mxu0 0
  %2681 = vmatpush1.bf16.msra.mxu0 %v2480
  %2682 = vmatprep.subr.bf16.mxu0 0
  %2683 = vmatpush1.bf16.msra.mxu0 %v2483
  %2684 = vmatprep.subr.bf16.mxu0 0
  %2685 = vmatpush1.bf16.msra.mxu0 %v2486
  %2686 = vmatprep.subr.bf16.mxu0 0
  %2687 = vmatpush1.bf16.msra.mxu0 %v2489
  %2688 = vmatprep.subr.bf16.mxu0 0
  %2689 = vmatpush1.bf16.msra.mxu0 %v2492
  %2690 = vmatprep.subr.bf16.mxu0 0
  %2691 = vmatpush1.bf16.msra.mxu0 %v2495
  %2692 = vmatprep.subr.bf16.mxu0 0
  %2693 = vmatpush1.bf16.msra.mxu0 %v2498
  %2694 = vmatprep.subr.bf16.mxu0 0
  %2695 = vmatpush1.bf16.msra.mxu0 %v2501
  %2696 = vmatprep.subr.bf16.mxu0 0
  %2697 = vmatpush1.bf16.msra.mxu0 %v2504
  %2698 = vmatprep.subr.bf16.mxu0 0
  %2699 = vmatpush1.bf16.msra.mxu0 %v2507
  %2700 = vmatprep.subr.bf16.mxu0 0
  %2701 = vmatpush1.bf16.msra.mxu0 %v2510
  %2702 = vmatprep.subr.bf16.mxu0 0
  %2703 = vmatpush1.bf16.msra.mxu0 %v2513
  %2704 = vmatprep.subr.bf16.mxu0 0
  %2705 = vmatpush1.bf16.msra.mxu0 %v2516
  %2706 = vmatprep.subr.bf16.mxu0 0
  %2707 = vmatpush1.bf16.msra.mxu0 %v2519
  %2708 = vmatprep.subr.bf16.mxu0 0
  %2709 = vmatpush1.bf16.msra.mxu0 %v2522
  %2710 = vmatprep.mubr.bf16.mxu0 %v2188
  %2711 = vmatmul.mubr.bf16.gmra.mrb[0].mxu0 %v2187
  %v2712 = vpop.f32.mrb[0].mxu0
  %v2713 = vadd.f32 %v2296, %v2712
  %v2714 = vpop.f32.mrb[0].mxu0
  %v2715 = vpop.f32.mrb[0].mxu0
  %v2716 = vadd.f32 %v2296, %v2715
  %v2717 = vpop.f32.mrb[0].mxu0
  %2718 = vdwg.mxu0
  %2719 = vmatprep.subr.bf16.mxu0 0
  %2720 = vmatpush1.bf16.msra.mxu0 %v2525
  %2721 = vmatprep.subr.bf16.mxu0 0
  %2722 = vmatpush1.bf16.msra.mxu0 %v2590
  %2723 = vmatprep.subr.bf16.mxu0 0
  %2724 = vmatpush1.bf16.msra.mxu0 0
  %2725 = vmatprep.subr.bf16.mxu0 0
  %2726 = vmatpush1.bf16.msra.mxu0 0
  %2727 = vmatprep.subr.bf16.mxu0 0
  %2728 = vmatpush1.bf16.msra.mxu0 0
  %2729 = vmatprep.subr.bf16.mxu0 0
  %2730 = vmatpush1.bf16.msra.mxu0 0
  %2731 = vmatprep.subr.bf16.mxu0 0
  %2732 = vmatpush1.bf16.msra.mxu0 0
  %2733 = vmatprep.subr.bf16.mxu0 0
  %2734 = vmatpush1.bf16.msra.mxu0 0
  %2735 = vmatprep.subr.bf16.mxu0 0
  %2736 = vmatpush1.bf16.msra.mxu0 0
  %2737 = vmatprep.subr.bf16.mxu0 0
  %2738 = vmatpush1.bf16.msra.mxu0 0
  %2739 = vmatprep.subr.bf16.mxu0 0
  %2740 = vmatpush1.bf16.msra.mxu0 0
  %2741 = vmatprep.subr.bf16.mxu0 0
  %2742 = vmatpush1.bf16.msra.mxu0 0
  %2743 = vmatprep.subr.bf16.mxu0 0
  %2744 = vmatpush1.bf16.msra.mxu0 0
  %2745 = vmatprep.subr.bf16.mxu0 0
  %2746 = vmatpush1.bf16.msra.mxu0 0
  %2747 = vmatprep.subr.bf16.mxu0 0
  %2748 = vmatpush1.bf16.msra.mxu0 0
  %2749 = vmatprep.subr.bf16.mxu0 0
  %2750 = vmatpush1.bf16.msra.mxu0 0
  %2751 = vmatprep.mubr.bf16.mxu0 0
  %2752 = vmatmul.mubr.bf16.gmra.mrb[0].mxu0 %v2581
  %v2753 = vpop.f32.mrb[0].mxu0
  %v2754 = vadd.f32 %v2713, %v2753
  %v2755 = vpop.f32.mrb[0].mxu0
  %v2756 = vpop.f32.mrb[0].mxu0
  %v2757 = vadd.f32 %v2716, %v2756
  %v2758 = vpop.f32.mrb[0].mxu0
  %2759 = vdwg.mxu0
  %v2760 = vmax.f32 %v2670, 0.0
  %v2761 = vmax.f32 %v2672, 0.0
  %v2762 = vmax.f32 %v2754, 0.0
  %v2763 = vmax.f32 %v2674, 0.0
  %v2764 = vmax.f32 %v2676, 0.0
  %v2765 = vmax.f32 %v2757, 0.0
  %v2766 = vadd.f32 %v2760, %v2761
  %v2767 = vsel %vm1418, %v2762, 0.0
  %v2768 = vadd.f32 %v2766, %v2767
  %2769 = vadd.xlane.f32.xlu0 %v2768
  %v2770 = vpop.xlane.xlu0 %2769
  %v2771 = vadd.f32 %v2763, %v2764
  %v2772 = vsel %vm1418, %v2765, 0.0
  %v2773 = vadd.f32 %v2771, %v2772
  %2774 = vadd.xlane.f32.xlu0 %v2773
  %v2775 = vpop.xlane.xlu0 %2774
  %v2776 = vmul.f32 %v2770, %v1428
  %v2777 = vmul.f32 %v2775, %v1428
  %v2778 = vsub.f32 %v2760, %v2776
  %v2779 = vsub.f32 %v2761, %v2776
  %v2780 = vsub.f32 %v2762, %v2776
  %v2781 = vsub.f32 %v2763, %v2777
  %v2782 = vsub.f32 %v2764, %v2777
  %v2783 = vsub.f32 %v2765, %v2777
  %v2784 = vmul.f32 %v2778, %v2778
  %v2785 = vmul.f32 %v2779, %v2779
  %v2786 = vmul.f32 %v2780, %v2780
  %v2787 = vmul.f32 %v2781, %v2781
  %v2788 = vmul.f32 %v2782, %v2782
  %v2789 = vmul.f32 %v2783, %v2783
  %v2790 = vadd.f32 %v2784, %v2785
  %v2791 = vsel %vm1418, %v2786, 0.0
  %v2792 = vadd.f32 %v2790, %v2791
  %2793 = vadd.xlane.f32.xlu0 %v2792
  %v2794 = vpop.xlane.xlu0 %2793
  %v2795 = vadd.f32 %v2787, %v2788
  %v2796 = vsel %vm1418, %v2789, 0.0
  %v2797 = vadd.f32 %v2795, %v2796
  %2798 = vadd.xlane.f32.xlu0 %v2797
  %v2799 = vpop.xlane.xlu0 %2798
  %v2800 = vmul.f32 %v2794, %v1428
  %v2801 = vmul.f32 %v2799, %v1428
  %v2802 = vadd.f32 %v2800, 1e-05
  %v2803 = vadd.f32 %v2801, 1e-05
  %v2804 = vrsqrt.pop %v2802
  %v2805 = vrsqrt.pop %v2803
  %s2806 = scalar_lea.vmem %s2282, 1
  %v2807 = vld [vmem:[%s2806] ss:$4 sm:$0x7]
  %v2809 = vlaneseq
  %v2810 = vshrl.u32 %v2809, 7
  %v2811 = vsub.s32 0, %v2810
  %v2812 = vrot.slane %v2807, %v2811
  %v2813 = vlaneseq
  %v2814 = vshrl.u32 %v2813, 7
  %v2815 = vsub.s32 1, %v2814
  %v2816 = vrot.slane %v2807, %v2815
  %v2817 = vlaneseq
  %v2818 = vshrl.u32 %v2817, 7
  %v2819 = vsub.s32 2, %v2818
  %v2820 = vrot.slane %v2807, %v2819
  %v2824 = vmul.f32 %v2804, %v2812
  %v2825 = vmul.f32 %v2804, %v2816
  %v2826 = vmul.f32 %v2804, %v2820
  %v2827 = vmul.f32 %v2805, %v2812
  %v2828 = vmul.f32 %v2805, %v2816
  %v2829 = vmul.f32 %v2805, %v2820
  %v2830 = vmul.f32 %v2778, %v2824
  %v2831 = vmul.f32 %v2779, %v2825
  %v2832 = vmul.f32 %v2780, %v2826
  %v2833 = vmul.f32 %v2781, %v2827
  %v2834 = vmul.f32 %v2782, %v2828
  %v2835 = vmul.f32 %v2783, %v2829
  %s2836 = scalar_lea.vmem %s2282, 2
  %v2837 = vld [vmem:[%s2836] ss:$4 sm:$0x7]
  %v2839 = vlaneseq
  %v2840 = vshrl.u32 %v2839, 7
  %v2841 = vsub.s32 0, %v2840
  %v2842 = vrot.slane %v2837, %v2841
  %v2843 = vlaneseq
  %v2844 = vshrl.u32 %v2843, 7
  %v2845 = vsub.s32 1, %v2844
  %v2846 = vrot.slane %v2837, %v2845
  %v2847 = vlaneseq
  %v2848 = vshrl.u32 %v2847, 7
  %v2849 = vsub.s32 2, %v2848
  %v2850 = vrot.slane %v2837, %v2849
  %v2854 = vadd.f32 %v2830, %v2842
  %v2855 = vadd.f32 %v2831, %v2846
  %v2856 = vadd.f32 %v2832, %v2850
  %v2857 = vadd.f32 %v2833, %v2842
  %v2858 = vadd.f32 %v2834, %v2846
  %v2859 = vadd.f32 %v2835, %v2850
  %v2860 = vpack.c.bf16 %v2857, %v2854
  %v2861 = vpack.c.bf16 %v2858, %v2855
  %v2862 = vpack.c.bf16 %v2859, %v2856
  %v2866 = vunpack.c.l.b16 %v2860
  %v2867 = vunpack.c.l.b16 %v2861
  %v2868 = vunpack.c.l.b16 %v2862
  %v2869 = vunpack.c.h.b16 %v2860
  %v2870 = vunpack.c.h.b16 %v2861
  %v2871 = vunpack.c.h.b16 %v2862
  %v2872 = vpack.c.b16 %v2867, %v2866
  %v2873 = vpack.c.b16 %v2868, %v2868
  %v2874 = vpack.c.b16 %v2870, %v2869
  %v2875 = vpack.c.b16 %v2871, %v2871
  %2880 = vst [vmem:[%s9] sm:$0xff] %v2872
  %2881 = vst.msk [vmem:[%s9 + $0x8] sm:$0xf] %vm1534, %v2873
  %2882 = vst [vmem:[%s9 + $0xc] sm:$0xff] %v2874
  %2883 = vst.msk [vmem:[%s9 + $0x14] sm:$0xf] %vm1534, %v2875
  %s2884 = scalar_lea.vmem %s2, 840
  %v2885 = vld [vmem:[%s2884] sm:$0xff]
  %v2886 = vld [vmem:[%s2884 + $0x8] sm:$0xf]
  %v2887 = vld [vmem:[%s2884 + $0xc] sm:$0xff]
  %v2888 = vld [vmem:[%s2884 + $0x14] sm:$0xf]
  %v2889 = vld [vmem:[%s2884 + $0x18] sm:$0xff]
  %v2890 = vld [vmem:[%s2884 + $0x20] sm:$0xf]
  %v2891 = vld [vmem:[%s2884 + $0x24] sm:$0xff]
  %v2892 = vld [vmem:[%s2884 + $0x2c] sm:$0xf]
  %v2893 = vld [vmem:[%s2884 + $0x30] sm:$0xff]
  %v2894 = vld [vmem:[%s2884 + $0x38] sm:$0xf]
  %v2895 = vld [vmem:[%s2884 + $0x3c] sm:$0xff]
  %v2896 = vld [vmem:[%s2884 + $0x44] sm:$0xf]
  %v2897 = vld [vmem:[%s2884 + $0x48] sm:$0xff]
  %v2898 = vld [vmem:[%s2884 + $0x50] sm:$0xf]
  %v2899 = vld [vmem:[%s2884 + $0x54] sm:$0xff]
  %v2900 = vld [vmem:[%s2884 + $0x5c] sm:$0xf]
  %v2901 = vld [vmem:[%s2884 + $0x60] sm:$0xff]
  %v2902 = vld [vmem:[%s2884 + $0x68] sm:$0xf]
  %v2903 = vld [vmem:[%s2884 + $0x6c] sm:$0xff]
  %v2904 = vld [vmem:[%s2884 + $0x74] sm:$0xf]
  %v2905 = vld [vmem:[%s2884 + $0x78] sm:$0xff]
  %v2906 = vld [vmem:[%s2884 + $0x80] sm:$0xf]
  %v2907 = vld [vmem:[%s2884 + $0x84] sm:$0xff]
  %v2908 = vld [vmem:[%s2884 + $0x8c] sm:$0xf]
  %v2909 = vld [vmem:[%s2884 + $0x90] sm:$0xff]
  %v2910 = vld [vmem:[%s2884 + $0x98] sm:$0xf]
  %v2911 = vld [vmem:[%s2884 + $0x9c] sm:$0xff]
  %v2912 = vld [vmem:[%s2884 + $0xa4] sm:$0xf]
  %v2913 = vld [vmem:[%s2884 + $0xa8] sm:$0xff]
  %v2914 = vld [vmem:[%s2884 + $0xb0] sm:$0xf]
  %v2915 = vld [vmem:[%s2884 + $0xb4] sm:$0xff]
  %v2916 = vld [vmem:[%s2884 + $0xbc] sm:$0xf]
  %v2917 = vld [vmem:[%s2884 + $0xc0] sm:$0xff]
  %v2918 = vld [vmem:[%s2884 + $0xc8] sm:$0xf]
  %v2919 = vld [vmem:[%s2884 + $0xcc] sm:$0xff]
  %v2920 = vld [vmem:[%s2884 + $0xd4] sm:$0xf]
  %v2921 = vld [vmem:[%s2884 + $0xd8] sm:$0xff]
  %v2922 = vld [vmem:[%s2884 + $0xe0] sm:$0xf]
  %v2923 = vld [vmem:[%s2884 + $0xe4] sm:$0xff]
  %v2924 = vld [vmem:[%s2884 + $0xec] sm:$0xf]
  %v2925 = vld [vmem:[%s2884 + $0xf0] sm:$0xff]
  %v2926 = vld [vmem:[%s2884 + $0xf8] sm:$0xf]
  %v2927 = vld [vmem:[%s2884 + $0xfc] sm:$0xff]
  %v2928 = vld [vmem:[%s2884 + $0x104] sm:$0xf]
  %v2929 = vld [vmem:[%s2884 + $0x108] sm:$0xff]
  %v2930 = vld [vmem:[%s2884 + $0x110] sm:$0xf]
  %v2931 = vld [vmem:[%s2884 + $0x114] sm:$0xff]
  %v2932 = vld [vmem:[%s2884 + $0x11c] sm:$0xf]
  %v2933 = vld [vmem:[%s2884 + $0x120] sm:$0xff]
  %v2934 = vld [vmem:[%s2884 + $0x128] sm:$0xf]
  %v2935 = vld [vmem:[%s2884 + $0x12c] sm:$0xff]
  %v2936 = vld [vmem:[%s2884 + $0x134] sm:$0xf]
  %v2937 = vld [vmem:[%s2884 + $0x138] sm:$0xff]
  %v2938 = vld [vmem:[%s2884 + $0x140] sm:$0xf]
  %v2939 = vld [vmem:[%s2884 + $0x144] sm:$0xff]
  %v2940 = vld [vmem:[%s2884 + $0x14c] sm:$0xf]
  %v2941 = vld [vmem:[%s2884 + $0x150] sm:$0xff]
  %v2942 = vld [vmem:[%s2884 + $0x158] sm:$0xf]
  %v2943 = vld [vmem:[%s2884 + $0x15c] sm:$0xff]
  %v2944 = vld [vmem:[%s2884 + $0x164] sm:$0xf]
  %v2945 = vld [vmem:[%s2884 + $0x168] sm:$0xff]
  %v2946 = vld [vmem:[%s2884 + $0x170] sm:$0xf]
  %v2947 = vld [vmem:[%s2884 + $0x174] sm:$0xff]
  %v2948 = vld [vmem:[%s2884 + $0x17c] sm:$0xf]
  %v2949 = vld [vmem:[%s2884 + $0x180] sm:$0xff]
  %v2950 = vld [vmem:[%s2884 + $0x188] sm:$0xf]
  %v2951 = vld [vmem:[%s2884 + $0x18c] sm:$0xff]
  %v2952 = vld [vmem:[%s2884 + $0x194] sm:$0xf]
  %v2953 = vld [vmem:[%s2884 + $0x198] sm:$0x77]
  %v2954 = vld [vmem:[%s2884 + $0x1a0] sm:$0x7]
  %s2955 = scalar_lea.vmem %s3, 36
  %v2956 = vld [vmem:[%s2955] ss:$4 sm:$0x7]
  %v2958 = vlaneseq
  %v2959 = vshrl.u32 %v2958, 7
  %v2960 = vsub.s32 0, %v2959
  %v2961 = vrot.slane %v2956, %v2960
  %v2962 = vlaneseq
  %v2963 = vshrl.u32 %v2962, 7
  %v2964 = vsub.s32 1, %v2963
  %v2965 = vrot.slane %v2956, %v2964
  %v2966 = vlaneseq
  %v2967 = vshrl.u32 %v2966, 7
  %v2968 = vsub.s32 2, %v2967
  %v2969 = vrot.slane %v2956, %v2968
  %v3043 = vunpack.c.l.b16 %v2885
  %v3044 = vunpack.c.h.b16 %v2885
  %v3045 = vunpack.c.l.b16 %v2886
  %v3046 = vunpack.c.l.b16 %v2887
  %v3047 = vunpack.c.h.b16 %v2887
  %v3048 = vunpack.c.l.b16 %v2888
  %v3049 = vunpack.c.l.b16 %v2889
  %v3050 = vunpack.c.h.b16 %v2889
  %v3051 = vunpack.c.l.b16 %v2890
  %v3052 = vunpack.c.l.b16 %v2891
  %v3053 = vunpack.c.h.b16 %v2891
  %v3054 = vunpack.c.l.b16 %v2892
  %v3055 = vunpack.c.l.b16 %v2893
  %v3056 = vunpack.c.h.b16 %v2893
  %v3057 = vunpack.c.l.b16 %v2894
  %v3058 = vunpack.c.l.b16 %v2895
  %v3059 = vunpack.c.h.b16 %v2895
  %v3060 = vunpack.c.l.b16 %v2896
  %v3061 = vunpack.c.l.b16 %v2897
  %v3062 = vunpack.c.h.b16 %v2897
  %v3063 = vunpack.c.l.b16 %v2898
  %v3064 = vunpack.c.l.b16 %v2899
  %v3065 = vunpack.c.h.b16 %v2899
  %v3066 = vunpack.c.l.b16 %v2900
  %v3067 = vunpack.c.l.b16 %v2901
  %v3068 = vunpack.c.h.b16 %v2901
  %v3069 = vunpack.c.l.b16 %v2902
  %v3070 = vunpack.c.l.b16 %v2903
  %v3071 = vunpack.c.h.b16 %v2903
  %v3072 = vunpack.c.l.b16 %v2904
  %v3073 = vunpack.c.l.b16 %v2905
  %v3074 = vunpack.c.h.b16 %v2905
  %v3075 = vunpack.c.l.b16 %v2906
  %v3076 = vunpack.c.l.b16 %v2907
  %v3077 = vunpack.c.h.b16 %v2907
  %v3078 = vunpack.c.l.b16 %v2908
  %v3079 = vunpack.c.l.b16 %v2909
  %v3080 = vunpack.c.h.b16 %v2909
  %v3081 = vunpack.c.l.b16 %v2910
  %v3082 = vunpack.c.l.b16 %v2911
  %v3083 = vunpack.c.h.b16 %v2911
  %v3084 = vunpack.c.l.b16 %v2912
  %v3085 = vunpack.c.l.b16 %v2913
  %v3086 = vunpack.c.h.b16 %v2913
  %v3087 = vunpack.c.l.b16 %v2914
  %v3088 = vunpack.c.l.b16 %v2915
  %v3089 = vunpack.c.h.b16 %v2915
  %v3090 = vunpack.c.l.b16 %v2916
  %v3091 = vunpack.c.l.b16 %v2917
  %v3092 = vunpack.c.h.b16 %v2917
  %v3093 = vunpack.c.l.b16 %v2918
  %v3094 = vunpack.c.l.b16 %v2919
  %v3095 = vunpack.c.h.b16 %v2919
  %v3096 = vunpack.c.l.b16 %v2920
  %v3097 = vunpack.c.l.b16 %v2921
  %v3098 = vunpack.c.h.b16 %v2921
  %v3099 = vunpack.c.l.b16 %v2922
  %v3100 = vunpack.c.l.b16 %v2923
  %v3101 = vunpack.c.h.b16 %v2923
  %v3102 = vunpack.c.l.b16 %v2924
  %v3103 = vunpack.c.l.b16 %v2925
  %v3104 = vunpack.c.h.b16 %v2925
  %v3105 = vunpack.c.l.b16 %v2926
  %v3106 = vunpack.c.l.b16 %v2927
  %v3107 = vunpack.c.h.b16 %v2927
  %v3108 = vunpack.c.l.b16 %v2928
  %v3109 = vunpack.c.l.b16 %v2929
  %v3110 = vunpack.c.h.b16 %v2929
  %v3111 = vunpack.c.l.b16 %v2930
  %v3112 = vunpack.c.l.b16 %v2931
  %v3113 = vunpack.c.h.b16 %v2931
  %v3114 = vunpack.c.l.b16 %v2932
  %v3115 = vunpack.c.l.b16 %v2933
  %v3116 = vunpack.c.h.b16 %v2933
  %v3117 = vunpack.c.l.b16 %v2934
  %v3118 = vunpack.c.l.b16 %v2935
  %v3119 = vunpack.c.h.b16 %v2935
  %v3120 = vunpack.c.l.b16 %v2936
  %v3121 = vunpack.c.l.b16 %v2937
  %v3122 = vunpack.c.h.b16 %v2937
  %v3123 = vunpack.c.l.b16 %v2938
  %v3124 = vunpack.c.l.b16 %v2939
  %v3125 = vunpack.c.h.b16 %v2939
  %v3126 = vunpack.c.l.b16 %v2940
  %v3127 = vunpack.c.l.b16 %v2941
  %v3128 = vunpack.c.h.b16 %v2941
  %v3129 = vunpack.c.l.b16 %v2942
  %v3130 = vunpack.c.l.b16 %v2943
  %v3131 = vunpack.c.h.b16 %v2943
  %v3132 = vunpack.c.l.b16 %v2944
  %v3133 = vunpack.c.l.b16 %v2945
  %v3134 = vunpack.c.h.b16 %v2945
  %v3135 = vunpack.c.l.b16 %v2946
  %v3136 = vunpack.c.l.b16 %v2947
  %v3137 = vunpack.c.h.b16 %v2947
  %v3138 = vunpack.c.l.b16 %v2948
  %v3139 = vunpack.c.l.b16 %v2949
  %v3140 = vunpack.c.h.b16 %v2949
  %v3141 = vunpack.c.l.b16 %v2950
  %v3142 = vunpack.c.l.b16 %v2951
  %v3143 = vunpack.c.h.b16 %v2951
  %v3144 = vunpack.c.l.b16 %v2952
  %v3145 = vunpack.c.l.b16 %v2953
  %v3146 = vunpack.c.h.b16 %v2953
  %v3147 = vunpack.c.l.b16 %v2954
  %v3148 = vpack.c.b16 %v3046, %v3043
  %v3149 = vpack.c.b16 %v3047, %v3044
  %v3150 = vpack.c.b16 %v3048, %v3045
  %v3151 = vpack.c.b16 %v3052, %v3049
  %v3152 = vpack.c.b16 %v3053, %v3050
  %v3153 = vpack.c.b16 %v3054, %v3051
  %v3154 = vpack.c.b16 %v3058, %v3055
  %v3155 = vpack.c.b16 %v3059, %v3056
  %v3156 = vpack.c.b16 %v3060, %v3057
  %v3157 = vpack.c.b16 %v3064, %v3061
  %v3158 = vpack.c.b16 %v3065, %v3062
  %v3159 = vpack.c.b16 %v3066, %v3063
  %v3160 = vpack.c.b16 %v3070, %v3067
  %v3161 = vpack.c.b16 %v3071, %v3068
  %v3162 = vpack.c.b16 %v3072, %v3069
  %v3163 = vpack.c.b16 %v3076, %v3073
  %v3164 = vpack.c.b16 %v3077, %v3074
  %v3165 = vpack.c.b16 %v3078, %v3075
  %v3166 = vpack.c.b16 %v3082, %v3079
  %v3167 = vpack.c.b16 %v3083, %v3080
  %v3168 = vpack.c.b16 %v3084, %v3081
  %v3169 = vpack.c.b16 %v3088, %v3085
  %v3170 = vpack.c.b16 %v3089, %v3086
  %v3171 = vpack.c.b16 %v3090, %v3087
  %v3172 = vpack.c.b16 %v3094, %v3091
  %v3173 = vpack.c.b16 %v3095, %v3092
  %v3174 = vpack.c.b16 %v3096, %v3093
  %v3175 = vpack.c.b16 %v3100, %v3097
  %v3176 = vpack.c.b16 %v3101, %v3098
  %v3177 = vpack.c.b16 %v3102, %v3099
  %v3178 = vpack.c.b16 %v3106, %v3103
  %v3179 = vpack.c.b16 %v3107, %v3104
  %v3180 = vpack.c.b16 %v3108, %v3105
  %v3181 = vpack.c.b16 %v3112, %v3109
  %v3182 = vpack.c.b16 %v3113, %v3110
  %v3183 = vpack.c.b16 %v3114, %v3111
  %v3184 = vpack.c.b16 %v3118, %v3115
  %v3185 = vpack.c.b16 %v3119, %v3116
  %v3186 = vpack.c.b16 %v3120, %v3117
  %v3187 = vpack.c.b16 %v3124, %v3121
  %v3188 = vpack.c.b16 %v3125, %v3122
  %v3189 = vpack.c.b16 %v3126, %v3123
  %v3190 = vpack.c.b16 %v3130, %v3127
  %v3191 = vpack.c.b16 %v3131, %v3128
  %v3192 = vpack.c.b16 %v3132, %v3129
  %v3193 = vpack.c.b16 %v3136, %v3133
  %v3194 = vpack.c.b16 %v3137, %v3134
  %v3195 = vpack.c.b16 %v3138, %v3135
  %v3196 = vpack.c.b16 %v3142, %v3139
  %v3197 = vpack.c.b16 %v3143, %v3140
  %v3198 = vpack.c.b16 %v3144, %v3141
  %v3199 = vpack.c.b16 %v3145, %v3145
  %v3200 = vpack.c.b16 %v3146, %v3146
  %v3201 = vpack.c.b16 %v3147, %v3147
  %v3254 = vsel %vm1418, %v2862, 0
  %v3257 = vsel %vm1909, %v3199, 0
  %v3260 = vsel %vm1909, %v3200, 0
  %v3263 = vsel %vm1909, %v3201, 0
  %3265 = vmatprep.subr.bf16.mxu0 %v3149
  %3266 = vmatpush1.bf16.msra.mxu0 %v3148
  %3267 = vmatprep.subr.bf16.mxu0 %v3152
  %3268 = vmatpush1.bf16.msra.mxu0 %v3151
  %3269 = vmatprep.subr.bf16.mxu0 %v3155
  %3270 = vmatpush1.bf16.msra.mxu0 %v3154
  %3271 = vmatprep.subr.bf16.mxu0 %v3158
  %3272 = vmatpush1.bf16.msra.mxu0 %v3157
  %3273 = vmatprep.subr.bf16.mxu0 %v3161
  %3274 = vmatpush1.bf16.msra.mxu0 %v3160
  %3275 = vmatprep.subr.bf16.mxu0 %v3164
  %3276 = vmatpush1.bf16.msra.mxu0 %v3163
  %3277 = vmatprep.subr.bf16.mxu0 %v3167
  %3278 = vmatpush1.bf16.msra.mxu0 %v3166
  %3279 = vmatprep.subr.bf16.mxu0 %v3170
  %3280 = vmatpush1.bf16.msra.mxu0 %v3169
  %3281 = vmatprep.subr.bf16.mxu0 %v3173
  %3282 = vmatpush1.bf16.msra.mxu0 %v3172
  %3283 = vmatprep.subr.bf16.mxu0 %v3176
  %3284 = vmatpush1.bf16.msra.mxu0 %v3175
  %3285 = vmatprep.subr.bf16.mxu0 %v3179
  %3286 = vmatpush1.bf16.msra.mxu0 %v3178
  %3287 = vmatprep.subr.bf16.mxu0 %v3182
  %3288 = vmatpush1.bf16.msra.mxu0 %v3181
  %3289 = vmatprep.subr.bf16.mxu0 %v3185
  %3290 = vmatpush1.bf16.msra.mxu0 %v3184
  %3291 = vmatprep.subr.bf16.mxu0 %v3188
  %3292 = vmatpush1.bf16.msra.mxu0 %v3187
  %3293 = vmatprep.subr.bf16.mxu0 %v3191
  %3294 = vmatpush1.bf16.msra.mxu0 %v3190
  %3295 = vmatprep.subr.bf16.mxu0 %v3194
  %3296 = vmatpush1.bf16.msra.mxu0 %v3193
  %3297 = vmatprep.mubr.bf16.mxu0 %v2861
  %3298 = vmatmul.mubr.bf16.gmra.mrb[0].mxu0 %v2860
  %v3299 = vpop.f32.mrb[0].mxu0
  %v3300 = vadd.f32 %v2961, %v3299
  %v3301 = vpop.f32.mrb[0].mxu0
  %v3302 = vadd.f32 %v2965, %v3301
  %v3303 = vpop.f32.mrb[0].mxu0
  %v3304 = vadd.f32 %v2961, %v3303
  %v3305 = vpop.f32.mrb[0].mxu0
  %v3306 = vadd.f32 %v2965, %v3305
  %3307 = vdwg.mxu0
  %3308 = vmatprep.subr.bf16.mxu0 %v3197
  %3309 = vmatpush1.bf16.msra.mxu0 %v3196
  %3310 = vmatprep.subr.bf16.mxu0 %v3260
  %3311 = vmatpush1.bf16.msra.mxu0 %v3257
  %3312 = vmatprep.subr.bf16.mxu0 0
  %3313 = vmatpush1.bf16.msra.mxu0 0
  %3314 = vmatprep.subr.bf16.mxu0 0
  %3315 = vmatpush1.bf16.msra.mxu0 0
  %3316 = vmatprep.subr.bf16.mxu0 0
  %3317 = vmatpush1.bf16.msra.mxu0 0
  %3318 = vmatprep.subr.bf16.mxu0 0
  %3319 = vmatpush1.bf16.msra.mxu0 0
  %3320 = vmatprep.subr.bf16.mxu0 0
  %3321 = vmatpush1.bf16.msra.mxu0 0
  %3322 = vmatprep.subr.bf16.mxu0 0
  %3323 = vmatpush1.bf16.msra.mxu0 0
  %3324 = vmatprep.subr.bf16.mxu0 0
  %3325 = vmatpush1.bf16.msra.mxu0 0
  %3326 = vmatprep.subr.bf16.mxu0 0
  %3327 = vmatpush1.bf16.msra.mxu0 0
  %3328 = vmatprep.subr.bf16.mxu0 0
  %3329 = vmatpush1.bf16.msra.mxu0 0
  %3330 = vmatprep.subr.bf16.mxu0 0
  %3331 = vmatpush1.bf16.msra.mxu0 0
  %3332 = vmatprep.subr.bf16.mxu0 0
  %3333 = vmatpush1.bf16.msra.mxu0 0
  %3334 = vmatprep.subr.bf16.mxu0 0
  %3335 = vmatpush1.bf16.msra.mxu0 0
  %3336 = vmatprep.subr.bf16.mxu0 0
  %3337 = vmatpush1.bf16.msra.mxu0 0
  %3338 = vmatprep.subr.bf16.mxu0 0
  %3339 = vmatpush1.bf16.msra.mxu0 0
  %3340 = vmatprep.mubr.bf16.mxu0 0
  %3341 = vmatmul.mubr.bf16.gmra.mrb[0].mxu0 %v3254
  %v3342 = vpop.f32.mrb[0].mxu0
  %v3343 = vadd.f32 %v3300, %v3342
  %v3344 = vpop.f32.mrb[0].mxu0
  %v3345 = vadd.f32 %v3302, %v3344
  %v3346 = vpop.f32.mrb[0].mxu0
  %v3347 = vadd.f32 %v3304, %v3346
  %v3348 = vpop.f32.mrb[0].mxu0
  %v3349 = vadd.f32 %v3306, %v3348
  %3350 = vdwg.mxu0
  %3351 = vmatprep.subr.bf16.mxu0 0
  %3352 = vmatpush1.bf16.msra.mxu0 %v3150
  %3353 = vmatprep.subr.bf16.mxu0 0
  %3354 = vmatpush1.bf16.msra.mxu0 %v3153
  %3355 = vmatprep.subr.bf16.mxu0 0
  %3356 = vmatpush1.bf16.msra.mxu0 %v3156
  %3357 = vmatprep.subr.bf16.mxu0 0
  %3358 = vmatpush1.bf16.msra.mxu0 %v3159
  %3359 = vmatprep.subr.bf16.mxu0 0
  %3360 = vmatpush1.bf16.msra.mxu0 %v3162
  %3361 = vmatprep.subr.bf16.mxu0 0
  %3362 = vmatpush1.bf16.msra.mxu0 %v3165
  %3363 = vmatprep.subr.bf16.mxu0 0
  %3364 = vmatpush1.bf16.msra.mxu0 %v3168
  %3365 = vmatprep.subr.bf16.mxu0 0
  %3366 = vmatpush1.bf16.msra.mxu0 %v3171
  %3367 = vmatprep.subr.bf16.mxu0 0
  %3368 = vmatpush1.bf16.msra.mxu0 %v3174
  %3369 = vmatprep.subr.bf16.mxu0 0
  %3370 = vmatpush1.bf16.msra.mxu0 %v3177
  %3371 = vmatprep.subr.bf16.mxu0 0
  %3372 = vmatpush1.bf16.msra.mxu0 %v3180
  %3373 = vmatprep.subr.bf16.mxu0 0
  %3374 = vmatpush1.bf16.msra.mxu0 %v3183
  %3375 = vmatprep.subr.bf16.mxu0 0
  %3376 = vmatpush1.bf16.msra.mxu0 %v3186
  %3377 = vmatprep.subr.bf16.mxu0 0
  %3378 = vmatpush1.bf16.msra.mxu0 %v3189
  %3379 = vmatprep.subr.bf16.mxu0 0
  %3380 = vmatpush1.bf16.msra.mxu0 %v3192
  %3381 = vmatprep.subr.bf16.mxu0 0
  %3382 = vmatpush1.bf16.msra.mxu0 %v3195
  %3383 = vmatprep.mubr.bf16.mxu0 %v2861
  %3384 = vmatmul.mubr.bf16.gmra.mrb[0].mxu0 %v2860
  %v3385 = vpop.f32.mrb[0].mxu0
  %v3386 = vadd.f32 %v2969, %v3385
  %v3387 = vpop.f32.mrb[0].mxu0
  %v3388 = vpop.f32.mrb[0].mxu0
  %v3389 = vadd.f32 %v2969, %v3388
  %v3390 = vpop.f32.mrb[0].mxu0
  %3391 = vdwg.mxu0
  %3392 = vmatprep.subr.bf16.mxu0 0
  %3393 = vmatpush1.bf16.msra.mxu0 %v3198
  %3394 = vmatprep.subr.bf16.mxu0 0
  %3395 = vmatpush1.bf16.msra.mxu0 %v3263
  %3396 = vmatprep.subr.bf16.mxu0 0
  %3397 = vmatpush1.bf16.msra.mxu0 0
  %3398 = vmatprep.subr.bf16.mxu0 0
  %3399 = vmatpush1.bf16.msra.mxu0 0
  %3400 = vmatprep.subr.bf16.mxu0 0
  %3401 = vmatpush1.bf16.msra.mxu0 0
  %3402 = vmatprep.subr.bf16.mxu0 0
  %3403 = vmatpush1.bf16.msra.mxu0 0
  %3404 = vmatprep.subr.bf16.mxu0 0
  %3405 = vmatpush1.bf16.msra.mxu0 0
  %3406 = vmatprep.subr.bf16.mxu0 0
  %3407 = vmatpush1.bf16.msra.mxu0 0
  %3408 = vmatprep.subr.bf16.mxu0 0
  %3409 = vmatpush1.bf16.msra.mxu0 0
  %3410 = vmatprep.subr.bf16.mxu0 0
  %3411 = vmatpush1.bf16.msra.mxu0 0
  %3412 = vmatprep.subr.bf16.mxu0 0
  %3413 = vmatpush1.bf16.msra.mxu0 0
  %3414 = vmatprep.subr.bf16.mxu0 0
  %3415 = vmatpush1.bf16.msra.mxu0 0
  %3416 = vmatprep.subr.bf16.mxu0 0
  %3417 = vmatpush1.bf16.msra.mxu0 0
  %3418 = vmatprep.subr.bf16.mxu0 0
  %3419 = vmatpush1.bf16.msra.mxu0 0
  %3420 = vmatprep.subr.bf16.mxu0 0
  %3421 = vmatpush1.bf16.msra.mxu0 0
  %3422 = vmatprep.subr.bf16.mxu0 0
  %3423 = vmatpush1.bf16.msra.mxu0 0
  %3424 = vmatprep.mubr.bf16.mxu0 0
  %3425 = vmatmul.mubr.bf16.gmra.mrb[0].mxu0 %v3254
  %v3426 = vpop.f32.mrb[0].mxu0
  %v3427 = vadd.f32 %v3386, %v3426
  %v3428 = vpop.f32.mrb[0].mxu0
  %v3429 = vpop.f32.mrb[0].mxu0
  %v3430 = vadd.f32 %v3389, %v3429
  %v3431 = vpop.f32.mrb[0].mxu0
  %3432 = vdwg.mxu0
  %v3433 = vmax.f32 %v3343, 0.0
  %v3434 = vmax.f32 %v3345, 0.0
  %v3435 = vmax.f32 %v3427, 0.0
  %v3436 = vmax.f32 %v3347, 0.0
  %v3437 = vmax.f32 %v3349, 0.0
  %v3438 = vmax.f32 %v3430, 0.0
  %v3439 = vadd.f32 %v3433, %v3434
  %v3440 = vsel %vm1418, %v3435, 0.0
  %v3441 = vadd.f32 %v3439, %v3440
  %3442 = vadd.xlane.f32.xlu0 %v3441
  %v3443 = vpop.xlane.xlu0 %3442
  %v3444 = vadd.f32 %v3436, %v3437
  %v3445 = vsel %vm1418, %v3438, 0.0
  %v3446 = vadd.f32 %v3444, %v3445
  %3447 = vadd.xlane.f32.xlu0 %v3446
  %v3448 = vpop.xlane.xlu0 %3447
  %v3449 = vmul.f32 %v3443, %v1428
  %v3450 = vmul.f32 %v3448, %v1428
  %v3451 = vsub.f32 %v3433, %v3449
  %v3452 = vsub.f32 %v3434, %v3449
  %v3453 = vsub.f32 %v3435, %v3449
  %v3454 = vsub.f32 %v3436, %v3450
  %v3455 = vsub.f32 %v3437, %v3450
  %v3456 = vsub.f32 %v3438, %v3450
  %v3457 = vmul.f32 %v3451, %v3451
  %v3458 = vmul.f32 %v3452, %v3452
  %v3459 = vmul.f32 %v3453, %v3453
  %v3460 = vmul.f32 %v3454, %v3454
  %v3461 = vmul.f32 %v3455, %v3455
  %v3462 = vmul.f32 %v3456, %v3456
  %v3463 = vadd.f32 %v3457, %v3458
  %v3464 = vsel %vm1418, %v3459, 0.0
  %v3465 = vadd.f32 %v3463, %v3464
  %3466 = vadd.xlane.f32.xlu0 %v3465
  %v3467 = vpop.xlane.xlu0 %3466
  %v3468 = vadd.f32 %v3460, %v3461
  %v3469 = vsel %vm1418, %v3462, 0.0
  %v3470 = vadd.f32 %v3468, %v3469
  %3471 = vadd.xlane.f32.xlu0 %v3470
  %v3472 = vpop.xlane.xlu0 %3471
  %v3473 = vmul.f32 %v3467, %v1428
  %v3474 = vmul.f32 %v3472, %v1428
  %v3475 = vadd.f32 %v3473, 1e-05
  %v3476 = vadd.f32 %v3474, 1e-05
  %v3477 = vrsqrt.pop %v3475
  %v3478 = vrsqrt.pop %v3476
  %s3479 = scalar_lea.vmem %s2955, 1
  %v3480 = vld [vmem:[%s3479] ss:$4 sm:$0x7]
  %v3482 = vlaneseq
  %v3483 = vshrl.u32 %v3482, 7
  %v3484 = vsub.s32 0, %v3483
  %v3485 = vrot.slane %v3480, %v3484
  %v3486 = vlaneseq
  %v3487 = vshrl.u32 %v3486, 7
  %v3488 = vsub.s32 1, %v3487
  %v3489 = vrot.slane %v3480, %v3488
  %v3490 = vlaneseq
  %v3491 = vshrl.u32 %v3490, 7
  %v3492 = vsub.s32 2, %v3491
  %v3493 = vrot.slane %v3480, %v3492
  %v3497 = vmul.f32 %v3477, %v3485
  %v3498 = vmul.f32 %v3477, %v3489
  %v3499 = vmul.f32 %v3477, %v3493
  %v3500 = vmul.f32 %v3478, %v3485
  %v3501 = vmul.f32 %v3478, %v3489
  %v3502 = vmul.f32 %v3478, %v3493
  %v3503 = vmul.f32 %v3451, %v3497
  %v3504 = vmul.f32 %v3452, %v3498
  %v3505 = vmul.f32 %v3453, %v3499
  %v3506 = vmul.f32 %v3454, %v3500
  %v3507 = vmul.f32 %v3455, %v3501
  %v3508 = vmul.f32 %v3456, %v3502
  %s3509 = scalar_lea.vmem %s2955, 2
  %v3510 = vld [vmem:[%s3509] ss:$4 sm:$0x7]
  %v3512 = vlaneseq
  %v3513 = vshrl.u32 %v3512, 7
  %v3514 = vsub.s32 0, %v3513
  %v3515 = vrot.slane %v3510, %v3514
  %v3516 = vlaneseq
  %v3517 = vshrl.u32 %v3516, 7
  %v3518 = vsub.s32 1, %v3517
  %v3519 = vrot.slane %v3510, %v3518
  %v3520 = vlaneseq
  %v3521 = vshrl.u32 %v3520, 7
  %v3522 = vsub.s32 2, %v3521
  %v3523 = vrot.slane %v3510, %v3522
  %v3527 = vadd.f32 %v3503, %v3515
  %v3528 = vadd.f32 %v3504, %v3519
  %v3529 = vadd.f32 %v3505, %v3523
  %v3530 = vadd.f32 %v3506, %v3515
  %v3531 = vadd.f32 %v3507, %v3519
  %v3532 = vadd.f32 %v3508, %v3523
  %v3533 = vpack.c.bf16 %v3530, %v3527
  %v3534 = vpack.c.bf16 %v3531, %v3528
  %v3535 = vpack.c.bf16 %v3532, %v3529
  %v3539 = vunpack.c.l.b16 %v3533
  %v3540 = vunpack.c.l.b16 %v3534
  %v3541 = vunpack.c.l.b16 %v3535
  %v3542 = vunpack.c.h.b16 %v3533
  %v3543 = vunpack.c.h.b16 %v3534
  %v3544 = vunpack.c.h.b16 %v3535
  %v3545 = vpack.c.b16 %v3540, %v3539
  %v3546 = vpack.c.b16 %v3541, %v3541
  %v3547 = vpack.c.b16 %v3543, %v3542
  %v3548 = vpack.c.b16 %v3544, %v3544
  %3553 = vst [vmem:[%s10] sm:$0xff] %v3545
  %3554 = vst.msk [vmem:[%s10 + $0x8] sm:$0xf] %vm1534, %v3546
  %3555 = vst [vmem:[%s10 + $0xc] sm:$0xff] %v3547
  %3556 = vst.msk [vmem:[%s10 + $0x14] sm:$0xf] %vm1534, %v3548
  %s3557 = scalar_lea.vmem %s2, 1260
  %v3558 = vld [vmem:[%s3557] sm:$0xff]
  %v3559 = vld [vmem:[%s3557 + $0x8] sm:$0xf]
  %v3560 = vld [vmem:[%s3557 + $0xc] sm:$0xff]
  %v3561 = vld [vmem:[%s3557 + $0x14] sm:$0xf]
  %v3562 = vld [vmem:[%s3557 + $0x18] sm:$0xff]
  %v3563 = vld [vmem:[%s3557 + $0x20] sm:$0xf]
  %v3564 = vld [vmem:[%s3557 + $0x24] sm:$0xff]
  %v3565 = vld [vmem:[%s3557 + $0x2c] sm:$0xf]
  %v3566 = vld [vmem:[%s3557 + $0x30] sm:$0xff]
  %v3567 = vld [vmem:[%s3557 + $0x38] sm:$0xf]
  %v3568 = vld [vmem:[%s3557 + $0x3c] sm:$0xff]
  %v3569 = vld [vmem:[%s3557 + $0x44] sm:$0xf]
  %v3570 = vld [vmem:[%s3557 + $0x48] sm:$0xff]
  %v3571 = vld [vmem:[%s3557 + $0x50] sm:$0xf]
  %v3572 = vld [vmem:[%s3557 + $0x54] sm:$0xff]
  %v3573 = vld [vmem:[%s3557 + $0x5c] sm:$0xf]
  %v3574 = vld [vmem:[%s3557 + $0x60] sm:$0xff]
  %v3575 = vld [vmem:[%s3557 + $0x68] sm:$0xf]
  %v3576 = vld [vmem:[%s3557 + $0x6c] sm:$0xff]
  %v3577 = vld [vmem:[%s3557 + $0x74] sm:$0xf]
  %v3578 = vld [vmem:[%s3557 + $0x78] sm:$0xff]
  %v3579 = vld [vmem:[%s3557 + $0x80] sm:$0xf]
  %v3580 = vld [vmem:[%s3557 + $0x84] sm:$0xff]
  %v3581 = vld [vmem:[%s3557 + $0x8c] sm:$0xf]
  %v3582 = vld [vmem:[%s3557 + $0x90] sm:$0xff]
  %v3583 = vld [vmem:[%s3557 + $0x98] sm:$0xf]
  %v3584 = vld [vmem:[%s3557 + $0x9c] sm:$0xff]
  %v3585 = vld [vmem:[%s3557 + $0xa4] sm:$0xf]
  %v3586 = vld [vmem:[%s3557 + $0xa8] sm:$0xff]
  %v3587 = vld [vmem:[%s3557 + $0xb0] sm:$0xf]
  %v3588 = vld [vmem:[%s3557 + $0xb4] sm:$0xff]
  %v3589 = vld [vmem:[%s3557 + $0xbc] sm:$0xf]
  %v3590 = vld [vmem:[%s3557 + $0xc0] sm:$0xff]
  %v3591 = vld [vmem:[%s3557 + $0xc8] sm:$0xf]
  %v3592 = vld [vmem:[%s3557 + $0xcc] sm:$0xff]
  %v3593 = vld [vmem:[%s3557 + $0xd4] sm:$0xf]
  %v3594 = vld [vmem:[%s3557 + $0xd8] sm:$0xff]
  %v3595 = vld [vmem:[%s3557 + $0xe0] sm:$0xf]
  %v3596 = vld [vmem:[%s3557 + $0xe4] sm:$0xff]
  %v3597 = vld [vmem:[%s3557 + $0xec] sm:$0xf]
  %v3598 = vld [vmem:[%s3557 + $0xf0] sm:$0xff]
  %v3599 = vld [vmem:[%s3557 + $0xf8] sm:$0xf]
  %v3600 = vld [vmem:[%s3557 + $0xfc] sm:$0xff]
  %v3601 = vld [vmem:[%s3557 + $0x104] sm:$0xf]
  %v3602 = vld [vmem:[%s3557 + $0x108] sm:$0xff]
  %v3603 = vld [vmem:[%s3557 + $0x110] sm:$0xf]
  %v3604 = vld [vmem:[%s3557 + $0x114] sm:$0xff]
  %v3605 = vld [vmem:[%s3557 + $0x11c] sm:$0xf]
  %v3606 = vld [vmem:[%s3557 + $0x120] sm:$0xff]
  %v3607 = vld [vmem:[%s3557 + $0x128] sm:$0xf]
  %v3608 = vld [vmem:[%s3557 + $0x12c] sm:$0xff]
  %v3609 = vld [vmem:[%s3557 + $0x134] sm:$0xf]
  %v3610 = vld [vmem:[%s3557 + $0x138] sm:$0xff]
  %v3611 = vld [vmem:[%s3557 + $0x140] sm:$0xf]
  %v3612 = vld [vmem:[%s3557 + $0x144] sm:$0xff]
  %v3613 = vld [vmem:[%s3557 + $0x14c] sm:$0xf]
  %v3614 = vld [vmem:[%s3557 + $0x150] sm:$0xff]
  %v3615 = vld [vmem:[%s3557 + $0x158] sm:$0xf]
  %v3616 = vld [vmem:[%s3557 + $0x15c] sm:$0xff]
  %v3617 = vld [vmem:[%s3557 + $0x164] sm:$0xf]
  %v3618 = vld [vmem:[%s3557 + $0x168] sm:$0xff]
  %v3619 = vld [vmem:[%s3557 + $0x170] sm:$0xf]
  %v3620 = vld [vmem:[%s3557 + $0x174] sm:$0xff]
  %v3621 = vld [vmem:[%s3557 + $0x17c] sm:$0xf]
  %v3622 = vld [vmem:[%s3557 + $0x180] sm:$0xff]
  %v3623 = vld [vmem:[%s3557 + $0x188] sm:$0xf]
  %v3624 = vld [vmem:[%s3557 + $0x18c] sm:$0xff]
  %v3625 = vld [vmem:[%s3557 + $0x194] sm:$0xf]
  %v3626 = vld [vmem:[%s3557 + $0x198] sm:$0x77]
  %v3627 = vld [vmem:[%s3557 + $0x1a0] sm:$0x7]
  %s3628 = scalar_lea.vmem %s3, 48
  %v3629 = vld [vmem:[%s3628] ss:$4 sm:$0x7]
  %v3631 = vlaneseq
  %v3632 = vshrl.u32 %v3631, 7
  %v3633 = vsub.s32 0, %v3632
  %v3634 = vrot.slane %v3629, %v3633
  %v3635 = vlaneseq
  %v3636 = vshrl.u32 %v3635, 7
  %v3637 = vsub.s32 1, %v3636
  %v3638 = vrot.slane %v3629, %v3637
  %v3639 = vlaneseq
  %v3640 = vshrl.u32 %v3639, 7
  %v3641 = vsub.s32 2, %v3640
  %v3642 = vrot.slane %v3629, %v3641
  %v3716 = vunpack.c.l.b16 %v3558
  %v3717 = vunpack.c.h.b16 %v3558
  %v3718 = vunpack.c.l.b16 %v3559
  %v3719 = vunpack.c.l.b16 %v3560
  %v3720 = vunpack.c.h.b16 %v3560
  %v3721 = vunpack.c.l.b16 %v3561
  %v3722 = vunpack.c.l.b16 %v3562
  %v3723 = vunpack.c.h.b16 %v3562
  %v3724 = vunpack.c.l.b16 %v3563
  %v3725 = vunpack.c.l.b16 %v3564
  %v3726 = vunpack.c.h.b16 %v3564
  %v3727 = vunpack.c.l.b16 %v3565
  %v3728 = vunpack.c.l.b16 %v3566
  %v3729 = vunpack.c.h.b16 %v3566
  %v3730 = vunpack.c.l.b16 %v3567
  %v3731 = vunpack.c.l.b16 %v3568
  %v3732 = vunpack.c.h.b16 %v3568
  %v3733 = vunpack.c.l.b16 %v3569
  %v3734 = vunpack.c.l.b16 %v3570
  %v3735 = vunpack.c.h.b16 %v3570
  %v3736 = vunpack.c.l.b16 %v3571
  %v3737 = vunpack.c.l.b16 %v3572
  %v3738 = vunpack.c.h.b16 %v3572
  %v3739 = vunpack.c.l.b16 %v3573
  %v3740 = vunpack.c.l.b16 %v3574
  %v3741 = vunpack.c.h.b16 %v3574
  %v3742 = vunpack.c.l.b16 %v3575
  %v3743 = vunpack.c.l.b16 %v3576
  %v3744 = vunpack.c.h.b16 %v3576
  %v3745 = vunpack.c.l.b16 %v3577
  %v3746 = vunpack.c.l.b16 %v3578
  %v3747 = vunpack.c.h.b16 %v3578
  %v3748 = vunpack.c.l.b16 %v3579
  %v3749 = vunpack.c.l.b16 %v3580
  %v3750 = vunpack.c.h.b16 %v3580
  %v3751 = vunpack.c.l.b16 %v3581
  %v3752 = vunpack.c.l.b16 %v3582
  %v3753 = vunpack.c.h.b16 %v3582
  %v3754 = vunpack.c.l.b16 %v3583
  %v3755 = vunpack.c.l.b16 %v3584
  %v3756 = vunpack.c.h.b16 %v3584
  %v3757 = vunpack.c.l.b16 %v3585
  %v3758 = vunpack.c.l.b16 %v3586
  %v3759 = vunpack.c.h.b16 %v3586
  %v3760 = vunpack.c.l.b16 %v3587
  %v3761 = vunpack.c.l.b16 %v3588
  %v3762 = vunpack.c.h.b16 %v3588
  %v3763 = vunpack.c.l.b16 %v3589
  %v3764 = vunpack.c.l.b16 %v3590
  %v3765 = vunpack.c.h.b16 %v3590
  %v3766 = vunpack.c.l.b16 %v3591
  %v3767 = vunpack.c.l.b16 %v3592
  %v3768 = vunpack.c.h.b16 %v3592
  %v3769 = vunpack.c.l.b16 %v3593
  %v3770 = vunpack.c.l.b16 %v3594
  %v3771 = vunpack.c.h.b16 %v3594
  %v3772 = vunpack.c.l.b16 %v3595
  %v3773 = vunpack.c.l.b16 %v3596
  %v3774 = vunpack.c.h.b16 %v3596
  %v3775 = vunpack.c.l.b16 %v3597
  %v3776 = vunpack.c.l.b16 %v3598
  %v3777 = vunpack.c.h.b16 %v3598
  %v3778 = vunpack.c.l.b16 %v3599
  %v3779 = vunpack.c.l.b16 %v3600
  %v3780 = vunpack.c.h.b16 %v3600
  %v3781 = vunpack.c.l.b16 %v3601
  %v3782 = vunpack.c.l.b16 %v3602
  %v3783 = vunpack.c.h.b16 %v3602
  %v3784 = vunpack.c.l.b16 %v3603
  %v3785 = vunpack.c.l.b16 %v3604
  %v3786 = vunpack.c.h.b16 %v3604
  %v3787 = vunpack.c.l.b16 %v3605
  %v3788 = vunpack.c.l.b16 %v3606
  %v3789 = vunpack.c.h.b16 %v3606
  %v3790 = vunpack.c.l.b16 %v3607
  %v3791 = vunpack.c.l.b16 %v3608
  %v3792 = vunpack.c.h.b16 %v3608
  %v3793 = vunpack.c.l.b16 %v3609
  %v3794 = vunpack.c.l.b16 %v3610
  %v3795 = vunpack.c.h.b16 %v3610
  %v3796 = vunpack.c.l.b16 %v3611
  %v3797 = vunpack.c.l.b16 %v3612
  %v3798 = vunpack.c.h.b16 %v3612
  %v3799 = vunpack.c.l.b16 %v3613
  %v3800 = vunpack.c.l.b16 %v3614
  %v3801 = vunpack.c.h.b16 %v3614
  %v3802 = vunpack.c.l.b16 %v3615
  %v3803 = vunpack.c.l.b16 %v3616
  %v3804 = vunpack.c.h.b16 %v3616
  %v3805 = vunpack.c.l.b16 %v3617
  %v3806 = vunpack.c.l.b16 %v3618
  %v3807 = vunpack.c.h.b16 %v3618
  %v3808 = vunpack.c.l.b16 %v3619
  %v3809 = vunpack.c.l.b16 %v3620
  %v3810 = vunpack.c.h.b16 %v3620
  %v3811 = vunpack.c.l.b16 %v3621
  %v3812 = vunpack.c.l.b16 %v3622
  %v3813 = vunpack.c.h.b16 %v3622
  %v3814 = vunpack.c.l.b16 %v3623
  %v3815 = vunpack.c.l.b16 %v3624
  %v3816 = vunpack.c.h.b16 %v3624
  %v3817 = vunpack.c.l.b16 %v3625
  %v3818 = vunpack.c.l.b16 %v3626
  %v3819 = vunpack.c.h.b16 %v3626
  %v3820 = vunpack.c.l.b16 %v3627
  %v3821 = vpack.c.b16 %v3719, %v3716
  %v3822 = vpack.c.b16 %v3720, %v3717
  %v3823 = vpack.c.b16 %v3721, %v3718
  %v3824 = vpack.c.b16 %v3725, %v3722
  %v3825 = vpack.c.b16 %v3726, %v3723
  %v3826 = vpack.c.b16 %v3727, %v3724
  %v3827 = vpack.c.b16 %v3731, %v3728
  %v3828 = vpack.c.b16 %v3732, %v3729
  %v3829 = vpack.c.b16 %v3733, %v3730
  %v3830 = vpack.c.b16 %v3737, %v3734
  %v3831 = vpack.c.b16 %v3738, %v3735
  %v3832 = vpack.c.b16 %v3739, %v3736
  %v3833 = vpack.c.b16 %v3743, %v3740
  %v3834 = vpack.c.b16 %v3744, %v3741
  %v3835 = vpack.c.b16 %v3745, %v3742
  %v3836 = vpack.c.b16 %v3749, %v3746
  %v3837 = vpack.c.b16 %v3750, %v3747
  %v3838 = vpack.c.b16 %v3751, %v3748
  %v3839 = vpack.c.b16 %v3755, %v3752
  %v3840 = vpack.c.b16 %v3756, %v3753
  %v3841 = vpack.c.b16 %v3757, %v3754
  %v3842 = vpack.c.b16 %v3761, %v3758
  %v3843 = vpack.c.b16 %v3762, %v3759
  %v3844 = vpack.c.b16 %v3763, %v3760
  %v3845 = vpack.c.b16 %v3767, %v3764
  %v3846 = vpack.c.b16 %v3768, %v3765
  %v3847 = vpack.c.b16 %v3769, %v3766
  %v3848 = vpack.c.b16 %v3773, %v3770
  %v3849 = vpack.c.b16 %v3774, %v3771
  %v3850 = vpack.c.b16 %v3775, %v3772
  %v3851 = vpack.c.b16 %v3779, %v3776
  %v3852 = vpack.c.b16 %v3780, %v3777
  %v3853 = vpack.c.b16 %v3781, %v3778
  %v3854 = vpack.c.b16 %v3785, %v3782
  %v3855 = vpack.c.b16 %v3786, %v3783
  %v3856 = vpack.c.b16 %v3787, %v3784
  %v3857 = vpack.c.b16 %v3791, %v3788
  %v3858 = vpack.c.b16 %v3792, %v3789
  %v3859 = vpack.c.b16 %v3793, %v3790
  %v3860 = vpack.c.b16 %v3797, %v3794
  %v3861 = vpack.c.b16 %v3798, %v3795
  %v3862 = vpack.c.b16 %v3799, %v3796
  %v3863 = vpack.c.b16 %v3803, %v3800
  %v3864 = vpack.c.b16 %v3804, %v3801
  %v3865 = vpack.c.b16 %v3805, %v3802
  %v3866 = vpack.c.b16 %v3809, %v3806
  %v3867 = vpack.c.b16 %v3810, %v3807
  %v3868 = vpack.c.b16 %v3811, %v3808
  %v3869 = vpack.c.b16 %v3815, %v3812
  %v3870 = vpack.c.b16 %v3816, %v3813
  %v3871 = vpack.c.b16 %v3817, %v3814
  %v3872 = vpack.c.b16 %v3818, %v3818
  %v3873 = vpack.c.b16 %v3819, %v3819
  %v3874 = vpack.c.b16 %v3820, %v3820
  %v3927 = vsel %vm1418, %v3535, 0
  %v3930 = vsel %vm1909, %v3872, 0
  %v3933 = vsel %vm1909, %v3873, 0
  %v3936 = vsel %vm1909, %v3874, 0
  %3938 = vmatprep.subr.bf16.mxu0 %v3822
  %3939 = vmatpush1.bf16.msra.mxu0 %v3821
  %3940 = vmatprep.subr.bf16.mxu0 %v3825
  %3941 = vmatpush1.bf16.msra.mxu0 %v3824
  %3942 = vmatprep.subr.bf16.mxu0 %v3828
  %3943 = vmatpush1.bf16.msra.mxu0 %v3827
  %3944 = vmatprep.subr.bf16.mxu0 %v3831
  %3945 = vmatpush1.bf16.msra.mxu0 %v3830
  %3946 = vmatprep.subr.bf16.mxu0 %v3834
  %3947 = vmatpush1.bf16.msra.mxu0 %v3833
  %3948 = vmatprep.subr.bf16.mxu0 %v3837
  %3949 = vmatpush1.bf16.msra.mxu0 %v3836
  %3950 = vmatprep.subr.bf16.mxu0 %v3840
  %3951 = vmatpush1.bf16.msra.mxu0 %v3839
  %3952 = vmatprep.subr.bf16.mxu0 %v3843
  %3953 = vmatpush1.bf16.msra.mxu0 %v3842
  %3954 = vmatprep.subr.bf16.mxu0 %v3846
  %3955 = vmatpush1.bf16.msra.mxu0 %v3845
  %3956 = vmatprep.subr.bf16.mxu0 %v3849
  %3957 = vmatpush1.bf16.msra.mxu0 %v3848
  %3958 = vmatprep.subr.bf16.mxu0 %v3852
  %3959 = vmatpush1.bf16.msra.mxu0 %v3851
  %3960 = vmatprep.subr.bf16.mxu0 %v3855
  %3961 = vmatpush1.bf16.msra.mxu0 %v3854
  %3962 = vmatprep.subr.bf16.mxu0 %v3858
  %3963 = vmatpush1.bf16.msra.mxu0 %v3857
  %3964 = vmatprep.subr.bf16.mxu0 %v3861
  %3965 = vmatpush1.bf16.msra.mxu0 %v3860
  %3966 = vmatprep.subr.bf16.mxu0 %v3864
  %3967 = vmatpush1.bf16.msra.mxu0 %v3863
  %3968 = vmatprep.subr.bf16.mxu0 %v3867
  %3969 = vmatpush1.bf16.msra.mxu0 %v3866
  %3970 = vmatprep.mubr.bf16.mxu0 %v3534
  %3971 = vmatmul.mubr.bf16.gmra.mrb[0].mxu0 %v3533
  %v3972 = vpop.f32.mrb[0].mxu0
  %v3973 = vadd.f32 %v3634, %v3972
  %v3974 = vpop.f32.mrb[0].mxu0
  %v3975 = vadd.f32 %v3638, %v3974
  %v3976 = vpop.f32.mrb[0].mxu0
  %v3977 = vadd.f32 %v3634, %v3976
  %v3978 = vpop.f32.mrb[0].mxu0
  %v3979 = vadd.f32 %v3638, %v3978
  %3980 = vdwg.mxu0
  %3981 = vmatprep.subr.bf16.mxu0 %v3870
  %3982 = vmatpush1.bf16.msra.mxu0 %v3869
  %3983 = vmatprep.subr.bf16.mxu0 %v3933
  %3984 = vmatpush1.bf16.msra.mxu0 %v3930
  %3985 = vmatprep.subr.bf16.mxu0 0
  %3986 = vmatpush1.bf16.msra.mxu0 0
  %3987 = vmatprep.subr.bf16.mxu0 0
  %3988 = vmatpush1.bf16.msra.mxu0 0
  %3989 = vmatprep.subr.bf16.mxu0 0
  %3990 = vmatpush1.bf16.msra.mxu0 0
  %3991 = vmatprep.subr.bf16.mxu0 0
  %3992 = vmatpush1.bf16.msra.mxu0 0
  %3993 = vmatprep.subr.bf16.mxu0 0
  %3994 = vmatpush1.bf16.msra.mxu0 0
  %3995 = vmatprep.subr.bf16.mxu0 0
  %3996 = vmatpush1.bf16.msra.mxu0 0
  %3997 = vmatprep.subr.bf16.mxu0 0
  %3998 = vmatpush1.bf16.msra.mxu0 0
  %3999 = vmatprep.subr.bf16.mxu0 0
  %4000 = vmatpush1.bf16.msra.mxu0 0
  %4001 = vmatprep.subr.bf16.mxu0 0
  %4002 = vmatpush1.bf16.msra.mxu0 0
  %4003 = vmatprep.subr.bf16.mxu0 0
  %4004 = vmatpush1.bf16.msra.mxu0 0
  %4005 = vmatprep.subr.bf16.mxu0 0
  %4006 = vmatpush1.bf16.msra.mxu0 0
  %4007 = vmatprep.subr.bf16.mxu0 0
  %4008 = vmatpush1.bf16.msra.mxu0 0
  %4009 = vmatprep.subr.bf16.mxu0 0
  %4010 = vmatpush1.bf16.msra.mxu0 0
  %4011 = vmatprep.subr.bf16.mxu0 0
  %4012 = vmatpush1.bf16.msra.mxu0 0
  %4013 = vmatprep.mubr.bf16.mxu0 0
  %4014 = vmatmul.mubr.bf16.gmra.mrb[0].mxu0 %v3927
  %v4015 = vpop.f32.mrb[0].mxu0
  %v4016 = vadd.f32 %v3973, %v4015
  %v4017 = vpop.f32.mrb[0].mxu0
  %v4018 = vadd.f32 %v3975, %v4017
  %v4019 = vpop.f32.mrb[0].mxu0
  %v4020 = vadd.f32 %v3977, %v4019
  %v4021 = vpop.f32.mrb[0].mxu0
  %v4022 = vadd.f32 %v3979, %v4021
  %4023 = vdwg.mxu0
  %4024 = vmatprep.subr.bf16.mxu0 0
  %4025 = vmatpush1.bf16.msra.mxu0 %v3823
  %4026 = vmatprep.subr.bf16.mxu0 0
  %4027 = vmatpush1.bf16.msra.mxu0 %v3826
  %4028 = vmatprep.subr.bf16.mxu0 0
  %4029 = vmatpush1.bf16.msra.mxu0 %v3829
  %4030 = vmatprep.subr.bf16.mxu0 0
  %4031 = vmatpush1.bf16.msra.mxu0 %v3832
  %4032 = vmatprep.subr.bf16.mxu0 0
  %4033 = vmatpush1.bf16.msra.mxu0 %v3835
  %4034 = vmatprep.subr.bf16.mxu0 0
  %4035 = vmatpush1.bf16.msra.mxu0 %v3838
  %4036 = vmatprep.subr.bf16.mxu0 0
  %4037 = vmatpush1.bf16.msra.mxu0 %v3841
  %4038 = vmatprep.subr.bf16.mxu0 0
  %4039 = vmatpush1.bf16.msra.mxu0 %v3844
  %4040 = vmatprep.subr.bf16.mxu0 0
  %4041 = vmatpush1.bf16.msra.mxu0 %v3847
  %4042 = vmatprep.subr.bf16.mxu0 0
  %4043 = vmatpush1.bf16.msra.mxu0 %v3850
  %4044 = vmatprep.subr.bf16.mxu0 0
  %4045 = vmatpush1.bf16.msra.mxu0 %v3853
  %4046 = vmatprep.subr.bf16.mxu0 0
  %4047 = vmatpush1.bf16.msra.mxu0 %v3856
  %4048 = vmatprep.subr.bf16.mxu0 0
  %4049 = vmatpush1.bf16.msra.mxu0 %v3859
  %4050 = vmatprep.subr.bf16.mxu0 0
  %4051 = vmatpush1.bf16.msra.mxu0 %v3862
  %4052 = vmatprep.subr.bf16.mxu0 0
  %4053 = vmatpush1.bf16.msra.mxu0 %v3865
  %4054 = vmatprep.subr.bf16.mxu0 0
  %4055 = vmatpush1.bf16.msra.mxu0 %v3868
  %4056 = vmatprep.mubr.bf16.mxu0 %v3534
  %4057 = vmatmul.mubr.bf16.gmra.mrb[0].mxu0 %v3533
  %v4058 = vpop.f32.mrb[0].mxu0
  %v4059 = vadd.f32 %v3642, %v4058
  %v4060 = vpop.f32.mrb[0].mxu0
  %v4061 = vpop.f32.mrb[0].mxu0
  %v4062 = vadd.f32 %v3642, %v4061
  %v4063 = vpop.f32.mrb[0].mxu0
  %4064 = vdwg.mxu0
  %4065 = vmatprep.subr.bf16.mxu0 0
  %4066 = vmatpush1.bf16.msra.mxu0 %v3871
  %4067 = vmatprep.subr.bf16.mxu0 0
  %4068 = vmatpush1.bf16.msra.mxu0 %v3936
  %4069 = vmatprep.subr.bf16.mxu0 0
  %4070 = vmatpush1.bf16.msra.mxu0 0
  %4071 = vmatprep.subr.bf16.mxu0 0
  %4072 = vmatpush1.bf16.msra.mxu0 0
  %4073 = vmatprep.subr.bf16.mxu0 0
  %4074 = vmatpush1.bf16.msra.mxu0 0
  %4075 = vmatprep.subr.bf16.mxu0 0
  %4076 = vmatpush1.bf16.msra.mxu0 0
  %4077 = vmatprep.subr.bf16.mxu0 0
  %4078 = vmatpush1.bf16.msra.mxu0 0
  %4079 = vmatprep.subr.bf16.mxu0 0
  %4080 = vmatpush1.bf16.msra.mxu0 0
  %4081 = vmatprep.subr.bf16.mxu0 0
  %4082 = vmatpush1.bf16.msra.mxu0 0
  %4083 = vmatprep.subr.bf16.mxu0 0
  %4084 = vmatpush1.bf16.msra.mxu0 0
  %4085 = vmatprep.subr.bf16.mxu0 0
  %4086 = vmatpush1.bf16.msra.mxu0 0
  %4087 = vmatprep.subr.bf16.mxu0 0
  %4088 = vmatpush1.bf16.msra.mxu0 0
  %4089 = vmatprep.subr.bf16.mxu0 0
  %4090 = vmatpush1.bf16.msra.mxu0 0
  %4091 = vmatprep.subr.bf16.mxu0 0
  %4092 = vmatpush1.bf16.msra.mxu0 0
  %4093 = vmatprep.subr.bf16.mxu0 0
  %4094 = vmatpush1.bf16.msra.mxu0 0
  %4095 = vmatprep.subr.bf16.mxu0 0
  %4096 = vmatpush1.bf16.msra.mxu0 0
  %4097 = vmatprep.mubr.bf16.mxu0 0
  %4098 = vmatmul.mubr.bf16.gmra.mrb[0].mxu0 %v3927
  %v4099 = vpop.f32.mrb[0].mxu0
  %v4100 = vadd.f32 %v4059, %v4099
  %v4101 = vpop.f32.mrb[0].mxu0
  %v4102 = vpop.f32.mrb[0].mxu0
  %v4103 = vadd.f32 %v4062, %v4102
  %v4104 = vpop.f32.mrb[0].mxu0
  %4105 = vdwg.mxu0
  %v4106 = vmax.f32 %v4016, 0.0
  %v4107 = vmax.f32 %v4018, 0.0
  %v4108 = vmax.f32 %v4100, 0.0
  %v4109 = vmax.f32 %v4020, 0.0
  %v4110 = vmax.f32 %v4022, 0.0
  %v4111 = vmax.f32 %v4103, 0.0
  %v4112 = vadd.f32 %v4106, %v4107
  %v4113 = vsel %vm1418, %v4108, 0.0
  %v4114 = vadd.f32 %v4112, %v4113
  %4115 = vadd.xlane.f32.xlu0 %v4114
  %v4116 = vpop.xlane.xlu0 %4115
  %v4117 = vadd.f32 %v4109, %v4110
  %v4118 = vsel %vm1418, %v4111, 0.0
  %v4119 = vadd.f32 %v4117, %v4118
  %4120 = vadd.xlane.f32.xlu0 %v4119
  %v4121 = vpop.xlane.xlu0 %4120
  %v4122 = vmul.f32 %v4116, %v1428
  %v4123 = vmul.f32 %v4121, %v1428
  %v4124 = vsub.f32 %v4106, %v4122
  %v4125 = vsub.f32 %v4107, %v4122
  %v4126 = vsub.f32 %v4108, %v4122
  %v4127 = vsub.f32 %v4109, %v4123
  %v4128 = vsub.f32 %v4110, %v4123
  %v4129 = vsub.f32 %v4111, %v4123
  %v4130 = vmul.f32 %v4124, %v4124
  %v4131 = vmul.f32 %v4125, %v4125
  %v4132 = vmul.f32 %v4126, %v4126
  %v4133 = vmul.f32 %v4127, %v4127
  %v4134 = vmul.f32 %v4128, %v4128
  %v4135 = vmul.f32 %v4129, %v4129
  %v4136 = vadd.f32 %v4130, %v4131
  %v4137 = vsel %vm1418, %v4132, 0.0
  %v4138 = vadd.f32 %v4136, %v4137
  %4139 = vadd.xlane.f32.xlu0 %v4138
  %v4140 = vpop.xlane.xlu0 %4139
  %v4141 = vadd.f32 %v4133, %v4134
  %v4142 = vsel %vm1418, %v4135, 0.0
  %v4143 = vadd.f32 %v4141, %v4142
  %4144 = vadd.xlane.f32.xlu0 %v4143
  %v4145 = vpop.xlane.xlu0 %4144
  %v4146 = vmul.f32 %v4140, %v1428
  %v4147 = vmul.f32 %v4145, %v1428
  %v4148 = vadd.f32 %v4146, 1e-05
  %v4149 = vadd.f32 %v4147, 1e-05
  %v4150 = vrsqrt.pop %v4148
  %v4151 = vrsqrt.pop %v4149
  %s4152 = scalar_lea.vmem %s3628, 1
  %v4153 = vld [vmem:[%s4152] ss:$4 sm:$0x7]
  %v4155 = vlaneseq
  %v4156 = vshrl.u32 %v4155, 7
  %v4157 = vsub.s32 0, %v4156
  %v4158 = vrot.slane %v4153, %v4157
  %v4159 = vlaneseq
  %v4160 = vshrl.u32 %v4159, 7
  %v4161 = vsub.s32 1, %v4160
  %v4162 = vrot.slane %v4153, %v4161
  %v4163 = vlaneseq
  %v4164 = vshrl.u32 %v4163, 7
  %v4165 = vsub.s32 2, %v4164
  %v4166 = vrot.slane %v4153, %v4165
  %v4170 = vmul.f32 %v4150, %v4158
  %v4171 = vmul.f32 %v4150, %v4162
  %v4172 = vmul.f32 %v4150, %v4166
  %v4173 = vmul.f32 %v4151, %v4158
  %v4174 = vmul.f32 %v4151, %v4162
  %v4175 = vmul.f32 %v4151, %v4166
  %v4176 = vmul.f32 %v4124, %v4170
  %v4177 = vmul.f32 %v4125, %v4171
  %v4178 = vmul.f32 %v4126, %v4172
  %v4179 = vmul.f32 %v4127, %v4173
  %v4180 = vmul.f32 %v4128, %v4174
  %v4181 = vmul.f32 %v4129, %v4175
  %s4182 = scalar_lea.vmem %s3628, 2
  %v4183 = vld [vmem:[%s4182] ss:$4 sm:$0x7]
  %v4185 = vlaneseq
  %v4186 = vshrl.u32 %v4185, 7
  %v4187 = vsub.s32 0, %v4186
  %v4188 = vrot.slane %v4183, %v4187
  %v4189 = vlaneseq
  %v4190 = vshrl.u32 %v4189, 7
  %v4191 = vsub.s32 1, %v4190
  %v4192 = vrot.slane %v4183, %v4191
  %v4193 = vlaneseq
  %v4194 = vshrl.u32 %v4193, 7
  %v4195 = vsub.s32 2, %v4194
  %v4196 = vrot.slane %v4183, %v4195
  %v4200 = vadd.f32 %v4176, %v4188
  %v4201 = vadd.f32 %v4177, %v4192
  %v4202 = vadd.f32 %v4178, %v4196
  %v4203 = vadd.f32 %v4179, %v4188
  %v4204 = vadd.f32 %v4180, %v4192
  %v4205 = vadd.f32 %v4181, %v4196
  %v4206 = vpack.c.bf16 %v4203, %v4200
  %v4207 = vpack.c.bf16 %v4204, %v4201
  %v4208 = vpack.c.bf16 %v4205, %v4202
  %v4212 = vunpack.c.l.b16 %v4206
  %v4213 = vunpack.c.l.b16 %v4207
  %v4214 = vunpack.c.l.b16 %v4208
  %v4215 = vunpack.c.h.b16 %v4206
  %v4216 = vunpack.c.h.b16 %v4207
  %v4217 = vunpack.c.h.b16 %v4208
  %v4218 = vpack.c.b16 %v4213, %v4212
  %v4219 = vpack.c.b16 %v4214, %v4214
  %v4220 = vpack.c.b16 %v4216, %v4215
  %v4221 = vpack.c.b16 %v4217, %v4217
  %4226 = vst [vmem:[%s11] sm:$0xff] %v4218
  %4227 = vst.msk [vmem:[%s11 + $0x8] sm:$0xf] %vm1534, %v4219
  %4228 = vst [vmem:[%s11 + $0xc] sm:$0xff] %v4220
  %4229 = vst.msk [vmem:[%s11 + $0x14] sm:$0xf] %vm1534, %v4221
  %s4230 = scalar_lea.vmem %s2, 1680
  %v4231 = vld [vmem:[%s4230] sm:$0xff]
  %v4232 = vld [vmem:[%s4230 + $0x8] sm:$0xf]
  %v4233 = vld [vmem:[%s4230 + $0xc] sm:$0xff]
  %v4234 = vld [vmem:[%s4230 + $0x14] sm:$0xf]
  %v4235 = vld [vmem:[%s4230 + $0x18] sm:$0xff]
  %v4236 = vld [vmem:[%s4230 + $0x20] sm:$0xf]
  %v4237 = vld [vmem:[%s4230 + $0x24] sm:$0xff]
  %v4238 = vld [vmem:[%s4230 + $0x2c] sm:$0xf]
  %v4239 = vld [vmem:[%s4230 + $0x30] sm:$0xff]
  %v4240 = vld [vmem:[%s4230 + $0x38] sm:$0xf]
  %v4241 = vld [vmem:[%s4230 + $0x3c] sm:$0xff]
  %v4242 = vld [vmem:[%s4230 + $0x44] sm:$0xf]
  %v4243 = vld [vmem:[%s4230 + $0x48] sm:$0xff]
  %v4244 = vld [vmem:[%s4230 + $0x50] sm:$0xf]
  %v4245 = vld [vmem:[%s4230 + $0x54] sm:$0xff]
  %v4246 = vld [vmem:[%s4230 + $0x5c] sm:$0xf]
  %v4247 = vld [vmem:[%s4230 + $0x60] sm:$0xff]
  %v4248 = vld [vmem:[%s4230 + $0x68] sm:$0xf]
  %v4249 = vld [vmem:[%s4230 + $0x6c] sm:$0xff]
  %v4250 = vld [vmem:[%s4230 + $0x74] sm:$0xf]
  %v4251 = vld [vmem:[%s4230 + $0x78] sm:$0xff]
  %v4252 = vld [vmem:[%s4230 + $0x80] sm:$0xf]
  %v4253 = vld [vmem:[%s4230 + $0x84] sm:$0xff]
  %v4254 = vld [vmem:[%s4230 + $0x8c] sm:$0xf]
  %v4255 = vld [vmem:[%s4230 + $0x90] sm:$0xff]
  %v4256 = vld [vmem:[%s4230 + $0x98] sm:$0xf]
  %v4257 = vld [vmem:[%s4230 + $0x9c] sm:$0xff]
  %v4258 = vld [vmem:[%s4230 + $0xa4] sm:$0xf]
  %v4259 = vld [vmem:[%s4230 + $0xa8] sm:$0xff]
  %v4260 = vld [vmem:[%s4230 + $0xb0] sm:$0xf]
  %v4261 = vld [vmem:[%s4230 + $0xb4] sm:$0xff]
  %v4262 = vld [vmem:[%s4230 + $0xbc] sm:$0xf]
  %v4263 = vld [vmem:[%s4230 + $0xc0] sm:$0xff]
  %v4264 = vld [vmem:[%s4230 + $0xc8] sm:$0xf]
  %v4265 = vld [vmem:[%s4230 + $0xcc] sm:$0xff]
  %v4266 = vld [vmem:[%s4230 + $0xd4] sm:$0xf]
  %v4267 = vld [vmem:[%s4230 + $0xd8] sm:$0xff]
  %v4268 = vld [vmem:[%s4230 + $0xe0] sm:$0xf]
  %v4269 = vld [vmem:[%s4230 + $0xe4] sm:$0xff]
  %v4270 = vld [vmem:[%s4230 + $0xec] sm:$0xf]
  %v4271 = vld [vmem:[%s4230 + $0xf0] sm:$0xff]
  %v4272 = vld [vmem:[%s4230 + $0xf8] sm:$0xf]
  %v4273 = vld [vmem:[%s4230 + $0xfc] sm:$0xff]
  %v4274 = vld [vmem:[%s4230 + $0x104] sm:$0xf]
  %v4275 = vld [vmem:[%s4230 + $0x108] sm:$0xff]
  %v4276 = vld [vmem:[%s4230 + $0x110] sm:$0xf]
  %v4277 = vld [vmem:[%s4230 + $0x114] sm:$0xff]
  %v4278 = vld [vmem:[%s4230 + $0x11c] sm:$0xf]
  %v4279 = vld [vmem:[%s4230 + $0x120] sm:$0xff]
  %v4280 = vld [vmem:[%s4230 + $0x128] sm:$0xf]
  %v4281 = vld [vmem:[%s4230 + $0x12c] sm:$0xff]
  %v4282 = vld [vmem:[%s4230 + $0x134] sm:$0xf]
  %v4283 = vld [vmem:[%s4230 + $0x138] sm:$0xff]
  %v4284 = vld [vmem:[%s4230 + $0x140] sm:$0xf]
  %v4285 = vld [vmem:[%s4230 + $0x144] sm:$0xff]
  %v4286 = vld [vmem:[%s4230 + $0x14c] sm:$0xf]
  %v4287 = vld [vmem:[%s4230 + $0x150] sm:$0xff]
  %v4288 = vld [vmem:[%s4230 + $0x158] sm:$0xf]
  %v4289 = vld [vmem:[%s4230 + $0x15c] sm:$0xff]
  %v4290 = vld [vmem:[%s4230 + $0x164] sm:$0xf]
  %v4291 = vld [vmem:[%s4230 + $0x168] sm:$0xff]
  %v4292 = vld [vmem:[%s4230 + $0x170] sm:$0xf]
  %v4293 = vld [vmem:[%s4230 + $0x174] sm:$0xff]
  %v4294 = vld [vmem:[%s4230 + $0x17c] sm:$0xf]
  %v4295 = vld [vmem:[%s4230 + $0x180] sm:$0xff]
  %v4296 = vld [vmem:[%s4230 + $0x188] sm:$0xf]
  %v4297 = vld [vmem:[%s4230 + $0x18c] sm:$0xff]
  %v4298 = vld [vmem:[%s4230 + $0x194] sm:$0xf]
  %v4299 = vld [vmem:[%s4230 + $0x198] sm:$0x77]
  %v4300 = vld [vmem:[%s4230 + $0x1a0] sm:$0x7]
  %s4301 = scalar_lea.vmem %s3, 60
  %v4302 = vld [vmem:[%s4301] ss:$4 sm:$0x7]
  %v4304 = vlaneseq
  %v4305 = vshrl.u32 %v4304, 7
  %v4306 = vsub.s32 0, %v4305
  %v4307 = vrot.slane %v4302, %v4306
  %v4308 = vlaneseq
  %v4309 = vshrl.u32 %v4308, 7
  %v4310 = vsub.s32 1, %v4309
  %v4311 = vrot.slane %v4302, %v4310
  %v4312 = vlaneseq
  %v4313 = vshrl.u32 %v4312, 7
  %v4314 = vsub.s32 2, %v4313
  %v4315 = vrot.slane %v4302, %v4314
  %v4389 = vunpack.c.l.b16 %v4231
  %v4390 = vunpack.c.h.b16 %v4231
  %v4391 = vunpack.c.l.b16 %v4232
  %v4392 = vunpack.c.l.b16 %v4233
  %v4393 = vunpack.c.h.b16 %v4233
  %v4394 = vunpack.c.l.b16 %v4234
  %v4395 = vunpack.c.l.b16 %v4235
  %v4396 = vunpack.c.h.b16 %v4235
  %v4397 = vunpack.c.l.b16 %v4236
  %v4398 = vunpack.c.l.b16 %v4237
  %v4399 = vunpack.c.h.b16 %v4237
  %v4400 = vunpack.c.l.b16 %v4238
  %v4401 = vunpack.c.l.b16 %v4239
  %v4402 = vunpack.c.h.b16 %v4239
  %v4403 = vunpack.c.l.b16 %v4240
  %v4404 = vunpack.c.l.b16 %v4241
  %v4405 = vunpack.c.h.b16 %v4241
  %v4406 = vunpack.c.l.b16 %v4242
  %v4407 = vunpack.c.l.b16 %v4243
  %v4408 = vunpack.c.h.b16 %v4243
  %v4409 = vunpack.c.l.b16 %v4244
  %v4410 = vunpack.c.l.b16 %v4245
  %v4411 = vunpack.c.h.b16 %v4245
  %v4412 = vunpack.c.l.b16 %v4246
  %v4413 = vunpack.c.l.b16 %v4247
  %v4414 = vunpack.c.h.b16 %v4247
  %v4415 = vunpack.c.l.b16 %v4248
  %v4416 = vunpack.c.l.b16 %v4249
  %v4417 = vunpack.c.h.b16 %v4249
  %v4418 = vunpack.c.l.b16 %v4250
  %v4419 = vunpack.c.l.b16 %v4251
  %v4420 = vunpack.c.h.b16 %v4251
  %v4421 = vunpack.c.l.b16 %v4252
  %v4422 = vunpack.c.l.b16 %v4253
  %v4423 = vunpack.c.h.b16 %v4253
  %v4424 = vunpack.c.l.b16 %v4254
  %v4425 = vunpack.c.l.b16 %v4255
  %v4426 = vunpack.c.h.b16 %v4255
  %v4427 = vunpack.c.l.b16 %v4256
  %v4428 = vunpack.c.l.b16 %v4257
  %v4429 = vunpack.c.h.b16 %v4257
  %v4430 = vunpack.c.l.b16 %v4258
  %v4431 = vunpack.c.l.b16 %v4259
  %v4432 = vunpack.c.h.b16 %v4259
  %v4433 = vunpack.c.l.b16 %v4260
  %v4434 = vunpack.c.l.b16 %v4261
  %v4435 = vunpack.c.h.b16 %v4261
  %v4436 = vunpack.c.l.b16 %v4262
  %v4437 = vunpack.c.l.b16 %v4263
  %v4438 = vunpack.c.h.b16 %v4263
  %v4439 = vunpack.c.l.b16 %v4264
  %v4440 = vunpack.c.l.b16 %v4265
  %v4441 = vunpack.c.h.b16 %v4265
  %v4442 = vunpack.c.l.b16 %v4266
  %v4443 = vunpack.c.l.b16 %v4267
  %v4444 = vunpack.c.h.b16 %v4267
  %v4445 = vunpack.c.l.b16 %v4268
  %v4446 = vunpack.c.l.b16 %v4269
  %v4447 = vunpack.c.h.b16 %v4269
  %v4448 = vunpack.c.l.b16 %v4270
  %v4449 = vunpack.c.l.b16 %v4271
  %v4450 = vunpack.c.h.b16 %v4271
  %v4451 = vunpack.c.l.b16 %v4272
  %v4452 = vunpack.c.l.b16 %v4273
  %v4453 = vunpack.c.h.b16 %v4273
  %v4454 = vunpack.c.l.b16 %v4274
  %v4455 = vunpack.c.l.b16 %v4275
  %v4456 = vunpack.c.h.b16 %v4275
  %v4457 = vunpack.c.l.b16 %v4276
  %v4458 = vunpack.c.l.b16 %v4277
  %v4459 = vunpack.c.h.b16 %v4277
  %v4460 = vunpack.c.l.b16 %v4278
  %v4461 = vunpack.c.l.b16 %v4279
  %v4462 = vunpack.c.h.b16 %v4279
  %v4463 = vunpack.c.l.b16 %v4280
  %v4464 = vunpack.c.l.b16 %v4281
  %v4465 = vunpack.c.h.b16 %v4281
  %v4466 = vunpack.c.l.b16 %v4282
  %v4467 = vunpack.c.l.b16 %v4283
  %v4468 = vunpack.c.h.b16 %v4283
  %v4469 = vunpack.c.l.b16 %v4284
  %v4470 = vunpack.c.l.b16 %v4285
  %v4471 = vunpack.c.h.b16 %v4285
  %v4472 = vunpack.c.l.b16 %v4286
  %v4473 = vunpack.c.l.b16 %v4287
  %v4474 = vunpack.c.h.b16 %v4287
  %v4475 = vunpack.c.l.b16 %v4288
  %v4476 = vunpack.c.l.b16 %v4289
  %v4477 = vunpack.c.h.b16 %v4289
  %v4478 = vunpack.c.l.b16 %v4290
  %v4479 = vunpack.c.l.b16 %v4291
  %v4480 = vunpack.c.h.b16 %v4291
  %v4481 = vunpack.c.l.b16 %v4292
  %v4482 = vunpack.c.l.b16 %v4293
  %v4483 = vunpack.c.h.b16 %v4293
  %v4484 = vunpack.c.l.b16 %v4294
  %v4485 = vunpack.c.l.b16 %v4295
  %v4486 = vunpack.c.h.b16 %v4295
  %v4487 = vunpack.c.l.b16 %v4296
  %v4488 = vunpack.c.l.b16 %v4297
  %v4489 = vunpack.c.h.b16 %v4297
  %v4490 = vunpack.c.l.b16 %v4298
  %v4491 = vunpack.c.l.b16 %v4299
  %v4492 = vunpack.c.h.b16 %v4299
  %v4493 = vunpack.c.l.b16 %v4300
  %v4494 = vpack.c.b16 %v4392, %v4389
  %v4495 = vpack.c.b16 %v4393, %v4390
  %v4496 = vpack.c.b16 %v4394, %v4391
  %v4497 = vpack.c.b16 %v4398, %v4395
  %v4498 = vpack.c.b16 %v4399, %v4396
  %v4499 = vpack.c.b16 %v4400, %v4397
  %v4500 = vpack.c.b16 %v4404, %v4401
  %v4501 = vpack.c.b16 %v4405, %v4402
  %v4502 = vpack.c.b16 %v4406, %v4403
  %v4503 = vpack.c.b16 %v4410, %v4407
  %v4504 = vpack.c.b16 %v4411, %v4408
  %v4505 = vpack.c.b16 %v4412, %v4409
  %v4506 = vpack.c.b16 %v4416, %v4413
  %v4507 = vpack.c.b16 %v4417, %v4414
  %v4508 = vpack.c.b16 %v4418, %v4415
  %v4509 = vpack.c.b16 %v4422, %v4419
  %v4510 = vpack.c.b16 %v4423, %v4420
  %v4511 = vpack.c.b16 %v4424, %v4421
  %v4512 = vpack.c.b16 %v4428, %v4425
  %v4513 = vpack.c.b16 %v4429, %v4426
  %v4514 = vpack.c.b16 %v4430, %v4427
  %v4515 = vpack.c.b16 %v4434, %v4431
  %v4516 = vpack.c.b16 %v4435, %v4432
  %v4517 = vpack.c.b16 %v4436, %v4433
  %v4518 = vpack.c.b16 %v4440, %v4437
  %v4519 = vpack.c.b16 %v4441, %v4438
  %v4520 = vpack.c.b16 %v4442, %v4439
  %v4521 = vpack.c.b16 %v4446, %v4443
  %v4522 = vpack.c.b16 %v4447, %v4444
  %v4523 = vpack.c.b16 %v4448, %v4445
  %v4524 = vpack.c.b16 %v4452, %v4449
  %v4525 = vpack.c.b16 %v4453, %v4450
  %v4526 = vpack.c.b16 %v4454, %v4451
  %v4527 = vpack.c.b16 %v4458, %v4455
  %v4528 = vpack.c.b16 %v4459, %v4456
  %v4529 = vpack.c.b16 %v4460, %v4457
  %v4530 = vpack.c.b16 %v4464, %v4461
  %v4531 = vpack.c.b16 %v4465, %v4462
  %v4532 = vpack.c.b16 %v4466, %v4463
  %v4533 = vpack.c.b16 %v4470, %v4467
  %v4534 = vpack.c.b16 %v4471, %v4468
  %v4535 = vpack.c.b16 %v4472, %v4469
  %v4536 = vpack.c.b16 %v4476, %v4473
  %v4537 = vpack.c.b16 %v4477, %v4474
  %v4538 = vpack.c.b16 %v4478, %v4475
  %v4539 = vpack.c.b16 %v4482, %v4479
  %v4540 = vpack.c.b16 %v4483, %v4480
  %v4541 = vpack.c.b16 %v4484, %v4481
  %v4542 = vpack.c.b16 %v4488, %v4485
  %v4543 = vpack.c.b16 %v4489, %v4486
  %v4544 = vpack.c.b16 %v4490, %v4487
  %v4545 = vpack.c.b16 %v4491, %v4491
  %v4546 = vpack.c.b16 %v4492, %v4492
  %v4547 = vpack.c.b16 %v4493, %v4493
  %v4600 = vsel %vm1418, %v4208, 0
  %v4603 = vsel %vm1909, %v4545, 0
  %v4606 = vsel %vm1909, %v4546, 0
  %v4609 = vsel %vm1909, %v4547, 0
  %4611 = vmatprep.subr.bf16.mxu0 %v4495
  %4612 = vmatpush1.bf16.msra.mxu0 %v4494
  %4613 = vmatprep.subr.bf16.mxu0 %v4498
  %4614 = vmatpush1.bf16.msra.mxu0 %v4497
  %4615 = vmatprep.subr.bf16.mxu0 %v4501
  %4616 = vmatpush1.bf16.msra.mxu0 %v4500
  %4617 = vmatprep.subr.bf16.mxu0 %v4504
  %4618 = vmatpush1.bf16.msra.mxu0 %v4503
  %4619 = vmatprep.subr.bf16.mxu0 %v4507
  %4620 = vmatpush1.bf16.msra.mxu0 %v4506
  %4621 = vmatprep.subr.bf16.mxu0 %v4510
  %4622 = vmatpush1.bf16.msra.mxu0 %v4509
  %4623 = vmatprep.subr.bf16.mxu0 %v4513
  %4624 = vmatpush1.bf16.msra.mxu0 %v4512
  %4625 = vmatprep.subr.bf16.mxu0 %v4516
  %4626 = vmatpush1.bf16.msra.mxu0 %v4515
  %4627 = vmatprep.subr.bf16.mxu0 %v4519
  %4628 = vmatpush1.bf16.msra.mxu0 %v4518
  %4629 = vmatprep.subr.bf16.mxu0 %v4522
  %4630 = vmatpush1.bf16.msra.mxu0 %v4521
  %4631 = vmatprep.subr.bf16.mxu0 %v4525
  %4632 = vmatpush1.bf16.msra.mxu0 %v4524
  %4633 = vmatprep.subr.bf16.mxu0 %v4528
  %4634 = vmatpush1.bf16.msra.mxu0 %v4527
  %4635 = vmatprep.subr.bf16.mxu0 %v4531
  %4636 = vmatpush1.bf16.msra.mxu0 %v4530
  %4637 = vmatprep.subr.bf16.mxu0 %v4534
  %4638 = vmatpush1.bf16.msra.mxu0 %v4533
  %4639 = vmatprep.subr.bf16.mxu0 %v4537
  %4640 = vmatpush1.bf16.msra.mxu0 %v4536
  %4641 = vmatprep.subr.bf16.mxu0 %v4540
  %4642 = vmatpush1.bf16.msra.mxu0 %v4539
  %4643 = vmatprep.mubr.bf16.mxu0 %v4207
  %4644 = vmatmul.mubr.bf16.gmra.mrb[0].mxu0 %v4206
  %v4645 = vpop.f32.mrb[0].mxu0
  %v4646 = vadd.f32 %v4307, %v4645
  %v4647 = vpop.f32.mrb[0].mxu0
  %v4648 = vadd.f32 %v4311, %v4647
  %v4649 = vpop.f32.mrb[0].mxu0
  %v4650 = vadd.f32 %v4307, %v4649
  %v4651 = vpop.f32.mrb[0].mxu0
  %v4652 = vadd.f32 %v4311, %v4651
  %4653 = vdwg.mxu0
  %4654 = vmatprep.subr.bf16.mxu0 %v4543
  %4655 = vmatpush1.bf16.msra.mxu0 %v4542
  %4656 = vmatprep.subr.bf16.mxu0 %v4606
  %4657 = vmatpush1.bf16.msra.mxu0 %v4603
  %4658 = vmatprep.subr.bf16.mxu0 0
  %4659 = vmatpush1.bf16.msra.mxu0 0
  %4660 = vmatprep.subr.bf16.mxu0 0
  %4661 = vmatpush1.bf16.msra.mxu0 0
  %4662 = vmatprep.subr.bf16.mxu0 0
  %4663 = vmatpush1.bf16.msra.mxu0 0
  %4664 = vmatprep.subr.bf16.mxu0 0
  %4665 = vmatpush1.bf16.msra.mxu0 0
  %4666 = vmatprep.subr.bf16.mxu0 0
  %4667 = vmatpush1.bf16.msra.mxu0 0
  %4668 = vmatprep.subr.bf16.mxu0 0
  %4669 = vmatpush1.bf16.msra.mxu0 0
  %4670 = vmatprep.subr.bf16.mxu0 0
  %4671 = vmatpush1.bf16.msra.mxu0 0
  %4672 = vmatprep.subr.bf16.mxu0 0
  %4673 = vmatpush1.bf16.msra.mxu0 0
  %4674 = vmatprep.subr.bf16.mxu0 0
  %4675 = vmatpush1.bf16.msra.mxu0 0
  %4676 = vmatprep.subr.bf16.mxu0 0
  %4677 = vmatpush1.bf16.msra.mxu0 0
  %4678 = vmatprep.subr.bf16.mxu0 0
  %4679 = vmatpush1.bf16.msra.mxu0 0
  %4680 = vmatprep.subr.bf16.mxu0 0
  %4681 = vmatpush1.bf16.msra.mxu0 0
  %4682 = vmatprep.subr.bf16.mxu0 0
  %4683 = vmatpush1.bf16.msra.mxu0 0
  %4684 = vmatprep.subr.bf16.mxu0 0
  %4685 = vmatpush1.bf16.msra.mxu0 0
  %4686 = vmatprep.mubr.bf16.mxu0 0
  %4687 = vmatmul.mubr.bf16.gmra.mrb[0].mxu0 %v4600
  %v4688 = vpop.f32.mrb[0].mxu0
  %v4689 = vadd.f32 %v4646, %v4688
  %v4690 = vpop.f32.mrb[0].mxu0
  %v4691 = vadd.f32 %v4648, %v4690
  %v4692 = vpop.f32.mrb[0].mxu0
  %v4693 = vadd.f32 %v4650, %v4692
  %v4694 = vpop.f32.mrb[0].mxu0
  %v4695 = vadd.f32 %v4652, %v4694
  %4696 = vdwg.mxu0
  %4697 = vmatprep.subr.bf16.mxu0 0
  %4698 = vmatpush1.bf16.msra.mxu0 %v4496
  %4699 = vmatprep.subr.bf16.mxu0 0
  %4700 = vmatpush1.bf16.msra.mxu0 %v4499
  %4701 = vmatprep.subr.bf16.mxu0 0
  %4702 = vmatpush1.bf16.msra.mxu0 %v4502
  %4703 = vmatprep.subr.bf16.mxu0 0
  %4704 = vmatpush1.bf16.msra.mxu0 %v4505
  %4705 = vmatprep.subr.bf16.mxu0 0
  %4706 = vmatpush1.bf16.msra.mxu0 %v4508
  %4707 = vmatprep.subr.bf16.mxu0 0
  %4708 = vmatpush1.bf16.msra.mxu0 %v4511
  %4709 = vmatprep.subr.bf16.mxu0 0
  %4710 = vmatpush1.bf16.msra.mxu0 %v4514
  %4711 = vmatprep.subr.bf16.mxu0 0
  %4712 = vmatpush1.bf16.msra.mxu0 %v4517
  %4713 = vmatprep.subr.bf16.mxu0 0
  %4714 = vmatpush1.bf16.msra.mxu0 %v4520
  %4715 = vmatprep.subr.bf16.mxu0 0
  %4716 = vmatpush1.bf16.msra.mxu0 %v4523
  %4717 = vmatprep.subr.bf16.mxu0 0
  %4718 = vmatpush1.bf16.msra.mxu0 %v4526
  %4719 = vmatprep.subr.bf16.mxu0 0
  %4720 = vmatpush1.bf16.msra.mxu0 %v4529
  %4721 = vmatprep.subr.bf16.mxu0 0
  %4722 = vmatpush1.bf16.msra.mxu0 %v4532
  %4723 = vmatprep.subr.bf16.mxu0 0
  %4724 = vmatpush1.bf16.msra.mxu0 %v4535
  %4725 = vmatprep.subr.bf16.mxu0 0
  %4726 = vmatpush1.bf16.msra.mxu0 %v4538
  %4727 = vmatprep.subr.bf16.mxu0 0
  %4728 = vmatpush1.bf16.msra.mxu0 %v4541
  %4729 = vmatprep.mubr.bf16.mxu0 %v4207
  %4730 = vmatmul.mubr.bf16.gmra.mrb[0].mxu0 %v4206
  %v4731 = vpop.f32.mrb[0].mxu0
  %v4732 = vadd.f32 %v4315, %v4731
  %v4733 = vpop.f32.mrb[0].mxu0
  %v4734 = vpop.f32.mrb[0].mxu0
  %v4735 = vadd.f32 %v4315, %v4734
  %v4736 = vpop.f32.mrb[0].mxu0
  %4737 = vdwg.mxu0
  %4738 = vmatprep.subr.bf16.mxu0 0
  %4739 = vmatpush1.bf16.msra.mxu0 %v4544
  %4740 = vmatprep.subr.bf16.mxu0 0
  %4741 = vmatpush1.bf16.msra.mxu0 %v4609
  %4742 = vmatprep.subr.bf16.mxu0 0
  %4743 = vmatpush1.bf16.msra.mxu0 0
  %4744 = vmatprep.subr.bf16.mxu0 0
  %4745 = vmatpush1.bf16.msra.mxu0 0
  %4746 = vmatprep.subr.bf16.mxu0 0
  %4747 = vmatpush1.bf16.msra.mxu0 0
  %4748 = vmatprep.subr.bf16.mxu0 0
  %4749 = vmatpush1.bf16.msra.mxu0 0
  %4750 = vmatprep.subr.bf16.mxu0 0
  %4751 = vmatpush1.bf16.msra.mxu0 0
  %4752 = vmatprep.subr.bf16.mxu0 0
  %4753 = vmatpush1.bf16.msra.mxu0 0
  %4754 = vmatprep.subr.bf16.mxu0 0
  %4755 = vmatpush1.bf16.msra.mxu0 0
  %4756 = vmatprep.subr.bf16.mxu0 0
  %4757 = vmatpush1.bf16.msra.mxu0 0
  %4758 = vmatprep.subr.bf16.mxu0 0
  %4759 = vmatpush1.bf16.msra.mxu0 0
  %4760 = vmatprep.subr.bf16.mxu0 0
  %4761 = vmatpush1.bf16.msra.mxu0 0
  %4762 = vmatprep.subr.bf16.mxu0 0
  %4763 = vmatpush1.bf16.msra.mxu0 0
  %4764 = vmatprep.subr.bf16.mxu0 0
  %4765 = vmatpush1.bf16.msra.mxu0 0
  %4766 = vmatprep.subr.bf16.mxu0 0
  %4767 = vmatpush1.bf16.msra.mxu0 0
  %4768 = vmatprep.subr.bf16.mxu0 0
  %4769 = vmatpush1.bf16.msra.mxu0 0
  %4770 = vmatprep.mubr.bf16.mxu0 0
  %4771 = vmatmul.mubr.bf16.gmra.mrb[0].mxu0 %v4600
  %v4772 = vpop.f32.mrb[0].mxu0
  %v4773 = vadd.f32 %v4732, %v4772
  %v4774 = vpop.f32.mrb[0].mxu0
  %v4775 = vpop.f32.mrb[0].mxu0
  %v4776 = vadd.f32 %v4735, %v4775
  %v4777 = vpop.f32.mrb[0].mxu0
  %4778 = vdwg.mxu0
  %v4779 = vmax.f32 %v4689, 0.0
  %v4780 = vmax.f32 %v4691, 0.0
  %v4781 = vmax.f32 %v4773, 0.0
  %v4782 = vmax.f32 %v4693, 0.0
  %v4783 = vmax.f32 %v4695, 0.0
  %v4784 = vmax.f32 %v4776, 0.0
  %v4785 = vadd.f32 %v4779, %v4780
  %v4786 = vsel %vm1418, %v4781, 0.0
  %v4787 = vadd.f32 %v4785, %v4786
  %4788 = vadd.xlane.f32.xlu0 %v4787
  %v4789 = vpop.xlane.xlu0 %4788
  %v4790 = vadd.f32 %v4782, %v4783
  %v4791 = vsel %vm1418, %v4784, 0.0
  %v4792 = vadd.f32 %v4790, %v4791
  %4793 = vadd.xlane.f32.xlu0 %v4792
  %v4794 = vpop.xlane.xlu0 %4793
  %v4795 = vmul.f32 %v4789, %v1428
  %v4796 = vmul.f32 %v4794, %v1428
  %v4797 = vsub.f32 %v4779, %v4795
  %v4798 = vsub.f32 %v4780, %v4795
  %v4799 = vsub.f32 %v4781, %v4795
  %v4800 = vsub.f32 %v4782, %v4796
  %v4801 = vsub.f32 %v4783, %v4796
  %v4802 = vsub.f32 %v4784, %v4796
  %v4803 = vmul.f32 %v4797, %v4797
  %v4804 = vmul.f32 %v4798, %v4798
  %v4805 = vmul.f32 %v4799, %v4799
  %v4806 = vmul.f32 %v4800, %v4800
  %v4807 = vmul.f32 %v4801, %v4801
  %v4808 = vmul.f32 %v4802, %v4802
  %v4809 = vadd.f32 %v4803, %v4804
  %v4810 = vsel %vm1418, %v4805, 0.0
  %v4811 = vadd.f32 %v4809, %v4810
  %4812 = vadd.xlane.f32.xlu0 %v4811
  %v4813 = vpop.xlane.xlu0 %4812
  %v4814 = vadd.f32 %v4806, %v4807
  %v4815 = vsel %vm1418, %v4808, 0.0
  %v4816 = vadd.f32 %v4814, %v4815
  %4817 = vadd.xlane.f32.xlu0 %v4816
  %v4818 = vpop.xlane.xlu0 %4817
  %v4819 = vmul.f32 %v4813, %v1428
  %v4820 = vmul.f32 %v4818, %v1428
  %v4821 = vadd.f32 %v4819, 1e-05
  %v4822 = vadd.f32 %v4820, 1e-05
  %v4823 = vrsqrt.pop %v4821
  %v4824 = vrsqrt.pop %v4822
  %s4825 = scalar_lea.vmem %s4301, 1
  %v4826 = vld [vmem:[%s4825] ss:$4 sm:$0x7]
  %v4828 = vlaneseq
  %v4829 = vshrl.u32 %v4828, 7
  %v4830 = vsub.s32 0, %v4829
  %v4831 = vrot.slane %v4826, %v4830
  %v4832 = vlaneseq
  %v4833 = vshrl.u32 %v4832, 7
  %v4834 = vsub.s32 1, %v4833
  %v4835 = vrot.slane %v4826, %v4834
  %v4836 = vlaneseq
  %v4837 = vshrl.u32 %v4836, 7
  %v4838 = vsub.s32 2, %v4837
  %v4839 = vrot.slane %v4826, %v4838
  %v4843 = vmul.f32 %v4823, %v4831
  %v4844 = vmul.f32 %v4823, %v4835
  %v4845 = vmul.f32 %v4823, %v4839
  %v4846 = vmul.f32 %v4824, %v4831
  %v4847 = vmul.f32 %v4824, %v4835
  %v4848 = vmul.f32 %v4824, %v4839
  %v4849 = vmul.f32 %v4797, %v4843
  %v4850 = vmul.f32 %v4798, %v4844
  %v4851 = vmul.f32 %v4799, %v4845
  %v4852 = vmul.f32 %v4800, %v4846
  %v4853 = vmul.f32 %v4801, %v4847
  %v4854 = vmul.f32 %v4802, %v4848
  %s4855 = scalar_lea.vmem %s4301, 2
  %v4856 = vld [vmem:[%s4855] ss:$4 sm:$0x7]
  %v4858 = vlaneseq
  %v4859 = vshrl.u32 %v4858, 7
  %v4860 = vsub.s32 0, %v4859
  %v4861 = vrot.slane %v4856, %v4860
  %v4862 = vlaneseq
  %v4863 = vshrl.u32 %v4862, 7
  %v4864 = vsub.s32 1, %v4863
  %v4865 = vrot.slane %v4856, %v4864
  %v4866 = vlaneseq
  %v4867 = vshrl.u32 %v4866, 7
  %v4868 = vsub.s32 2, %v4867
  %v4869 = vrot.slane %v4856, %v4868
  %v4873 = vadd.f32 %v4849, %v4861
  %v4874 = vadd.f32 %v4850, %v4865
  %v4875 = vadd.f32 %v4851, %v4869
  %v4876 = vadd.f32 %v4852, %v4861
  %v4877 = vadd.f32 %v4853, %v4865
  %v4878 = vadd.f32 %v4854, %v4869
  %v4879 = vpack.c.bf16 %v4876, %v4873
  %v4880 = vpack.c.bf16 %v4877, %v4874
  %v4881 = vpack.c.bf16 %v4878, %v4875
  %v4885 = vunpack.c.l.b16 %v4879
  %v4886 = vunpack.c.l.b16 %v4880
  %v4887 = vunpack.c.l.b16 %v4881
  %v4888 = vunpack.c.h.b16 %v4879
  %v4889 = vunpack.c.h.b16 %v4880
  %v4890 = vunpack.c.h.b16 %v4881
  %v4891 = vpack.c.b16 %v4886, %v4885
  %v4892 = vpack.c.b16 %v4887, %v4887
  %v4893 = vpack.c.b16 %v4889, %v4888
  %v4894 = vpack.c.b16 %v4890, %v4890
  %4899 = vst [vmem:[%s12] sm:$0xff] %v4891
  %4900 = vst.msk [vmem:[%s12 + $0x8] sm:$0xf] %vm1534, %v4892
  %4901 = vst [vmem:[%s12 + $0xc] sm:$0xff] %v4893
  %4902 = vst.msk [vmem:[%s12 + $0x14] sm:$0xf] %vm1534, %v4894
  %v4903 = vld [vmem:[%s4] sm:$0xf]
  %v4904 = vld [vmem:[%s4 + $0x4] sm:$0xf]
  %v4905 = vld [vmem:[%s4 + $0x8] sm:$0xf]
  %v4906 = vld [vmem:[%s4 + $0xc] sm:$0xf]
  %v4907 = vld [vmem:[%s4 + $0x10] sm:$0xf]
  %v4908 = vld [vmem:[%s4 + $0x14] sm:$0xf]
  %v4909 = vld [vmem:[%s4 + $0x18] sm:$0xf]
  %v4910 = vld [vmem:[%s4 + $0x1c] sm:$0xf]
  %v4911 = vld [vmem:[%s4 + $0x20] sm:$0xf]
  %v4912 = vld [vmem:[%s4 + $0x24] sm:$0xf]
  %v4913 = vld [vmem:[%s4 + $0x28] sm:$0xf]
  %v4914 = vld [vmem:[%s4 + $0x2c] sm:$0xf]
  %v4915 = vld [vmem:[%s4 + $0x30] sm:$0xf]
  %v4916 = vld [vmem:[%s4 + $0x34] sm:$0xf]
  %v4917 = vld [vmem:[%s4 + $0x38] sm:$0xf]
  %v4918 = vld [vmem:[%s4 + $0x3c] sm:$0xf]
  %v4919 = vld [vmem:[%s4 + $0x40] sm:$0xf]
  %v4920 = vld [vmem:[%s4 + $0x44] sm:$0xf]
  %v4921 = vld [vmem:[%s4 + $0x48] sm:$0xf]
  %v4922 = vld [vmem:[%s4 + $0x4c] sm:$0xf]
  %v4923 = vld [vmem:[%s4 + $0x50] sm:$0xf]
  %v4924 = vld [vmem:[%s4 + $0x54] sm:$0xf]
  %v4925 = vld [vmem:[%s4 + $0x58] sm:$0xf]
  %v4926 = vld [vmem:[%s4 + $0x5c] sm:$0xf]
  %v4927 = vld [vmem:[%s4 + $0x60] sm:$0xf]
  %v4928 = vld [vmem:[%s4 + $0x64] sm:$0xf]
  %v4929 = vld [vmem:[%s4 + $0x68] sm:$0xf]
  %v4930 = vld [vmem:[%s4 + $0x6c] sm:$0xf]
  %v4931 = vld [vmem:[%s4 + $0x70] sm:$0xf]
  %v4932 = vld [vmem:[%s4 + $0x74] sm:$0xf]
  %v4933 = vld [vmem:[%s4 + $0x78] sm:$0xf]
  %v4934 = vld [vmem:[%s4 + $0x7c] sm:$0xf]
  %v4935 = vld [vmem:[%s4 + $0x80] sm:$0xf]
  %v4936 = vld [vmem:[%s4 + $0x84] sm:$0xf]
  %v4937 = vld [vmem:[%s4 + $0x88] sm:$0x7]
  %v4938 = vld [vmem:[%s5] sm:$0x1]
  %v4940 = vlaneseq
  %v4941 = vshrl.u32 %v4940, 7
  %v4942 = vsub.s32 0, %v4941
  %v4943 = vrot.slane %v4938, %v4942
  %v4980 = vunpack.c.l.b16 %v4903
  %v4981 = vunpack.c.l.b16 %v4904
  %v4982 = vunpack.c.l.b16 %v4905
  %v4983 = vunpack.c.l.b16 %v4906
  %v4984 = vunpack.c.l.b16 %v4907
  %v4985 = vunpack.c.l.b16 %v4908
  %v4986 = vunpack.c.l.b16 %v4909
  %v4987 = vunpack.c.l.b16 %v4910
  %v4988 = vunpack.c.l.b16 %v4911
  %v4989 = vunpack.c.l.b16 %v4912
  %v4990 = vunpack.c.l.b16 %v4913
  %v4991 = vunpack.c.l.b16 %v4914
  %v4992 = vunpack.c.l.b16 %v4915
  %v4993 = vunpack.c.l.b16 %v4916
  %v4994 = vunpack.c.l.b16 %v4917
  %v4995 = vunpack.c.l.b16 %v4918
  %v4996 = vunpack.c.l.b16 %v4919
  %v4997 = vunpack.c.l.b16 %v4920
  %v4998 = vunpack.c.l.b16 %v4921
  %v4999 = vunpack.c.l.b16 %v4922
  %v5000 = vunpack.c.l.b16 %v4923
  %v5001 = vunpack.c.l.b16 %v4924
  %v5002 = vunpack.c.l.b16 %v4925
  %v5003 = vunpack.c.l.b16 %v4926
  %v5004 = vunpack.c.l.b16 %v4927
  %v5005 = vunpack.c.l.b16 %v4928
  %v5006 = vunpack.c.l.b16 %v4929
  %v5007 = vunpack.c.l.b16 %v4930
  %v5008 = vunpack.c.l.b16 %v4931
  %v5009 = vunpack.c.l.b16 %v4932
  %v5010 = vunpack.c.l.b16 %v4933
  %v5011 = vunpack.c.l.b16 %v4934
  %v5012 = vunpack.c.l.b16 %v4935
  %v5013 = vunpack.c.l.b16 %v4936
  %v5014 = vunpack.c.l.b16 %v4937
  %v5015 = vpack.c.b16 %v4981, %v4980
  %v5016 = vpack.c.b16 %v4983, %v4982
  %v5017 = vpack.c.b16 %v4985, %v4984
  %v5018 = vpack.c.b16 %v4987, %v4986
  %v5019 = vpack.c.b16 %v4989, %v4988
  %v5020 = vpack.c.b16 %v4991, %v4990
  %v5021 = vpack.c.b16 %v4993, %v4992
  %v5022 = vpack.c.b16 %v4995, %v4994
  %v5023 = vpack.c.b16 %v4997, %v4996
  %v5024 = vpack.c.b16 %v4999, %v4998
  %v5025 = vpack.c.b16 %v5001, %v5000
  %v5026 = vpack.c.b16 %v5003, %v5002
  %v5027 = vpack.c.b16 %v5005, %v5004
  %v5028 = vpack.c.b16 %v5007, %v5006
  %v5029 = vpack.c.b16 %v5009, %v5008
  %v5030 = vpack.c.b16 %v5011, %v5010
  %v5031 = vpack.c.b16 %v5013, %v5012
  %v5032 = vpack.c.b16 %v5014, %v5014
  %v5051 = vsel %vm1418, %v4881, 0
  %v5054 = vsel %vm1909, %v5032, 0
  %5056 = vmatprep.subr.bf16.mxu0 0
  %5057 = vmatpush1.bf16.msra.mxu0 %v5015
  %5058 = vmatprep.subr.bf16.mxu0 0
  %5059 = vmatpush1.bf16.msra.mxu0 %v5016
  %5060 = vmatprep.subr.bf16.mxu0 0
  %5061 = vmatpush1.bf16.msra.mxu0 %v5017
  %5062 = vmatprep.subr.bf16.mxu0 0
  %5063 = vmatpush1.bf16.msra.mxu0 %v5018
  %5064 = vmatprep.subr.bf16.mxu0 0
  %5065 = vmatpush1.bf16.msra.mxu0 %v5019
  %5066 = vmatprep.subr.bf16.mxu0 0
  %5067 = vmatpush1.bf16.msra.mxu0 %v5020
  %5068 = vmatprep.subr.bf16.mxu0 0
  %5069 = vmatpush1.bf16.msra.mxu0 %v5021
  %5070 = vmatprep.subr.bf16.mxu0 0
  %5071 = vmatpush1.bf16.msra.mxu0 %v5022
  %5072 = vmatprep.subr.bf16.mxu0 0
  %5073 = vmatpush1.bf16.msra.mxu0 %v5023
  %5074 = vmatprep.subr.bf16.mxu0 0
  %5075 = vmatpush1.bf16.msra.mxu0 %v5024
  %5076 = vmatprep.subr.bf16.mxu0 0
  %5077 = vmatpush1.bf16.msra.mxu0 %v5025
  %5078 = vmatprep.subr.bf16.mxu0 0
  %5079 = vmatpush1.bf16.msra.mxu0 %v5026
  %5080 = vmatprep.subr.bf16.mxu0 0
  %5081 = vmatpush1.bf16.msra.mxu0 %v5027
  %5082 = vmatprep.subr.bf16.mxu0 0
  %5083 = vmatpush1.bf16.msra.mxu0 %v5028
  %5084 = vmatprep.subr.bf16.mxu0 0
  %5085 = vmatpush1.bf16.msra.mxu0 %v5029
  %5086 = vmatprep.subr.bf16.mxu0 0
  %5087 = vmatpush1.bf16.msra.mxu0 %v5030
  %5088 = vmatprep.mubr.bf16.mxu0 %v4880
  %5089 = vmatmul.mubr.bf16.gmra.mrb[0].mxu0 %v4879
  %v5090 = vpop.f32.mrb[0].mxu0
  %v5091 = vadd.f32 %v4943, %v5090
  %v5092 = vpop.f32.mrb[0].mxu0
  %v5093 = vpop.f32.mrb[0].mxu0
  %v5094 = vadd.f32 %v4943, %v5093
  %v5095 = vpop.f32.mrb[0].mxu0
  %5096 = vdwg.mxu0
  %5097 = vmatprep.subr.bf16.mxu0 0
  %5098 = vmatpush1.bf16.msra.mxu0 %v5031
  %5099 = vmatprep.subr.bf16.mxu0 0
  %5100 = vmatpush1.bf16.msra.mxu0 %v5054
  %5101 = vmatprep.subr.bf16.mxu0 0
  %5102 = vmatpush1.bf16.msra.mxu0 0
  %5103 = vmatprep.subr.bf16.mxu0 0
  %5104 = vmatpush1.bf16.msra.mxu0 0
  %5105 = vmatprep.subr.bf16.mxu0 0
  %5106 = vmatpush1.bf16.msra.mxu0 0
  %5107 = vmatprep.subr.bf16.mxu0 0
  %5108 = vmatpush1.bf16.msra.mxu0 0
  %5109 = vmatprep.subr.bf16.mxu0 0
  %5110 = vmatpush1.bf16.msra.mxu0 0
  %5111 = vmatprep.subr.bf16.mxu0 0
  %5112 = vmatpush1.bf16.msra.mxu0 0
  %5113 = vmatprep.subr.bf16.mxu0 0
  %5114 = vmatpush1.bf16.msra.mxu0 0
  %5115 = vmatprep.subr.bf16.mxu0 0
  %5116 = vmatpush1.bf16.msra.mxu0 0
  %5117 = vmatprep.subr.bf16.mxu0 0
  %5118 = vmatpush1.bf16.msra.mxu0 0
  %5119 = vmatprep.subr.bf16.mxu0 0
  %5120 = vmatpush1.bf16.msra.mxu0 0
  %5121 = vmatprep.subr.bf16.mxu0 0
  %5122 = vmatpush1.bf16.msra.mxu0 0
  %5123 = vmatprep.subr.bf16.mxu0 0
  %5124 = vmatpush1.bf16.msra.mxu0 0
  %5125 = vmatprep.subr.bf16.mxu0 0
  %5126 = vmatpush1.bf16.msra.mxu0 0
  %5127 = vmatprep.subr.bf16.mxu0 0
  %5128 = vmatpush1.bf16.msra.mxu0 0
  %5129 = vmatprep.mubr.bf16.mxu0 0
  %5130 = vmatmul.mubr.bf16.gmra.mrb[0].mxu0 %v5051
  %v5131 = vpop.f32.mrb[0].mxu0
  %v5132 = vadd.f32 %v5091, %v5131
  %v5133 = vpop.f32.mrb[0].mxu0
  %v5134 = vpop.f32.mrb[0].mxu0
  %v5135 = vadd.f32 %v5094, %v5134
  %v5136 = vpop.f32.mrb[0].mxu0
  %5137 = vdwg.mxu0
  %5138 = vmax.xlane.f32.xlu0 %v5132
  %v5139 = vpop.xlane.xlu0 %5138
  %5140 = vmax.xlane.f32.xlu0 %v5135
  %v5141 = vpop.xlane.xlu0 %5140
  %v5142 = vsub.f32 %v5132, %v5139
  %v5143 = vsub.f32 %v5135, %v5141
  %v5144 = vmul.f32 %v5142, 1.442695
  %v5145 = vpow.pop %v5144
  %v5146 = vmul.f32 %v5143, 1.442695
  %v5147 = vpow.pop %v5146
  %5148 = vadd.xlane.f32.xlu0 %v5145
  %v5149 = vpop.xlane.xlu0 %5148
  %5150 = vadd.xlane.f32.xlu0 %v5147
  %v5151 = vpop.xlane.xlu0 %5150
  %v5152 = vrcp.pop %v5149
  %v5153 = vmul.f32 %v5145, %v5152
  %v5154 = vrcp.pop %v5151
  %v5155 = vmul.f32 %v5147, %v5154
  %5156 = vst [vmem:[%s6] sm:$0xff] %v5153
  %5157 = vst [vmem:[%s6 + $0x8] sm:$0xff] %v5155
  // Predicated region
  $region26: #{deep_mlp_ln_forward.1} parent=0 // pred_check
    _
  $region27: #{deep_mlp_ln_forward.1} parent=0 // pred_check_branch
    %5159 = sbr.rel (0) target = $region29
  $region28: #{deep_mlp_ln_forward.1} parent=0 // pred_region
    _
  $region29: #{deep_mlp_ln_forward.1} parent=0 // pred_fallthru
    _
  // Predicated region
  $region30: #{deep_mlp_ln_forward.1} parent=0 // pred_check
    _
  $region31: #{deep_mlp_ln_forward.1} parent=0 // pred_check_branch
    %5161 = sbr.rel (0) target = $region33
  $region32: #{deep_mlp_ln_forward.1} parent=0 // pred_region
    _
  $region33: #{deep_mlp_ln_forward.1} parent=0 // pred_fallthru
    _
  // Predicated region
  $region34: #{deep_mlp_ln_forward.1} parent=0 // pred_check
    _
  $region35: #{deep_mlp_ln_forward.1} parent=0 // pred_check_branch
    %5163 = sbr.rel (0) target = $region37
  $region36: #{deep_mlp_ln_forward.1} parent=0 // pred_region
    _
  $region37: #{deep_mlp_ln_forward.1} parent=0 // pred_fallthru
    _
  // Predicated region
  $region38: #{deep_mlp_ln_forward.1} parent=0 // pred_check
    _
  $region39: #{deep_mlp_ln_forward.1} parent=0 // pred_check_branch
    %5165 = sbr.rel (0) target = $region41
  $region40: #{deep_mlp_ln_forward.1} parent=0 // pred_region
    _
  $region41: #{deep_mlp_ln_forward.1} parent=0 // pred_fallthru
    _
  // Predicated region
  $region42: #{deep_mlp_ln_forward.1} parent=0 // pred_check
    _
  $region43: #{deep_mlp_ln_forward.1} parent=0 // pred_check_branch
    %5167 = sbr.rel (0) target = $region45
  $region44: #{deep_mlp_ln_forward.1} parent=0 // pred_region
    _
  $region45: #{deep_mlp_ln_forward.1} parent=0 // pred_fallthru
    _
  // Predicated region
  $region46: #{deep_mlp_ln_forward.1} parent=0 // pred_check
    _
  $region47: #{deep_mlp_ln_forward.1} parent=0 // pred_check_branch
    %5169 = sbr.rel (0) target = $region49
  $region48: #{deep_mlp_ln_forward.1} parent=0 // pred_region
    _
  $region49: #{deep_mlp_ln_forward.1} parent=0 // pred_fallthru
    _
  // Predicated region
  $region50: #{deep_mlp_ln_forward.1} parent=0 // pred_check
    _
  $region51: #{deep_mlp_ln_forward.1} parent=0 // pred_check_branch
    %5171 = sbr.rel (0) target = $region53
  $region52: #{deep_mlp_ln_forward.1} parent=0 // pred_region
    _
  $region53: #{deep_mlp_ln_forward.1} parent=0 // pred_fallthru
    _
  // Predicated region
  $region54: #{deep_mlp_ln_forward.1} parent=0 // pred_check
    _
  $region55: #{deep_mlp_ln_forward.1} parent=0 // pred_check_branch
    %5173 = sbr.rel (0) target = $region57
  $region56: #{deep_mlp_ln_forward.1} parent=0 // pred_region
    _
  $region57: #{deep_mlp_ln_forward.1} parent=0 // pred_fallthru
    _
  // Predicated region
  $region58: #{deep_mlp_ln_forward.1} parent=0 // pred_check
    _
  $region59: #{deep_mlp_ln_forward.1} parent=0 // pred_check_branch
    %5175 = sbr.rel (0) target = $region61
  $region60: #{deep_mlp_ln_forward.1} parent=0 // pred_region
    _
  $region61: #{deep_mlp_ln_forward.1} parent=0 // pred_fallthru
    _
  // Predicated region
  $region62: #{deep_mlp_ln_forward.1} parent=0 // pred_check
    _
  $region63: #{deep_mlp_ln_forward.1} parent=0 // pred_check_branch
    %5177 = sbr.rel (0) target = $region65
  $region64: #{deep_mlp_ln_forward.1} parent=0 // pred_region
    _
  $region65: #{deep_mlp_ln_forward.1} parent=0 // pred_fallthru
    _
  // Predicated region
  $region66: #{deep_mlp_ln_forward.1} parent=0 // pred_check
    _
  $region67: #{deep_mlp_ln_forward.1} parent=0 // pred_check_branch
    %5179 = sbr.rel (0) target = $region69
  $region68: #{deep_mlp_ln_forward.1} parent=0 // pred_region
    _
  $region69: #{deep_mlp_ln_forward.1} parent=0 // pred_fallthru
    _
  // Predicated region
  $region70: #{deep_mlp_ln_forward.1} parent=0 // pred_check
    _
  $region71: #{deep_mlp_ln_forward.1} parent=0 // pred_check_branch
    %5181 = sbr.rel (0) target = $region73
  $region72: #{deep_mlp_ln_forward.1} parent=0 // pred_region
    _
  $region73: #{deep_mlp_ln_forward.1} parent=0 // pred_fallthru
    _
  // Predicated region
  $region74: #{deep_mlp_ln_forward.1} parent=0 // pred_check
    _
  $region75: #{deep_mlp_ln_forward.1} parent=0 // pred_check_branch
    %5183 = sbr.rel (0) target = $region77
  $region76: #{deep_mlp_ln_forward.1} parent=0 // pred_region
    _
  $region77: #{deep_mlp_ln_forward.1} parent=0 // pred_fallthru
    _
  // Predicated region
  $region78: #{deep_mlp_ln_forward.1} parent=0 // pred_check
    _
  $region79: #{deep_mlp_ln_forward.1} parent=0 // pred_check_branch
    %5185 = sbr.rel (0) target = $region81
  $region80: #{deep_mlp_ln_forward.1} parent=0 // pred_region
    _
  $region81: #{deep_mlp_ln_forward.1} parent=0 // pred_fallthru
    _

</llo_original>
